<compile_context>
chip_gen: v5e
topology: v5e:2x2
jax: 0.10.0
libtpu: 0.0.40
codegen_flags: <defaults>
</compile_context>

<pallas_src>
import functools

import jax
import jax.numpy as jnp
from jax import lax
from jax.experimental import pallas as pl
from jax.experimental.pallas import tpu as pltpu

LANE = 128


# ------------------------------ VMEM budgeting -------------------------------
@functools.lru_cache(maxsize=None)
def _vmem_limit_bytes():
    cap = 64 * 1024 * 1024                       # safe fallback (v7x per-TC VMEM)
    try:
        cap = int(pltpu.get_tpu_info().vmem_capacity_bytes)
    except Exception:
        pass
    # Leave headroom for Mosaic-internal scratch; ~96 MiB on v5e/v6e, ~48 MiB v7x.
    return int(max(32 * 1024 * 1024, min(cap * 3 // 4, 112 * 1024 * 1024)))


def _ceil_to(x, m):
    return ((x + m - 1) // m) * m


def _step_vmem_bytes(T, W, Cin, Cout, in_b, cd_b, out_b):
    """Rough per-grid-step VMEM footprint: double-buffered blocks + intermediates."""
    Me = (T + 2) * W
    blocks = 2 * (T * W * Cin * in_b + 2 * W * Cin * in_b
                  + 9 * Cin * Cout * cd_b + T * W * Cout * out_b + 2 * Cout * 4)
    interm = 3 * Me * Cin * cd_b + Me * 3 * Cin * cd_b + T * W * Cout * 4
    return blocks + interm


def _pick_tile_h(H, W, Cin, Cout, in_b, cd_b, out_b, budget):
    best = 1
    for d in range(1, H + 1):
        if H % d == 0 and _step_vmem_bytes(d, W, Cin, Cout, in_b, cd_b, out_b) <= budget:
            best = d
    # Keep >=2 row tiles per image when possible so the (batch, row-tile) parallel
    # grid has enough steps to pipeline DMA and feed both v7x TensorCores at N=1.
    if best == H and H % 2 == 0 and H >= 16:
        best = H // 2
    return best


# ---------------------- fused (pre-BN/ReLU) + conv3x3 + stats ----------------
def _conv3x3_fused_kernel(*refs, T, W, Cin, Cout, apply_preact, use_bias,
                          post_relu, emit_stats, compute_dtype):
    it = iter(refs)
    x_ref = next(it)                                  # (T*W, Cin) current row tile
    top_ref = next(it)                                # (W, Cin)   halo row above
    bot_ref = next(it)                                # (W, Cin)   halo row below
    scale_ref = next(it) if apply_preact else None    # (1, Cin)
    shift_ref = next(it) if apply_preact else None    # (1, Cin)
    w_ref = next(it)                                  # (3, 3*Cin, Cout) packed taps
    b_ref = next(it) if use_bias else None            # (1, Cout)
    y_ref = next(it)                                  # (T*W, Cout)
    stats_ref = next(it) if emit_stats else None      # (2, Cout)

    M = T * W
    Me = (T + 2) * W

    if apply_preact:
        # Fused BatchNorm affine + ReLU of the previous layer's raw conv output.
        sc = scale_ref[...]
        sh = shift_ref[...]

        def pre(v):
            return jnp.maximum(v.astype(jnp.float32) * sc + sh, 0.0)

        x, top, bot = pre(x_ref[...]), pre(top_ref[...]), pre(bot_ref[...])
        # Boundary halos are zero-padding rows of the *post-ReLU* activation:
        # re-zero them after the affine (the wrapper stores raw zeros there).
        t_id = pl.program_id(1)
        top = jnp.where(t_id == 0, 0.0, top)
        bot = jnp.where(t_id == pl.num_programs(1) - 1, 0.0, bot)
    else:
        x, top, bot = x_ref[...], top_ref[...], bot_ref[...]

    # Halo-extended tile: row r of xe is image row (tile*T + r - 1).
    xe = jnp.concatenate([top.astype(compute_dtype),
                          x.astype(compute_dtype),
                          bot.astype(compute_dtype)], axis=0)         # (Me, Cin)

    # Column (w-axis, dw = -1/+1) shifted copies with zero fill at the image
    # edge, built once, then packed along the MXU contraction dim (K = 3*Cin).
    wcol = lax.broadcasted_iota(jnp.int32, (Me, 1), 0) % W
    zrow = jnp.zeros((1, Cin), xe.dtype)
    x_wm = jnp.where(wcol >= 1,
                     jnp.concatenate([zrow, xe[:Me - 1]], axis=0), 0.0)   # x[., w-1]
    x_wp = jnp.where(wcol <= W - 2,
                     jnp.concatenate([xe[1:], zrow], axis=0), 0.0)        # x[., w+1]
    xcols = jnp.concatenate([x_wm, xe, x_wp], axis=1)                     # (Me, 3*Cin)

    # One MXU matmul per kernel row; the kh row shift is a tile-aligned slice
    # (offset kh*W, W % 8 == 0) of the halo-extended packed input.
    acc = None
    for kh in range(3):
        tap = xcols[kh * W:kh * W + M]
        part = jnp.dot(tap, w_ref[kh].astype(compute_dtype),
                       preferred_element_type=jnp.float32)
        acc = part if acc is None else acc + part                         # (M, Cout) f32

    if use_bias:
        acc = acc + b_ref[...]    # skipped under BN: a constant bias cancels exactly
    if post_relu:
        acc = jnp.maximum(acc, 0.0)

    if emit_stats:
        # Per-tile partial batch stats; reduced outside the kernel.
        # TODO(synk): switch to a shifted / Welford reduction if N*H*W grows large
        # enough for E[x^2]-E[x]^2 cancellation to matter.
        s1 = jnp.sum(acc, axis=0, keepdims=True)
        s2 = jnp.sum(acc * acc, axis=0, keepdims=True)
        stats_ref[...] = jnp.concatenate([s1, s2], axis=0)

    y_ref[...] = acc.astype(y_ref.dtype)


def conv3x3_fused(x_flat, w_hwio, *, H, W, tile_h, scale=None, shift=None,
                  apply_preact=False, bias=None, post_relu=False,
                  emit_stats=False, compute_dtype=jnp.float32,
                  out_dtype=jnp.float32):
    """Fused [optional BN-affine+ReLU preact] -> 3x3 'same' conv [-> bias/ReLU/stats].

    x_flat: (N, H*W, Cin) flat NHWC activations; w_hwio: (3, 3, Cin, Cout).
    Returns (N, H*W, Cout) [, (N, n_tiles, 2, Cout) partial (sum, sumsq) stats].
    """
    N, M, Cin = x_flat.shape
    assert M == H * W and W % 8 == 0 and H % tile_h == 0, (H, W, tile_h)
    KS, _, wc_in, Cout = w_hwio.shape
    assert KS == 3 and wc_in == Cin, "specialised for ks=3, stride=1, pad=1"
    T = tile_h
    n_t = H // T

    # 1-row halos per row tile (zeros at the image boundary) -- tiny side arrays.
    xr = x_flat.reshape(N, n_t, T, W, Cin)
    zhalo = jnp.zeros((N, 1, W, Cin), x_flat.dtype)
    halo_top = jnp.concatenate([zhalo, xr[:, :-1, T - 1]], axis=1)   # (N, n_t, W, Cin)
    halo_bot = jnp.concatenate([xr[:, 1:, 0], zhalo], axis=1)        # (N, n_t, W, Cin)

    # Pack the 3 column taps of each kernel row along the contraction dim.
    w_packed = w_hwio.reshape(KS, KS * Cin, Cout).astype(compute_dtype)

    kernel = functools.partial(
        _conv3x3_fused_kernel, T=T, W=W, Cin=Cin, Cout=Cout,
        apply_preact=apply_preact, use_bias=bias is not None,
        post_relu=post_relu, emit_stats=emit_stats, compute_dtype=compute_dtype)

    in_specs = [pl.BlockSpec((None, T * W, Cin), lambda n, t: (n, t, 0)),
                pl.BlockSpec((None, None, W, Cin), lambda n, t: (n, t, 0, 0)),
                pl.BlockSpec((None, None, W, Cin), lambda n, t: (n, t, 0, 0))]
    args = [x_flat, halo_top, halo_bot]
    if apply_preact:
        in_specs += [pl.BlockSpec((1, Cin), lambda n, t: (0, 0)),
                     pl.BlockSpec((1, Cin), lambda n, t: (0, 0))]
        args += [scale.reshape(1, Cin).astype(jnp.float32),
                 shift.reshape(1, Cin).astype(jnp.float32)]
    # TODO(synk): pin the weight block single-buffered (pipeline_mode=pl.Buffered(1))
    # and add a Cout-tile grid axis for very deep layers (Cout >= 512) on v7x.
    in_specs.append(pl.BlockSpec((KS, KS * Cin, Cout), lambda n, t: (0, 0, 0)))
    args.append(w_packed)
    if bias is not None:
        in_specs.append(pl.BlockSpec((1, Cout), lambda n, t: (0, 0)))
        args.append(bias.reshape(1, Cout).astype(jnp.float32))

    out_shape = [jax.ShapeDtypeStruct((N, M, Cout), out_dtype)]
    out_specs = [pl.BlockSpec((None, T * W, Cout), lambda n, t: (n, t, 0))]
    if emit_stats:
        out_shape.append(jax.ShapeDtypeStruct((N, n_t, 2, Cout), jnp.float32))
        out_specs.append(pl.BlockSpec((None, None, 2, Cout), lambda n, t: (n, t, 0, 0)))

    isz = lambda dt: jnp.dtype(dt).itemsize
    flops = 2 * N * M * (9 * Cin) * Cout
    bytes_accessed = int(
        x_flat.size * isz(x_flat.dtype)
        + 2 * N * n_t * W * Cin * isz(x_flat.dtype)
        + w_packed.size * isz(compute_dtype)
        + N * M * Cout * isz(out_dtype)
        + (N * n_t * 2 * Cout * 4 if emit_stats else 0))

    outs = pl.pallas_call(
        kernel,
        out_shape=tuple(out_shape),
        grid_spec=pltpu.PrefetchScalarGridSpec(
            num_scalar_prefetch=0,
            grid=(N, n_t),
            in_specs=in_specs,
            out_specs=tuple(out_specs)),
        compiler_params=pltpu.CompilerParams(
            dimension_semantics=("parallel", "parallel"),
            vmem_limit_bytes=_vmem_limit_bytes()),
        cost_estimate=pl.CostEstimate(flops=flops, transcendentals=0,
                                      bytes_accessed=bytes_accessed),
    )(*args)
    if emit_stats:
        return outs[0], outs[1]
    return outs[0]


# ----------------- final BN-affine + ReLU (last layer only) ------------------
def _bn_relu_kernel(y_ref, scale_ref, shift_ref, o_ref):
    y = y_ref[...].astype(jnp.float32)
    o_ref[...] = jnp.maximum(y * scale_ref[...] + shift_ref[...], 0.0).astype(o_ref.dtype)


def bn_relu(y_flat, scale, shift, *, tile_m, out_dtype=jnp.float32):
    N, M, C = y_flat.shape
    assert M % tile_m == 0
    n_t = M // tile_m
    flops = 3 * N * M * C
    bytes_accessed = int(N * M * C * (jnp.dtype(y_flat.dtype).itemsize
                                      + jnp.dtype(out_dtype).itemsize) + 2 * C * 4)
    return pl.pallas_call(
        _bn_relu_kernel,
        out_shape=jax.ShapeDtypeStruct((N, M, C), out_dtype),
        grid_spec=pltpu.PrefetchScalarGridSpec(
            num_scalar_prefetch=0,
            grid=(N, n_t),
            in_specs=[pl.BlockSpec((None, tile_m, C), lambda n, t: (n, t, 0)),
                      pl.BlockSpec((1, C), lambda n, t: (0, 0)),
                      pl.BlockSpec((1, C), lambda n, t: (0, 0))],
            out_specs=pl.BlockSpec((None, tile_m, C), lambda n, t: (n, t, 0))),
        compiler_params=pltpu.CompilerParams(
            dimension_semantics=("parallel", "parallel"),
            vmem_limit_bytes=_vmem_limit_bytes()),
        cost_estimate=pl.CostEstimate(flops=flops, transcendentals=0,
                                      bytes_accessed=bytes_accessed),
    )(y_flat, scale.reshape(1, C).astype(jnp.float32),
      shift.reshape(1, C).astype(jnp.float32))


# ------------------------------ module forward ------------------------------
def unet_conv2_forward(x_nchw, params, *, is_batchnorm=True, eps=1e-5,
                       compute_dtype=jnp.float32, act_dtype=jnp.float32,
                       pad_channels=True):
    """unetConv2.forward. x: (N, Cin, H, W) -> (N, Cout, H, W).

    compute_dtype / act_dtype may be bf16 for production (MXU operands and
    inter-layer activations); accumulation and BN math stay f32.
    """
    N, _, H, W = x_nchw.shape
    x = jnp.transpose(x_nchw, (0, 2, 3, 1)).reshape(N, H * W, -1)   # flat NHWC
    cnt = float(N * H * W)
    c_final = params[-1]["w"].shape[-1]
    budget = _vmem_limit_bytes() // 2
    scale = shift = None
    tile_h = H
    for li, p in enumerate(params):
        Cin = x.shape[-1]
        Cout = p["w"].shape[-1]
        # Lane-dense outputs: pad channels to a multiple of 128 so stores are
        # unmasked vst; pads stay exactly zero through conv/BN/ReLU and are
        # sliced off at the end.
        Cp = _ceil_to(Cout, LANE) if pad_channels else Cout
        w = jnp.pad(p["w"], ((0, 0), (0, 0),
                             (0, Cin - p["w"].shape[2]), (0, Cp - Cout)))
        tile_h = _pick_tile_h(H, W, Cin, Cp,
                              jnp.dtype(x.dtype).itemsize,
                              jnp.dtype(compute_dtype).itemsize,
                              jnp.dtype(act_dtype).itemsize, budget)
        if is_batchnorm:
            # Conv of this layer, with the previous layer's BN+ReLU fused in as a
            # pre-activation; bias dropped (cancels under BN); partial batch stats
            # emitted per (batch, row-tile) step and reduced here (tiny arrays).
            y, stats = conv3x3_fused(
                x, w, H=H, W=W, tile_h=tile_h,
                scale=scale, shift=shift, apply_preact=(li > 0),
                bias=None, post_relu=False, emit_stats=True,
                compute_dtype=compute_dtype, out_dtype=act_dtype)
            ssum = jnp.sum(stats[:, :, 0, :], axis=(0, 1))
            ssq = jnp.sum(stats[:, :, 1, :], axis=(0, 1))
            mean = ssum / cnt
            var = jnp.maximum(ssq / cnt - mean * mean, 0.0)   # biased training-mode var
            gamma = jnp.pad(p["gamma"], (0, Cp - Cout), constant_values=1.0)
            beta = jnp.pad(p["beta"], (0, Cp - Cout))
            scale = gamma * lax.rsqrt(var + eps)
            shift = beta - mean * scale
            x = y
        else:
            # No BN: bias + ReLU fused directly into the conv kernel.
            bias = jnp.pad(p["b"], (0, Cp - Cout))
            x = conv3x3_fused(
                x, w, H=H, W=W, tile_h=tile_h,
                apply_preact=False, bias=bias, post_relu=True,
                emit_stats=False, compute_dtype=compute_dtype, out_dtype=act_dtype)
    if is_batchnorm:
        # Final layer's BN + ReLU (needs global batch stats -> one extra pass).
        # TODO(synk): fuse this into this block's consumer (next conv / pooling)
        # the same way the preact fusion works between the two internal layers.
        x = bn_relu(x, scale, shift, tile_m=tile_h * W, out_dtype=act_dtype)
    x = x[..., :c_final]
    return jnp.transpose(x.reshape(N, H, W, c_final), (0, 3, 1, 2))


# ------------------------------ param init ----------------------------------
def init_params(key, in_size, out_size, *, n=2, ks=3):
    """Kaiming-normal weights, small random bias / gamma / beta (deterministic)."""
    params = []
    cin = in_size
    for _ in range(n):
        key, kw_, kb_, kg_, kt_ = jax.random.split(key, 5)
        fan_in = cin * ks * ks
        w = jax.random.normal(kw_, (ks, ks, cin, out_size), jnp.float32) * jnp.sqrt(2.0 / fan_in)
        params.append(dict(
            w=w,
            b=0.1 * jax.random.normal(kb_, (out_size,), jnp.float32),
            gamma=1.0 + 0.1 * jax.random.normal(kg_, (out_size,), jnp.float32),
            beta=0.1 * jax.random.normal(kt_, (out_size,), jnp.float32),
        ))
        cin = out_size
    return params


# ------------------------------ reference -----------------------------------
def _reference_forward(x_nchw, params, *, is_batchnorm=True, eps=1e-5):
    x = jnp.transpose(x_nchw, (0, 2, 3, 1))
    for p in params:
        y = lax.conv_general_dilated(
            x, p["w"], window_strides=(1, 1), padding="SAME",
            dimension_numbers=("NHWC", "HWIO", "NHWC")) + p["b"]
        if is_batchnorm:
            mean = jnp.mean(y, axis=(0, 1, 2))
            var = jnp.mean(jnp.square(y - mean), axis=(0, 1, 2))
            y = (y - mean) / jnp.sqrt(var + eps) * p["gamma"] + p["beta"]
        x = jnp.maximum(y, 0.0)
    return jnp.transpose(x, (0, 3, 1, 2))


if __name__ == "__main__":
    # unetConv2(in_size=4, out_size=8, is_batchnorm=True, n=2, ks=3, stride=1, padding=1)
    N, Cin, H, W = 2, 4, 16, 16
    Cout = 8

    key = jax.random.PRNGKey(0)
    kx, kp = jax.random.split(key)
    x = jax.random.normal(kx, (N, Cin, H, W), jnp.float32)
    params = init_params(kp, Cin, Cout, n=2, ks=3)

    fwd = jax.jit(unet_conv2_forward, static_argnames=("is_batchnorm",))

    # BatchNorm path (module default).
    out_bn = jax.block_until_ready(fwd(x, params, is_batchnorm=True))
    assert out_bn.shape == (N, Cout, H, W), out_bn.shape
    ref_bn = jax.block_until_ready(_reference_forward(x, params, is_batchnorm=True))
    err_bn = float(jnp.max(jnp.abs(out_bn - ref_bn)))
    assert err_bn < 1e-3, f"BN path mismatch vs reference: {err_bn}"

    # No-BatchNorm path (bias + ReLU fully fused into the conv kernel).
    out_nb = jax.block_until_ready(fwd(x, params, is_batchnorm=False))
    ref_nb = jax.block_until_ready(_reference_forward(x, params, is_batchnorm=False))
    err_nb = float(jnp.max(jnp.abs(out_nb - ref_nb)))
    assert err_nb < 1e-3, f"no-BN path mismatch vs reference: {err_nb}"

    print("KERNEL_OK")
</pallas_src>

<mosaic_0001>
module attributes {stable_mosaic.version = 11 : i64} {
  func.func @_conv3x3_fused_kernel(%arg0: i32, %arg1: i32, %arg2: memref<1x128x4xf32, #tpu.memory_space<vmem>>, %arg3: memref<1x1x16x4xf32, #tpu.memory_space<vmem>>, %arg4: memref<1x1x16x4xf32, #tpu.memory_space<vmem>>, %arg5: memref<3x12x128xf32, #tpu.memory_space<vmem>>, %arg6: memref<1x128x128xf32, #tpu.memory_space<vmem>>, %arg7: memref<1x1x2x128xf32, #tpu.memory_space<vmem>>) attributes {dimension_semantics = [#tpu.dimension_semantics<parallel>, #tpu.dimension_semantics<parallel>], iteration_bounds = array<i64: 2, 2>, scalar_prefetch = 0 : i64, scratch_operands = 0 : i64, tpu.core_type = #tpu.core_type<tc>, window_params = [{transform_indices = @transform_0, window_bounds = array<i64: 1, 128, 4>}, {transform_indices = @transform_1, window_bounds = array<i64: 1, 1, 16, 4>}, {transform_indices = @transform_2, window_bounds = array<i64: 1, 1, 16, 4>}, {pipeline_mode = #tpu.pipeline_mode<synchronous>, transform_indices = @transform_3, window_bounds = array<i64: 3, 12, 128>}, {transform_indices = @transform_4, window_bounds = array<i64: 1, 128, 128>}, {transform_indices = @transform_5, window_bounds = array<i64: 1, 1, 2, 128>}]} {
    %c0 = arith.constant 0 : index
    %c0_0 = arith.constant 0 : index
    %c0_1 = arith.constant 0 : index
    %0 = vector.load %arg2[%c0, %c0_0, %c0_1] : memref<1x128x4xf32, #tpu.memory_space<vmem>>, vector<1x128x4xf32>
    %1 = vector.shape_cast %0 : vector<1x128x4xf32> to vector<128x4xf32>
    %c0_2 = arith.constant 0 : index
    %c0_3 = arith.constant 0 : index
    %c0_4 = arith.constant 0 : index
    %c0_5 = arith.constant 0 : index
    %2 = vector.load %arg3[%c0_2, %c0_3, %c0_4, %c0_5] : memref<1x1x16x4xf32, #tpu.memory_space<vmem>>, vector<1x1x16x4xf32>
    %3 = vector.shape_cast %2 : vector<1x1x16x4xf32> to vector<16x4xf32>
    %c0_6 = arith.constant 0 : index
    %c0_7 = arith.constant 0 : index
    %c0_8 = arith.constant 0 : index
    %c0_9 = arith.constant 0 : index
    %4 = vector.load %arg4[%c0_6, %c0_7, %c0_8, %c0_9] : memref<1x1x16x4xf32, #tpu.memory_space<vmem>>, vector<1x1x16x4xf32>
    %5 = vector.shape_cast %4 : vector<1x1x16x4xf32> to vector<16x4xf32>
    %6 = tpu.concatenate %3, %1, %5 in 0 : vector<16x4xf32>, vector<128x4xf32>, vector<16x4xf32> -> vector<160x4xf32>
    %7 = tpu.iota {dimensions = array<i32: 0>} : vector<160x1xi32>
    %c16_i32 = arith.constant 16 : i32
    %c0_i32 = arith.constant 0 : i32
    %8 = arith.cmpi eq, %c16_i32, %c0_i32 : i32
    %c1_i32 = arith.constant 1 : i32
    %9 = arith.select %8, %c1_i32, %c16_i32 : i32
    %10 = vector.broadcast %9 : i32 to vector<160x1xi32>
    %11 = arith.remsi %7, %10 : vector<160x1xi32>
    %c0_i32_10 = arith.constant 0 : i32
    %12 = vector.broadcast %c0_i32_10 : i32 to vector<160x1xi32>
    %13 = arith.cmpi ne, %11, %12 : vector<160x1xi32>
    %c0_i32_11 = arith.constant 0 : i32
    %14 = vector.broadcast %c0_i32_11 : i32 to vector<160x1xi32>
    %15 = arith.cmpi slt, %11, %14 : vector<160x1xi32>
    %c0_i32_12 = arith.constant 0 : i32
    %16 = arith.cmpi slt, %9, %c0_i32_12 : i32
    %17 = vector.broadcast %16 : i1 to vector<160x1xi1>
    %18 = vector.broadcast %17 : vector<160x1xi1> to vector<160x1xi1>
    %19 = arith.xori %15, %18 : vector<160x1xi1>
    %20 = arith.andi %19, %13 : vector<160x1xi1>
    %21 = vector.broadcast %9 : i32 to vector<160x1xi32>
    %22 = arith.addi %11, %21 : vector<160x1xi32>
    %23 = arith.select %20, %22, %11 : vector<160x1xi1>, vector<160x1xi32>
    %cst = arith.constant 0.000000e+00 : f32
    %24 = vector.broadcast %cst : f32 to vector<1x4xf32>
    %c1_i32_13 = arith.constant 1 : i32
    %25 = vector.broadcast %c1_i32_13 : i32 to vector<160x1xi32>
    %26 = arith.cmpi sge, %23, %25 : vector<160x1xi32>
    %27 = vector.extract_strided_slice %6 {offsets = [0, 0], sizes = [159, 4], strides = [1, 1]} : vector<160x4xf32> to vector<159x4xf32>
    %28 = tpu.concatenate %24, %27 in 0 : vector<1x4xf32>, vector<159x4xf32> -> vector<160x4xf32>
    %cst_14 = arith.constant 0.000000e+00 : f32
    %29 = vector.shape_cast %26 : vector<160x1xi1> to vector<160x1xi1>
    %30 = vector.broadcast %29 : vector<160x1xi1> to vector<160x4xi1>
    %31 = vector.broadcast %cst_14 : f32 to vector<160x4xf32>
    %32 = arith.select %30, %28, %31 : vector<160x4xi1>, vector<160x4xf32>
    %c14_i32 = arith.constant 14 : i32
    %33 = vector.broadcast %c14_i32 : i32 to vector<160x1xi32>
    %34 = arith.cmpi sle, %23, %33 : vector<160x1xi32>
    %35 = vector.extract_strided_slice %6 {offsets = [1, 0], sizes = [159, 4], strides = [1, 1]} : vector<160x4xf32> to vector<159x4xf32>
    %36 = tpu.concatenate %35, %24 in 0 : vector<159x4xf32>, vector<1x4xf32> -> vector<160x4xf32>
    %cst_15 = arith.constant 0.000000e+00 : f32
    %37 = vector.shape_cast %34 : vector<160x1xi1> to vector<160x1xi1>
    %38 = vector.broadcast %37 : vector<160x1xi1> to vector<160x4xi1>
    %39 = vector.broadcast %cst_15 : f32 to vector<160x4xf32>
    %40 = arith.select %38, %36, %39 : vector<160x4xi1>, vector<160x4xf32>
    %41 = tpu.concatenate %32, %6, %40 in 1 : vector<160x4xf32>, vector<160x4xf32>, vector<160x4xf32> -> vector<160x12xf32>
    %42 = vector.extract_strided_slice %41 {offsets = [0, 0], sizes = [128, 12], strides = [1, 1]} : vector<160x12xf32> to vector<128x12xf32>
    %c0_16 = arith.constant 0 : index
    %c0_17 = arith.constant 0 : index
    %c0_18 = arith.constant 0 : index
    %43 = vector.load %arg5[%c0_16, %c0_17, %c0_18] : memref<3x12x128xf32, #tpu.memory_space<vmem>>, vector<1x12x128xf32>
    %44 = vector.shape_cast %43 : vector<1x12x128xf32> to vector<12x128xf32>
    %cst_19 = arith.constant dense<0.000000e+00> : vector<128x128xf32>
    %45 = tpu.matmul %42, %44, %cst_19 {dimension_numbers = #tpu.dot_dimension_numbers<[1], [0], [0], [1], [0, 0, 1, 1], [], []>} : vector<128x12xf32>, vector<12x128xf32>, vector<128x128xf32> -> vector<128x128xf32>
    %46 = vector.extract_strided_slice %41 {offsets = [16, 0], sizes = [128, 12], strides = [1, 1]} : vector<160x12xf32> to vector<128x12xf32>
    %c1 = arith.constant 1 : index
    %c0_20 = arith.constant 0 : index
    %c0_21 = arith.constant 0 : index
    %47 = vector.load %arg5[%c1, %c0_20, %c0_21] : memref<3x12x128xf32, #tpu.memory_space<vmem>>, vector<1x12x128xf32>
    %48 = vector.shape_cast %47 : vector<1x12x128xf32> to vector<12x128xf32>
    %cst_22 = arith.constant dense<0.000000e+00> : vector<128x128xf32>
    %49 = tpu.matmul %46, %48, %cst_22 {dimension_numbers = #tpu.dot_dimension_numbers<[1], [0], [0], [1], [0, 0, 1, 1], [], []>} : vector<128x12xf32>, vector<12x128xf32>, vector<128x128xf32> -> vector<128x128xf32>
    %50 = arith.addf %45, %49 : vector<128x128xf32>
    %51 = vector.extract_strided_slice %41 {offsets = [32, 0], sizes = [128, 12], strides = [1, 1]} : vector<160x12xf32> to vector<128x12xf32>
    %c2 = arith.constant 2 : index
    %c0_23 = arith.constant 0 : index
    %c0_24 = arith.constant 0 : index
    %52 = vector.load %arg5[%c2, %c0_23, %c0_24] : memref<3x12x128xf32, #tpu.memory_space<vmem>>, vector<1x12x128xf32>
    %53 = vector.shape_cast %52 : vector<1x12x128xf32> to vector<12x128xf32>
    %cst_25 = arith.constant dense<0.000000e+00> : vector<128x128xf32>
    %54 = tpu.matmul %51, %53, %cst_25 {dimension_numbers = #tpu.dot_dimension_numbers<[1], [0], [0], [1], [0, 0, 1, 1], [], []>} : vector<128x12xf32>, vector<12x128xf32>, vector<128x128xf32> -> vector<128x128xf32>
    %55 = arith.addf %50, %54 : vector<128x128xf32>
    %cst_26 = arith.constant dense<0.000000e+00> : vector<128xf32>
    %56 = vector.multi_reduction <add>, %55, %cst_26 [0] : vector<128x128xf32> to vector<128xf32>
    %57 = vector.shape_cast %56 : vector<128xf32> to vector<1x128xf32>
    %58 = arith.mulf %55, %55 : vector<128x128xf32>
    %cst_27 = arith.constant dense<0.000000e+00> : vector<128xf32>
    %59 = vector.multi_reduction <add>, %58, %cst_27 [0] : vector<128x128xf32> to vector<128xf32>
    %60 = vector.shape_cast %59 : vector<128xf32> to vector<1x128xf32>
    %61 = tpu.concatenate %57, %60 in 0 : vector<1x128xf32>, vector<1x128xf32> -> vector<2x128xf32>
    %c0_28 = arith.constant 0 : index
    %c0_29 = arith.constant 0 : index
    %c0_30 = arith.constant 0 : index
    %c0_31 = arith.constant 0 : index
    %62 = vector.load %arg7[%c0_28, %c0_29, %c0_30, %c0_31] : memref<1x1x2x128xf32, #tpu.memory_space<vmem>>, vector<1x1x2x128xf32>
    %63 = vector.shape_cast %62 : vector<1x1x2x128xf32> to vector<2x128xf32>
    %64 = vector.shape_cast %61 : vector<2x128xf32> to vector<1x1x2x128xf32>
    tpu.vector_store %arg7[%c0_28, %c0_29, %c0_30, %c0_31], %64 {strides = array<i32>} : memref<1x1x2x128xf32, #tpu.memory_space<vmem>>, vector<1x1x2x128xf32>,
    %c0_32 = arith.constant 0 : index
    %c0_33 = arith.constant 0 : index
    %c0_34 = arith.constant 0 : index
    %65 = vector.load %arg6[%c0_32, %c0_33, %c0_34] : memref<1x128x128xf32, #tpu.memory_space<vmem>>, vector<1x128x128xf32>
    %66 = vector.shape_cast %65 : vector<1x128x128xf32> to vector<128x128xf32>
    %67 = vector.shape_cast %55 : vector<128x128xf32> to vector<1x128x128xf32>
    tpu.vector_store %arg6[%c0_32, %c0_33, %c0_34], %67 {strides = array<i32>} : memref<1x128x128xf32, #tpu.memory_space<vmem>>, vector<1x128x128xf32>,
    return
  }
  func.func @transform_0(%arg0: i32, %arg1: i32) -> (i32, i32, i32) {
    %c0_i32 = arith.constant 0 : i32
    %c0_i32_0 = arith.constant 0 : i32
    return %arg0, %arg1, %c0_i32 : i32, i32, i32
  }
  func.func @transform_1(%arg0: i32, %arg1: i32) -> (i32, i32, i32, i32) {
    %c0_i32 = arith.constant 0 : i32
    %c0_i32_0 = arith.constant 0 : i32
    %c0_i32_1 = arith.constant 0 : i32
    return %arg0, %arg1, %c0_i32, %c0_i32_0 : i32, i32, i32, i32
  }
  func.func @transform_2(%arg0: i32, %arg1: i32) -> (i32, i32, i32, i32) {
    %c0_i32 = arith.constant 0 : i32
    %c0_i32_0 = arith.constant 0 : i32
    %c0_i32_1 = arith.constant 0 : i32
    return %arg0, %arg1, %c0_i32, %c0_i32_0 : i32, i32, i32, i32
  }
  func.func @transform_3(%arg0: i32, %arg1: i32) -> (i32, i32, i32) {
    %c0_i32 = arith.constant 0 : i32
    %c0_i32_0 = arith.constant 0 : i32
    %c0_i32_1 = arith.constant 0 : i32
    %c0_i32_2 = arith.constant 0 : i32
    return %c0_i32, %c0_i32_0, %c0_i32_1 : i32, i32, i32
  }
  func.func @transform_4(%arg0: i32, %arg1: i32) -> (i32, i32, i32) {
    %c0_i32 = arith.constant 0 : i32
    %c0_i32_0 = arith.constant 0 : i32
    return %arg0, %arg1, %c0_i32 : i32, i32, i32
  }
  func.func @transform_5(%arg0: i32, %arg1: i32) -> (i32, i32, i32, i32) {
    %c0_i32 = arith.constant 0 : i32
    %c0_i32_0 = arith.constant 0 : i32
    %c0_i32_1 = arith.constant 0 : i32
    return %arg0, %arg1, %c0_i32, %c0_i32_0 : i32, i32, i32, i32
  }
}

module attributes {stable_mosaic.version = 11 : i64} {
  func.func @_bn_relu_kernel(%arg0: i32, %arg1: i32, %arg2: memref<1x128x128xf32, #tpu.memory_space<vmem>>, %arg3: memref<1x128xf32, #tpu.memory_space<vmem>>, %arg4: memref<1x128xf32, #tpu.memory_space<vmem>>, %arg5: memref<1x128x128xf32, #tpu.memory_space<vmem>>) attributes {dimension_semantics = [#tpu.dimension_semantics<parallel>, #tpu.dimension_semantics<parallel>], iteration_bounds = array<i64: 2, 2>, scalar_prefetch = 0 : i64, scratch_operands = 0 : i64, tpu.core_type = #tpu.core_type<tc>, window_params = [{transform_indices = @transform_0, window_bounds = array<i64: 1, 128, 128>}, {pipeline_mode = #tpu.pipeline_mode<synchronous>, transform_indices = @transform_1, window_bounds = array<i64: 1, 128>}, {pipeline_mode = #tpu.pipeline_mode<synchronous>, transform_indices = @transform_2, window_bounds = array<i64: 1, 128>}, {transform_indices = @transform_3, window_bounds = array<i64: 1, 128, 128>}]} {
    %c0 = arith.constant 0 : index
    %c0_0 = arith.constant 0 : index
    %c0_1 = arith.constant 0 : index
    %0 = vector.load %arg2[%c0, %c0_0, %c0_1] : memref<1x128x128xf32, #tpu.memory_space<vmem>>, vector<1x128x128xf32>
    %1 = vector.shape_cast %0 : vector<1x128x128xf32> to vector<128x128xf32>
    %c0_2 = arith.constant 0 : index
    %c0_3 = arith.constant 0 : index
    %2 = vector.load %arg3[%c0_2, %c0_3] : memref<1x128xf32, #tpu.memory_space<vmem>>, vector<1x128xf32>
    %3 = vector.broadcast %2 : vector<1x128xf32> to vector<128x128xf32>
    %4 = arith.mulf %1, %3 : vector<128x128xf32>
    %c0_4 = arith.constant 0 : index
    %c0_5 = arith.constant 0 : index
    %5 = vector.load %arg4[%c0_4, %c0_5] : memref<1x128xf32, #tpu.memory_space<vmem>>, vector<1x128xf32>
    %6 = vector.broadcast %5 : vector<1x128xf32> to vector<128x128xf32>
    %7 = arith.addf %4, %6 : vector<128x128xf32>
    %cst = arith.constant 0.000000e+00 : f32
    %8 = vector.broadcast %cst : f32 to vector<128x128xf32>
    %9 = arith.maximumf %7, %8 : vector<128x128xf32>
    %c0_6 = arith.constant 0 : index
    %c0_7 = arith.constant 0 : index
    %c0_8 = arith.constant 0 : index
    %10 = vector.load %arg5[%c0_6, %c0_7, %c0_8] : memref<1x128x128xf32, #tpu.memory_space<vmem>>, vector<1x128x128xf32>
    %11 = vector.shape_cast %10 : vector<1x128x128xf32> to vector<128x128xf32>
    %12 = vector.shape_cast %9 : vector<128x128xf32> to vector<1x128x128xf32>
    tpu.vector_store %arg5[%c0_6, %c0_7, %c0_8], %12 {strides = array<i32>} : memref<1x128x128xf32, #tpu.memory_space<vmem>>, vector<1x128x128xf32>,
    return
  }
  func.func @transform_0(%arg0: i32, %arg1: i32) -> (i32, i32, i32) {
    %c0_i32 = arith.constant 0 : i32
    %c0_i32_0 = arith.constant 0 : i32
    return %arg0, %arg1, %c0_i32 : i32, i32, i32
  }
  func.func @transform_1(%arg0: i32, %arg1: i32) -> (i32, i32) {
    %c0_i32 = arith.constant 0 : i32
    %c0_i32_0 = arith.constant 0 : i32
    %c0_i32_1 = arith.constant 0 : i32
    return %c0_i32, %c0_i32_0 : i32, i32
  }
  func.func @transform_2(%arg0: i32, %arg1: i32) -> (i32, i32) {
    %c0_i32 = arith.constant 0 : i32
    %c0_i32_0 = arith.constant 0 : i32
    %c0_i32_1 = arith.constant 0 : i32
    return %c0_i32, %c0_i32_0 : i32, i32
  }
  func.func @transform_3(%arg0: i32, %arg1: i32) -> (i32, i32, i32) {
    %c0_i32 = arith.constant 0 : i32
    %c0_i32_0 = arith.constant 0 : i32
    return %arg0, %arg1, %c0_i32 : i32, i32, i32
  }
}

module attributes {stable_mosaic.version = 11 : i64} {
  func.func @_conv3x3_fused_kernel(%arg0: i32, %arg1: i32, %arg2: memref<1x128x128xf32, #tpu.memory_space<vmem>>, %arg3: memref<1x1x16x128xf32, #tpu.memory_space<vmem>>, %arg4: memref<1x1x16x128xf32, #tpu.memory_space<vmem>>, %arg5: memref<1x128xf32, #tpu.memory_space<vmem>>, %arg6: memref<1x128xf32, #tpu.memory_space<vmem>>, %arg7: memref<3x384x128xf32, #tpu.memory_space<vmem>>, %arg8: memref<1x128x128xf32, #tpu.memory_space<vmem>>, %arg9: memref<1x1x2x128xf32, #tpu.memory_space<vmem>>) attributes {dimension_semantics = [#tpu.dimension_semantics<parallel>, #tpu.dimension_semantics<parallel>], iteration_bounds = array<i64: 2, 2>, scalar_prefetch = 0 : i64, scratch_operands = 0 : i64, tpu.core_type = #tpu.core_type<tc>, window_params = [{transform_indices = @transform_0, window_bounds = array<i64: 1, 128, 128>}, {transform_indices = @transform_1, window_bounds = array<i64: 1, 1, 16, 128>}, {transform_indices = @transform_2, window_bounds = array<i64: 1, 1, 16, 128>}, {pipeline_mode = #tpu.pipeline_mode<synchronous>, transform_indices = @transform_3, window_bounds = array<i64: 1, 128>}, {pipeline_mode = #tpu.pipeline_mode<synchronous>, transform_indices = @transform_4, window_bounds = array<i64: 1, 128>}, {pipeline_mode = #tpu.pipeline_mode<synchronous>, transform_indices = @transform_5, window_bounds = array<i64: 3, 384, 128>}, {transform_indices = @transform_6, window_bounds = array<i64: 1, 128, 128>}, {transform_indices = @transform_7, window_bounds = array<i64: 1, 1, 2, 128>}]} {
    %c0 = arith.constant 0 : index
    %c0_0 = arith.constant 0 : index
    %0 = vector.load %arg5[%c0, %c0_0] : memref<1x128xf32, #tpu.memory_space<vmem>>, vector<1x128xf32>
    %c0_1 = arith.constant 0 : index
    %c0_2 = arith.constant 0 : index
    %1 = vector.load %arg6[%c0_1, %c0_2] : memref<1x128xf32, #tpu.memory_space<vmem>>, vector<1x128xf32>
    %c0_3 = arith.constant 0 : index
    %c0_4 = arith.constant 0 : index
    %c0_5 = arith.constant 0 : index
    %2 = vector.load %arg2[%c0_3, %c0_4, %c0_5] : memref<1x128x128xf32, #tpu.memory_space<vmem>>, vector<1x128x128xf32>
    %3 = vector.shape_cast %2 : vector<1x128x128xf32> to vector<128x128xf32>
    %4 = vector.broadcast %0 : vector<1x128xf32> to vector<128x128xf32>
    %5 = arith.mulf %3, %4 : vector<128x128xf32>
    %6 = vector.broadcast %1 : vector<1x128xf32> to vector<128x128xf32>
    %7 = arith.addf %5, %6 : vector<128x128xf32>
    %cst = arith.constant 0.000000e+00 : f32
    %8 = vector.broadcast %cst : f32 to vector<128x128xf32>
    %9 = arith.maximumf %7, %8 : vector<128x128xf32>
    %c0_6 = arith.constant 0 : index
    %c0_7 = arith.constant 0 : index
    %c0_8 = arith.constant 0 : index
    %c0_9 = arith.constant 0 : index
    %10 = vector.load %arg3[%c0_6, %c0_7, %c0_8, %c0_9] : memref<1x1x16x128xf32, #tpu.memory_space<vmem>>, vector<1x1x16x128xf32>
    %11 = vector.shape_cast %10 : vector<1x1x16x128xf32> to vector<16x128xf32>
    %12 = vector.broadcast %0 : vector<1x128xf32> to vector<16x128xf32>
    %13 = arith.mulf %11, %12 : vector<16x128xf32>
    %14 = vector.broadcast %1 : vector<1x128xf32> to vector<16x128xf32>
    %15 = arith.addf %13, %14 : vector<16x128xf32>
    %cst_10 = arith.constant 0.000000e+00 : f32
    %16 = vector.broadcast %cst_10 : f32 to vector<16x128xf32>
    %17 = arith.maximumf %15, %16 : vector<16x128xf32>
    %c0_11 = arith.constant 0 : index
    %c0_12 = arith.constant 0 : index
    %c0_13 = arith.constant 0 : index
    %c0_14 = arith.constant 0 : index
    %18 = vector.load %arg4[%c0_11, %c0_12, %c0_13, %c0_14] : memref<1x1x16x128xf32, #tpu.memory_space<vmem>>, vector<1x1x16x128xf32>
    %19 = vector.shape_cast %18 : vector<1x1x16x128xf32> to vector<16x128xf32>
    %20 = vector.broadcast %0 : vector<1x128xf32> to vector<16x128xf32>
    %21 = arith.mulf %19, %20 : vector<16x128xf32>
    %22 = vector.broadcast %1 : vector<1x128xf32> to vector<16x128xf32>
    %23 = arith.addf %21, %22 : vector<16x128xf32>
    %cst_15 = arith.constant 0.000000e+00 : f32
    %24 = vector.broadcast %cst_15 : f32 to vector<16x128xf32>
    %25 = arith.maximumf %23, %24 : vector<16x128xf32>
    %c0_i32 = arith.constant 0 : i32
    %26 = arith.cmpi eq, %arg1, %c0_i32 : i32
    %cst_16 = arith.constant 0.000000e+00 : f32
    %27 = vector.broadcast %cst_16 : f32 to vector<16x128xf32>
    %28 = arith.select %26, %27, %17 : vector<16x128xf32>
    %c1_i32 = arith.constant 1 : i32
    %29 = arith.cmpi eq, %arg1, %c1_i32 : i32
    %cst_17 = arith.constant 0.000000e+00 : f32
    %30 = vector.broadcast %cst_17 : f32 to vector<16x128xf32>
    %31 = arith.select %29, %30, %25 : vector<16x128xf32>
    %32 = tpu.concatenate %28, %9, %31 in 0 : vector<16x128xf32>, vector<128x128xf32>, vector<16x128xf32> -> vector<160x128xf32>
    %33 = tpu.iota {dimensions = array<i32: 0>} : vector<160x1xi32>
    %c16_i32 = arith.constant 16 : i32
    %c0_i32_18 = arith.constant 0 : i32
    %34 = arith.cmpi eq, %c16_i32, %c0_i32_18 : i32
    %c1_i32_19 = arith.constant 1 : i32
    %35 = arith.select %34, %c1_i32_19, %c16_i32 : i32
    %36 = vector.broadcast %35 : i32 to vector<160x1xi32>
    %37 = arith.remsi %33, %36 : vector<160x1xi32>
    %c0_i32_20 = arith.constant 0 : i32
    %38 = vector.broadcast %c0_i32_20 : i32 to vector<160x1xi32>
    %39 = arith.cmpi ne, %37, %38 : vector<160x1xi32>
    %c0_i32_21 = arith.constant 0 : i32
    %40 = vector.broadcast %c0_i32_21 : i32 to vector<160x1xi32>
    %41 = arith.cmpi slt, %37, %40 : vector<160x1xi32>
    %c0_i32_22 = arith.constant 0 : i32
    %42 = arith.cmpi slt, %35, %c0_i32_22 : i32
    %43 = vector.broadcast %42 : i1 to vector<160x1xi1>
    %44 = vector.broadcast %43 : vector<160x1xi1> to vector<160x1xi1>
    %45 = arith.xori %41, %44 : vector<160x1xi1>
    %46 = arith.andi %45, %39 : vector<160x1xi1>
    %47 = vector.broadcast %35 : i32 to vector<160x1xi32>
    %48 = arith.addi %37, %47 : vector<160x1xi32>
    %49 = arith.select %46, %48, %37 : vector<160x1xi1>, vector<160x1xi32>
    %cst_23 = arith.constant 0.000000e+00 : f32
    %50 = vector.broadcast %cst_23 : f32 to vector<1x128xf32>
    %c1_i32_24 = arith.constant 1 : i32
    %51 = vector.broadcast %c1_i32_24 : i32 to vector<160x1xi32>
    %52 = arith.cmpi sge, %49, %51 : vector<160x1xi32>
    %53 = vector.extract_strided_slice %32 {offsets = [0, 0], sizes = [159, 128], strides = [1, 1]} : vector<160x128xf32> to vector<159x128xf32>
    %54 = tpu.concatenate %50, %53 in 0 : vector<1x128xf32>, vector<159x128xf32> -> vector<160x128xf32>
    %cst_25 = arith.constant 0.000000e+00 : f32
    %55 = vector.shape_cast %52 : vector<160x1xi1> to vector<160x1xi1>
    %56 = vector.broadcast %55 : vector<160x1xi1> to vector<160x128xi1>
    %57 = vector.broadcast %cst_25 : f32 to vector<160x128xf32>
    %58 = arith.select %56, %54, %57 : vector<160x128xi1>, vector<160x128xf32>
    %c14_i32 = arith.constant 14 : i32
    %59 = vector.broadcast %c14_i32 : i32 to vector<160x1xi32>
    %60 = arith.cmpi sle, %49, %59 : vector<160x1xi32>
    %61 = vector.extract_strided_slice %32 {offsets = [1, 0], sizes = [159, 128], strides = [1, 1]} : vector<160x128xf32> to vector<159x128xf32>
    %62 = tpu.concatenate %61, %50 in 0 : vector<159x128xf32>, vector<1x128xf32> -> vector<160x128xf32>
    %cst_26 = arith.constant 0.000000e+00 : f32
    %63 = vector.shape_cast %60 : vector<160x1xi1> to vector<160x1xi1>
    %64 = vector.broadcast %63 : vector<160x1xi1> to vector<160x128xi1>
    %65 = vector.broadcast %cst_26 : f32 to vector<160x128xf32>
    %66 = arith.select %64, %62, %65 : vector<160x128xi1>, vector<160x128xf32>
    %67 = tpu.concatenate %58, %32, %66 in 1 : vector<160x128xf32>, vector<160x128xf32>, vector<160x128xf32> -> vector<160x384xf32>
    %68 = vector.extract_strided_slice %67 {offsets = [0, 0], sizes = [128, 384], strides = [1, 1]} : vector<160x384xf32> to vector<128x384xf32>
    %c0_27 = arith.constant 0 : index
    %c0_28 = arith.constant 0 : index
    %c0_29 = arith.constant 0 : index
    %69 = vector.load %arg7[%c0_27, %c0_28, %c0_29] : memref<3x384x128xf32, #tpu.memory_space<vmem>>, vector<1x384x128xf32>
    %70 = vector.shape_cast %69 : vector<1x384x128xf32> to vector<384x128xf32>
    %cst_30 = arith.constant dense<0.000000e+00> : vector<128x128xf32>
    %71 = tpu.matmul %68, %70, %cst_30 {dimension_numbers = #tpu.dot_dimension_numbers<[1], [0], [0], [1], [0, 0, 1, 1], [], []>} : vector<128x384xf32>, vector<384x128xf32>, vector<128x128xf32> -> vector<128x128xf32>
    %72 = vector.extract_strided_slice %67 {offsets = [16, 0], sizes = [128, 384], strides = [1, 1]} : vector<160x384xf32> to vector<128x384xf32>
    %c1 = arith.constant 1 : index
    %c0_31 = arith.constant 0 : index
    %c0_32 = arith.constant 0 : index
    %73 = vector.load %arg7[%c1, %c0_31, %c0_32] : memref<3x384x128xf32, #tpu.memory_space<vmem>>, vector<1x384x128xf32>
    %74 = vector.shape_cast %73 : vector<1x384x128xf32> to vector<384x128xf32>
    %cst_33 = arith.constant dense<0.000000e+00> : vector<128x128xf32>
    %75 = tpu.matmul %72, %74, %cst_33 {dimension_numbers = #tpu.dot_dimension_numbers<[1], [0], [0], [1], [0, 0, 1, 1], [], []>} : vector<128x384xf32>, vector<384x128xf32>, vector<128x128xf32> -> vector<128x128xf32>
    %76 = arith.addf %71, %75 : vector<128x128xf32>
    %77 = vector.extract_strided_slice %67 {offsets = [32, 0], sizes = [128, 384], strides = [1, 1]} : vector<160x384xf32> to vector<128x384xf32>
    %c2 = arith.constant 2 : index
    %c0_34 = arith.constant 0 : index
    %c0_35 = arith.constant 0 : index
    %78 = vector.load %arg7[%c2, %c0_34, %c0_35] : memref<3x384x128xf32, #tpu.memory_space<vmem>>, vector<1x384x128xf32>
    %79 = vector.shape_cast %78 : vector<1x384x128xf32> to vector<384x128xf32>
    %cst_36 = arith.constant dense<0.000000e+00> : vector<128x128xf32>
    %80 = tpu.matmul %77, %79, %cst_36 {dimension_numbers = #tpu.dot_dimension_numbers<[1], [0], [0], [1], [0, 0, 1, 1], [], []>} : vector<128x384xf32>, vector<384x128xf32>, vector<128x128xf32> -> vector<128x128xf32>
    %81 = arith.addf %76, %80 : vector<128x128xf32>
    %cst_37 = arith.constant dense<0.000000e+00> : vector<128xf32>
    %82 = vector.multi_reduction <add>, %81, %cst_37 [0] : vector<128x128xf32> to vector<128xf32>
    %83 = vector.shape_cast %82 : vector<128xf32> to vector<1x128xf32>
    %84 = arith.mulf %81, %81 : vector<128x128xf32>
    %cst_38 = arith.constant dense<0.000000e+00> : vector<128xf32>
    %85 = vector.multi_reduction <add>, %84, %cst_38 [0] : vector<128x128xf32> to vector<128xf32>
    %86 = vector.shape_cast %85 : vector<128xf32> to vector<1x128xf32>
    %87 = tpu.concatenate %83, %86 in 0 : vector<1x128xf32>, vector<1x128xf32> -> vector<2x128xf32>
    %c0_39 = arith.constant 0 : index
    %c0_40 = arith.constant 0 : index
    %c0_41 = arith.constant 0 : index
    %c0_42 = arith.constant 0 : index
    %88 = vector.load %arg9[%c0_39, %c0_40, %c0_41, %c0_42] : memref<1x1x2x128xf32, #tpu.memory_space<vmem>>, vector<1x1x2x128xf32>
    %89 = vector.shape_cast %88 : vector<1x1x2x128xf32> to vector<2x128xf32>
    %90 = vector.shape_cast %87 : vector<2x128xf32> to vector<1x1x2x128xf32>
    tpu.vector_store %arg9[%c0_39, %c0_40, %c0_41, %c0_42], %90 {strides = array<i32>} : memref<1x1x2x128xf32, #tpu.memory_space<vmem>>, vector<1x1x2x128xf32>,
    %c0_43 = arith.constant 0 : index
    %c0_44 = arith.constant 0 : index
    %c0_45 = arith.constant 0 : index
    %91 = vector.load %arg8[%c0_43, %c0_44, %c0_45] : memref<1x128x128xf32, #tpu.memory_space<vmem>>, vector<1x128x128xf32>
    %92 = vector.shape_cast %91 : vector<1x128x128xf32> to vector<128x128xf32>
    %93 = vector.shape_cast %81 : vector<128x128xf32> to vector<1x128x128xf32>
    tpu.vector_store %arg8[%c0_43, %c0_44, %c0_45], %93 {strides = array<i32>} : memref<1x128x128xf32, #tpu.memory_space<vmem>>, vector<1x128x128xf32>,
    return
  }
  func.func @transform_0(%arg0: i32, %arg1: i32) -> (i32, i32, i32) {
    %c0_i32 = arith.constant 0 : i32
    %c0_i32_0 = arith.constant 0 : i32
    return %arg0, %arg1, %c0_i32 : i32, i32, i32
  }
  func.func @transform_1(%arg0: i32, %arg1: i32) -> (i32, i32, i32, i32) {
    %c0_i32 = arith.constant 0 : i32
    %c0_i32_0 = arith.constant 0 : i32
    %c0_i32_1 = arith.constant 0 : i32
    return %arg0, %arg1, %c0_i32, %c0_i32_0 : i32, i32, i32, i32
  }
  func.func @transform_2(%arg0: i32, %arg1: i32) -> (i32, i32, i32, i32) {
    %c0_i32 = arith.constant 0 : i32
    %c0_i32_0 = arith.constant 0 : i32
    %c0_i32_1 = arith.constant 0 : i32
    return %arg0, %arg1, %c0_i32, %c0_i32_0 : i32, i32, i32, i32
  }
  func.func @transform_3(%arg0: i32, %arg1: i32) -> (i32, i32) {
    %c0_i32 = arith.constant 0 : i32
    %c0_i32_0 = arith.constant 0 : i32
    %c0_i32_1 = arith.constant 0 : i32
    return %c0_i32, %c0_i32_0 : i32, i32
  }
  func.func @transform_4(%arg0: i32, %arg1: i32) -> (i32, i32) {
    %c0_i32 = arith.constant 0 : i32
    %c0_i32_0 = arith.constant 0 : i32
    %c0_i32_1 = arith.constant 0 : i32
    return %c0_i32, %c0_i32_0 : i32, i32
  }
  func.func @transform_5(%arg0: i32, %arg1: i32) -> (i32, i32, i32) {
    %c0_i32 = arith.constant 0 : i32
    %c0_i32_0 = arith.constant 0 : i32
    %c0_i32_1 = arith.constant 0 : i32
    %c0_i32_2 = arith.constant 0 : i32
    return %c0_i32, %c0_i32_0, %c0_i32_1 : i32, i32, i32
  }
  func.func @transform_6(%arg0: i32, %arg1: i32) -> (i32, i32, i32) {
    %c0_i32 = arith.constant 0 : i32
    %c0_i32_0 = arith.constant 0 : i32
    return %arg0, %arg1, %c0_i32 : i32, i32, i32
  }
  func.func @transform_7(%arg0: i32, %arg1: i32) -> (i32, i32, i32, i32) {
    %c0_i32 = arith.constant 0 : i32
    %c0_i32_0 = arith.constant 0 : i32
    %c0_i32_1 = arith.constant 0 : i32
    return %arg0, %arg1, %c0_i32, %c0_i32_0 : i32, i32, i32, i32
  }
}

</mosaic_0001>

<llo_original>
// kernel: unet_conv2_forward.5
$region0: #{unet_conv2_forward.5}
  #allocation0 [shape = 'u32[]', space=smem, size = 0x4, offset = 0x4, fixed_abs, tag = 'smem constant byte address 0x4 - core index']
  #allocation1 [shape = 'u32[72,128]{1,0:T(1,128)}', space=vmem, size = 0x9000, scoped, tag = 'internal scratch']
  %s0 = inlined_call_operand.vmem [shape: f32[2,256,128], index: 0, kind: input, shape index: {}]
  %s1 = inlined_call_operand.vmem [shape: f32[1,128], index: 1, kind: input, shape index: {}]
  %s2 = inlined_call_operand.vmem [shape: f32[1,128], index: 2, kind: input, shape index: {}]
  %s3 = inlined_call_operand.vmem [shape: f32[2,256,128], index: 3, kind: output, shape index: {}]
  %s4 = sld [smem:[#allocation0]]
  $region45: #{unet_conv2_forward.5} parent=0
    _
  %s6 = ssub.s32 1, %s4
  %s7 = scalar_select 0, %s6, %s4
  loop: start=0, step=1, limit=6
  $region2: #{unet_conv2_forward.5} parent=0 // loop_pre_header
    _
  $region3: #{unet_conv2_forward.5} parent=0 // loop_header
    %s9 = sphi 0, %s13
    %p10 = scmp.ge.s32.totalorder %s9, 6
    %s16 = sphi 0, %s28
    %s17 = sphi 0, %s24
    %s18 = sphi 0, %s16
    %s19 = sphi 0, %s17
    %s20 = sphi 0, %s18
    %s21 = sphi 0, %s19
    %s33 = sphi 0, %s35
    %s36 = sphi 0, %s33
    %s37 = sphi 0, %s36
    %s53 = sphi 0, %s37
    %s57 = sphi 0, %s57
    %s59 = sphi 0, %s57
    %s60 = sphi 0, %s59
    %s74 = sphi 0, %s60
    %s78 = sphi 0, %s78
    %s80 = sphi 0, %s78
    %s81 = sphi 0, %s80
    %s95 = sphi 0, %s81
    %s103 = sphi 0, %s105
    %s106 = sphi 0, %s103
    %s107 = sphi 0, %s106
    %s123 = sphi 0, %s107
  $region4: #{unet_conv2_forward.5} parent=0 // loop_header_branch
    %12 = sbr.rel (%p10) target = $region8
  $region5: #{unet_conv2_forward.5} parent=0 // loop_body
    %s14 = ssub.s32 %s9, 1
    %s15 = ssub.s32 %s9, 2
    %s22 = sadd.s32 1, %s17
    %p23 = scmp.ge.s32.totalorder %s22, 2
    %s24 = scalar_select %p23, 0, %s22
    %s25 = sadd.s32 1, %s16
    %s26 = scalar_select %p23, %s25, %s16
    %p27 = scmp.ge.s32.totalorder %s26, 2
    %s28 = scalar_select %p27, 0, %s26
    %s29 = ssub.s32 %s16, %s28
    %s30 = ssub.s32 %s17, %s24
    %s31 = sor.u32 %s29, %s30
    %p32 = scmp.eq.s32.totalorder %s31, 0
    %s34 = sadd.s32 %s33, 1
    %s35 = scalar_select %p32, %s33, %s34
    %p38 = pneg %p32
    %p39 = scmp.eq.s32.totalorder %s9, 3
    %p40 = por %p38, %p39
    %p41 = scmp.ne.s32.totalorder %s33, %s36
    %p42 = scmp.eq.s32.totalorder %s9, 0
    %p43 = por %p41, %p42
    %p44 = scmp.ne.s32.totalorder %s33, %s36
    %p45 = scmp.eq.s32.totalorder %s14, 3
    %p46 = por %p44, %p45
    %p47 = scmp.ne.s32.totalorder %s36, %s37
    %p48 = scmp.eq.s32.totalorder %s14, 0
    %p49 = por %p47, %p48
    %p50 = scmp.ne.s32.totalorder %s36, %s37
    %p51 = scmp.eq.s32.totalorder %s15, 3
    %p52 = por %p50, %p51
    %p54 = scmp.ne.s32.totalorder %s37, %s53
    %p55 = scmp.eq.s32.totalorder %s15, 0
    %p56 = por %p54, %p55
    %s58 = sadd.s32 %s57, 1
    %p61 = scmp.eq.s32.totalorder %s9, 3
    %p62 = scmp.ne.s32.totalorder %s57, %s59
    %p63 = scmp.eq.s32.totalorder %s9, 0
    %p64 = por %p62, %p63
    %p65 = scmp.ne.s32.totalorder %s57, %s59
    %p66 = scmp.eq.s32.totalorder %s14, 3
    %p67 = por %p65, %p66
    %p68 = scmp.ne.s32.totalorder %s59, %s60
    %p69 = scmp.eq.s32.totalorder %s14, 0
    %p70 = por %p68, %p69
    %p71 = scmp.ne.s32.totalorder %s59, %s60
    %p72 = scmp.eq.s32.totalorder %s15, 3
    %p73 = por %p71, %p72
    %p75 = scmp.ne.s32.totalorder %s60, %s74
    %p76 = scmp.eq.s32.totalorder %s15, 0
    %p77 = por %p75, %p76
    %s79 = sadd.s32 %s78, 1
    %p82 = scmp.eq.s32.totalorder %s9, 3
    %p83 = scmp.ne.s32.totalorder %s78, %s80
    %p84 = scmp.eq.s32.totalorder %s9, 0
    %p85 = por %p83, %p84
    %p86 = scmp.ne.s32.totalorder %s78, %s80
    %p87 = scmp.eq.s32.totalorder %s14, 3
    %p88 = por %p86, %p87
    %p89 = scmp.ne.s32.totalorder %s80, %s81
    %p90 = scmp.eq.s32.totalorder %s14, 0
    %p91 = por %p89, %p90
    %p92 = scmp.ne.s32.totalorder %s80, %s81
    %p93 = scmp.eq.s32.totalorder %s15, 3
    %p94 = por %p92, %p93
    %p96 = scmp.ne.s32.totalorder %s81, %s95
    %p97 = scmp.eq.s32.totalorder %s15, 0
    %p98 = por %p96, %p97
    %s99 = ssub.s32 %s16, %s28
    %s100 = ssub.s32 %s17, %s24
    %s101 = sor.u32 %s99, %s100
    %p102 = scmp.eq.s32.totalorder %s101, 0
    %s104 = sadd.s32 %s103, 1
    %s105 = scalar_select %p102, %s103, %s104
    %p108 = pneg %p102
    %p109 = scmp.eq.s32.totalorder %s9, 3
    %p110 = por %p108, %p109
    %p111 = scmp.ne.s32.totalorder %s103, %s106
    %p112 = scmp.eq.s32.totalorder %s9, 0
    %p113 = por %p111, %p112
    %p114 = scmp.ne.s32.totalorder %s103, %s106
    %p115 = scmp.eq.s32.totalorder %s14, 3
    %p116 = por %p114, %p115
    %p117 = scmp.ne.s32.totalorder %s106, %s107
    %p118 = scmp.eq.s32.totalorder %s14, 0
    %p119 = por %p117, %p118
    %p120 = scmp.ne.s32.totalorder %s106, %s107
    %p121 = scmp.eq.s32.totalorder %s15, 3
    %p122 = por %p120, %p121
    %p124 = scmp.ne.s32.totalorder %s107, %s123
    %p125 = scmp.eq.s32.totalorder %s15, 0
    %p126 = por %p124, %p125
    %p127 = scmp.le.s32.totalorder 1, %s9
    %p128 = scmp.lt.s32.totalorder %s9, 5
    %p129 = pnand %p127, %p128
    %p130 = pneg %p129
    // Predicated region
    $region9: #{unet_conv2_forward.5} parent=5 // pred_check
      _
    $region10: #{unet_conv2_forward.5} parent=5 // pred_check_branch
      %132 = sbr.rel (%p129) target = $region12
    $region11: #{unet_conv2_forward.5} parent=5 // pred_region
      %s133 = ssub.s32 %s9, 1
      // Predicated region
      $region13: #{unet_conv2_forward.5} parent=11 // pred_check
        %p134 = pneg %p70
      $region14: #{unet_conv2_forward.5} parent=11 // pred_check_branch
        %136 = sbr.rel (%p134) target = $region16
      $region15: #{unet_conv2_forward.5} parent=11 // pred_region
        _
      $region16: #{unet_conv2_forward.5} parent=11 // pred_fallthru
        _
      // Predicated region
      $region17: #{unet_conv2_forward.5} parent=11 // pred_check
        %p137 = pneg %p91
      $region18: #{unet_conv2_forward.5} parent=11 // pred_check_branch
        %139 = sbr.rel (%p137) target = $region20
      $region19: #{unet_conv2_forward.5} parent=11 // pred_region
        _
      $region20: #{unet_conv2_forward.5} parent=11 // pred_fallthru
        _
    $region12: #{unet_conv2_forward.5} parent=5 // pred_fallthru
      _
    %p140 = scmp.lt.s32.totalorder %s9, 4
    // Predicated region
    $region21: #{unet_conv2_forward.5} parent=5 // pred_check
      %p141 = pneg %p140
    $region22: #{unet_conv2_forward.5} parent=5 // pred_check_branch
      %143 = sbr.rel (%p141) target = $region24
    $region23: #{unet_conv2_forward.5} parent=5 // pred_region
      // Predicated region
      $region25: #{unet_conv2_forward.5} parent=23 // pred_check
        %p144 = pneg %p43
      $region26: #{unet_conv2_forward.5} parent=23 // pred_check_branch
        %146 = sbr.rel (%p144) target = $region28
      $region27: #{unet_conv2_forward.5} parent=23 // pred_region
        %s147 = smul.u32 16, %s17
        %p148 = scmp.lt.s32.totalorder %s16, 1
        %s149 = scalar_select %p148, %s16, 1
        %p150 = scmp.lt.s32.totalorder %s147, 31
        %s151 = scalar_select %p150, %s147, 31
        %s152 = smul.addr %s149, 32
        %s153 = sadd.s32 %s151, %s152
        %s154 = smul.addr %s153, 8
        %s155 = scalar_lea.vmem %s0, %s154
        %s156 = smul.u32 16, %s17
      $region28: #{unet_conv2_forward.5} parent=23 // pred_fallthru
        _
    $region24: #{unet_conv2_forward.5} parent=5 // pred_fallthru
      _
    %p157 = scmp.le.s32.totalorder 1, %s9
    %p158 = scmp.lt.s32.totalorder %s9, 5
    %p159 = pnand %p157, %p158
    %p160 = pneg %p159
    // Predicated region
    $region29: #{unet_conv2_forward.5} parent=5 // pred_check
      _
    $region30: #{unet_conv2_forward.5} parent=5 // pred_check_branch
      %162 = sbr.rel (%p159) target = $region32
    $region31: #{unet_conv2_forward.5} parent=5 // pred_region
      %s163 = ssub.s32 %s9, 1
      %s164 = smul.u32 16, %s19
      %p165 = scmp.lt.s32.totalorder %s18, 1
      %s166 = scalar_select %p165, %s18, 1
      %p167 = scmp.lt.s32.totalorder %s164, 31
      %s168 = scalar_select %p167, %s164, 31
      %s169 = smul.addr %s166, 32
      %s170 = sadd.s32 %s168, %s169
      %s171 = smul.addr %s170, 8
      %s172 = scalar_lea.vmem %s0, %s171
      %p173 = pneg %p49
      %p174 = pneg %p46
      %p175 = pneg %p70
      %p176 = pneg %p67
      %p177 = pneg %p91
      %p178 = pneg %p88
      %p179 = pneg %p119
      %p180 = pneg %p116
      %s181 = smul.u32 16, %s19
      %p182 = scmp.lt.s32.totalorder %s18, 1
      %s183 = scalar_select %p182, %s18, 1
      %p184 = scmp.lt.s32.totalorder %s181, 31
      %s185 = scalar_select %p184, %s181, 31
      %s186 = smul.addr %s183, 32
      %s187 = sadd.s32 %s185, %s186
      %s188 = smul.addr %s187, 8
      %s189 = scalar_lea.vmem %s3, %s188
      %s190 = smul.u32 16, %s19
      %p191 = scmp.lt.s32.totalorder %s18, 1
      %s192 = scalar_select %p191, %s18, 1
      %p193 = scmp.lt.s32.totalorder %s190, 31
      %s194 = scalar_select %p193, %s190, 31
      %s195 = smul.addr %s192, 32
      %s196 = sadd.s32 %s194, %s195
      %s197 = smul.addr %s196, 8
      %s198 = scalar_lea.vmem %s0, %s197
      %s199 = smul.u32 16, %s19
      %s200 = smul.u32 16, %s19
      %p201 = scmp.lt.s32.totalorder %s18, 1
      %s202 = scalar_select %p201, %s18, 1
      %p203 = scmp.lt.s32.totalorder %s200, 31
      %s204 = scalar_select %p203, %s200, 31
      %s205 = smul.addr %s202, 32
      %s206 = sadd.s32 %s204, %s205
      %s207 = smul.addr %s206, 8
      %s208 = scalar_lea.vmem %s3, %s207
      %s209 = smul.u32 16, %s19
      %v210 = vld [vmem:[%s198] sm:$0xff]
      %v211 = vld [vmem:[%s198 + $0x8] sm:$0xff]
      %v212 = vld [vmem:[%s198 + $0x10] sm:$0xff]
      %v213 = vld [vmem:[%s198 + $0x18] sm:$0xff]
      %v214 = vld [vmem:[%s198 + $0x20] sm:$0xff]
      %v215 = vld [vmem:[%s198 + $0x28] sm:$0xff]
      %v216 = vld [vmem:[%s198 + $0x30] sm:$0xff]
      %v217 = vld [vmem:[%s198 + $0x38] sm:$0xff]
      %v218 = vld [vmem:[%s198 + $0x40] sm:$0xff]
      %v219 = vld [vmem:[%s198 + $0x48] sm:$0xff]
      %v220 = vld [vmem:[%s198 + $0x50] sm:$0xff]
      %v221 = vld [vmem:[%s198 + $0x58] sm:$0xff]
      %v222 = vld [vmem:[%s198 + $0x60] sm:$0xff]
      %v223 = vld [vmem:[%s198 + $0x68] sm:$0xff]
      %v224 = vld [vmem:[%s198 + $0x70] sm:$0xff]
      %v225 = vld [vmem:[%s198 + $0x78] sm:$0xff]
      %v226 = vld [vmem:[%s1] sm:$0x1]
      %v228 = vperm.slane %v226, 0
      %v230 = vmul.f32 %v210, %v228
      %v231 = vmul.f32 %v211, %v228
      %v232 = vmul.f32 %v212, %v228
      %v233 = vmul.f32 %v213, %v228
      %v234 = vmul.f32 %v214, %v228
      %v235 = vmul.f32 %v215, %v228
      %v236 = vmul.f32 %v216, %v228
      %v237 = vmul.f32 %v217, %v228
      %v238 = vmul.f32 %v218, %v228
      %v239 = vmul.f32 %v219, %v228
      %v240 = vmul.f32 %v220, %v228
      %v241 = vmul.f32 %v221, %v228
      %v242 = vmul.f32 %v222, %v228
      %v243 = vmul.f32 %v223, %v228
      %v244 = vmul.f32 %v224, %v228
      %v245 = vmul.f32 %v225, %v228
      %v246 = vld [vmem:[%s2] sm:$0x1]
      %v248 = vperm.slane %v246, 0
      %v250 = vadd.f32 %v230, %v248
      %v251 = vadd.f32 %v231, %v248
      %v252 = vadd.f32 %v232, %v248
      %v253 = vadd.f32 %v233, %v248
      %v254 = vadd.f32 %v234, %v248
      %v255 = vadd.f32 %v235, %v248
      %v256 = vadd.f32 %v236, %v248
      %v257 = vadd.f32 %v237, %v248
      %v258 = vadd.f32 %v238, %v248
      %v259 = vadd.f32 %v239, %v248
      %v260 = vadd.f32 %v240, %v248
      %v261 = vadd.f32 %v241, %v248
      %v262 = vadd.f32 %v242, %v248
      %v263 = vadd.f32 %v243, %v248
      %v264 = vadd.f32 %v244, %v248
      %v265 = vadd.f32 %v245, %v248
      %v266 = vmax.f32 %v250, 0.0
      %v267 = vmax.f32 %v251, 0.0
      %v268 = vmax.f32 %v252, 0.0
      %v269 = vmax.f32 %v253, 0.0
      %v270 = vmax.f32 %v254, 0.0
      %v271 = vmax.f32 %v255, 0.0
      %v272 = vmax.f32 %v256, 0.0
      %v273 = vmax.f32 %v257, 0.0
      %v274 = vmax.f32 %v258, 0.0
      %v275 = vmax.f32 %v259, 0.0
      %v276 = vmax.f32 %v260, 0.0
      %v277 = vmax.f32 %v261, 0.0
      %v278 = vmax.f32 %v262, 0.0
      %v279 = vmax.f32 %v263, 0.0
      %v280 = vmax.f32 %v264, 0.0
      %v281 = vmax.f32 %v265, 0.0
      %282 = vst [vmem:[%s208] sm:$0xff] %v266
      %283 = vst [vmem:[%s208 + $0x8] sm:$0xff] %v267
      %284 = vst [vmem:[%s208 + $0x10] sm:$0xff] %v268
      %285 = vst [vmem:[%s208 + $0x18] sm:$0xff] %v269
      %286 = vst [vmem:[%s208 + $0x20] sm:$0xff] %v270
      %287 = vst [vmem:[%s208 + $0x28] sm:$0xff] %v271
      %288 = vst [vmem:[%s208 + $0x30] sm:$0xff] %v272
      %289 = vst [vmem:[%s208 + $0x38] sm:$0xff] %v273
      %290 = vst [vmem:[%s208 + $0x40] sm:$0xff] %v274
      %291 = vst [vmem:[%s208 + $0x48] sm:$0xff] %v275
      %292 = vst [vmem:[%s208 + $0x50] sm:$0xff] %v276
      %293 = vst [vmem:[%s208 + $0x58] sm:$0xff] %v277
      %294 = vst [vmem:[%s208 + $0x60] sm:$0xff] %v278
      %295 = vst [vmem:[%s208 + $0x68] sm:$0xff] %v279
      %296 = vst [vmem:[%s208 + $0x70] sm:$0xff] %v280
      %297 = vst [vmem:[%s208 + $0x78] sm:$0xff] %v281
      %s298 = smul.u32 16, %s19
      %p299 = scmp.lt.s32.totalorder %s18, 1
      %s300 = scalar_select %p299, %s18, 1
      %p301 = scmp.lt.s32.totalorder %s298, 31
      %s302 = scalar_select %p301, %s298, 31
      %s303 = smul.addr %s300, 32
      %s304 = sadd.s32 %s302, %s303
      %s305 = smul.addr %s304, 8
      %s306 = scalar_lea.vmem %s3, %s305
      // Predicated region
      $region33: #{unet_conv2_forward.5} parent=31 // pred_check
        %p307 = pneg %p116
      $region34: #{unet_conv2_forward.5} parent=31 // pred_check_branch
        %309 = sbr.rel (%p307) target = $region36
      $region35: #{unet_conv2_forward.5} parent=31 // pred_region
        %s310 = smul.u32 16, %s19
      $region36: #{unet_conv2_forward.5} parent=31 // pred_fallthru
        _
    $region32: #{unet_conv2_forward.5} parent=5 // pred_fallthru
      _
    %p311 = scmp.le.s32.totalorder 2, %s9
    // Predicated region
    $region37: #{unet_conv2_forward.5} parent=5 // pred_check
      %p312 = pneg %p311
    $region38: #{unet_conv2_forward.5} parent=5 // pred_check_branch
      %314 = sbr.rel (%p312) target = $region40
    $region39: #{unet_conv2_forward.5} parent=5 // pred_region
      %s315 = ssub.s32 %s9, 2
      // Predicated region
      $region41: #{unet_conv2_forward.5} parent=39 // pred_check
        %p316 = pneg %p122
      $region42: #{unet_conv2_forward.5} parent=39 // pred_check_branch
        %318 = sbr.rel (%p316) target = $region44
      $region43: #{unet_conv2_forward.5} parent=39 // pred_region
        %s319 = smul.u32 16, %s21
        %p320 = scmp.lt.s32.totalorder %s20, 1
        %s321 = scalar_select %p320, %s20, 1
        %p322 = scmp.lt.s32.totalorder %s319, 31
        %s323 = scalar_select %p322, %s319, 31
        %s324 = smul.addr %s321, 32
        %s325 = sadd.s32 %s323, %s324
        %s326 = smul.addr %s325, 8
        %s327 = scalar_lea.vmem %s3, %s326
      $region44: #{unet_conv2_forward.5} parent=39 // pred_fallthru
        _
    $region40: #{unet_conv2_forward.5} parent=5 // pred_fallthru
      _
  $region6: #{unet_conv2_forward.5} parent=0 // loop_footer
    %s13 = sadd.s32 1, %s9
  $region7: #{unet_conv2_forward.5} parent=0 // loop_footer_branch
    %8 = sbr.rel target = $region3
  $region8: #{unet_conv2_forward.5} parent=0 // loop_exit
    _

// kernel: unet_conv2_forward.3
$region0: #{unet_conv2_forward.3}
  #allocation0 [shape = 'u32[]', space=smem, size = 0x4, offset = 0x4, fixed_abs, tag = 'smem constant byte address 0x4 - core index']
  #allocation1 [shape = 'u32[72,128]{1,0:T(1,128)}', space=vmem, size = 0x9000, scoped, tag = 'internal scratch']
  %s0 = inlined_call_operand.vmem [shape: f32[2,256,4], index: 0, kind: input, shape index: {}]
  %s1 = inlined_call_operand.vmem [shape: f32[2,2,16,4], index: 1, kind: input, shape index: {}]
  %s2 = inlined_call_operand.vmem [shape: f32[2,2,16,4], index: 2, kind: input, shape index: {}]
  %s3 = inlined_call_operand.vmem [shape: f32[3,12,128], index: 3, kind: input, shape index: {}]
  %s4 = inlined_call_operand.vmem [shape: f32[2,256,128], index: 4, kind: output, shape index: {0}]
  %s5 = inlined_call_operand.vmem [shape: f32[2,2,2,128], index: 5, kind: output, shape index: {1}]
  %6 = xla_tuple %s4, %s5
  %s7 = sld [smem:[#allocation0]]
  $region57: #{unet_conv2_forward.3} parent=0
    _
  %s9 = ssub.s32 1, %s7
  %s10 = scalar_select 0, %s9, %s7
  loop: start=0, step=1, limit=6
  $region2: #{unet_conv2_forward.3} parent=0 // loop_pre_header
    _
  $region3: #{unet_conv2_forward.3} parent=0 // loop_header
    %s12 = sphi 0, %s16
    %p13 = scmp.ge.s32.totalorder %s12, 6
    %s19 = sphi 0, %s31
    %s20 = sphi 0, %s27
    %s21 = sphi 0, %s19
    %s22 = sphi 0, %s20
    %s23 = sphi 0, %s21
    %s24 = sphi 0, %s22
    %s36 = sphi 0, %s38
    %s39 = sphi 0, %s36
    %s40 = sphi 0, %s39
    %s56 = sphi 0, %s40
    %s64 = sphi 0, %s66
    %s67 = sphi 0, %s64
    %s68 = sphi 0, %s67
    %s84 = sphi 0, %s68
    %s92 = sphi 0, %s94
    %s95 = sphi 0, %s92
    %s96 = sphi 0, %s95
    %s112 = sphi 0, %s96
    %s116 = sphi 0, %s116
    %s118 = sphi 0, %s116
    %s119 = sphi 0, %s118
    %s133 = sphi 0, %s119
    %s141 = sphi 0, %s143
    %s144 = sphi 0, %s141
    %s145 = sphi 0, %s144
    %s161 = sphi 0, %s145
    %s169 = sphi 0, %s171
    %s172 = sphi 0, %s169
    %s173 = sphi 0, %s172
    %s189 = sphi 0, %s173
  $region4: #{unet_conv2_forward.3} parent=0 // loop_header_branch
    %15 = sbr.rel (%p13) target = $region8
  $region5: #{unet_conv2_forward.3} parent=0 // loop_body
    %s17 = ssub.s32 %s12, 1
    %s18 = ssub.s32 %s12, 2
    %s25 = sadd.s32 1, %s20
    %p26 = scmp.ge.s32.totalorder %s25, 2
    %s27 = scalar_select %p26, 0, %s25
    %s28 = sadd.s32 1, %s19
    %s29 = scalar_select %p26, %s28, %s19
    %p30 = scmp.ge.s32.totalorder %s29, 2
    %s31 = scalar_select %p30, 0, %s29
    %s32 = ssub.s32 %s19, %s31
    %s33 = ssub.s32 %s20, %s27
    %s34 = sor.u32 %s32, %s33
    %p35 = scmp.eq.s32.totalorder %s34, 0
    %s37 = sadd.s32 %s36, 1
    %s38 = scalar_select %p35, %s36, %s37
    %p41 = pneg %p35
    %p42 = scmp.eq.s32.totalorder %s12, 3
    %p43 = por %p41, %p42
    %p44 = scmp.ne.s32.totalorder %s36, %s39
    %p45 = scmp.eq.s32.totalorder %s12, 0
    %p46 = por %p44, %p45
    %p47 = scmp.ne.s32.totalorder %s36, %s39
    %p48 = scmp.eq.s32.totalorder %s17, 3
    %p49 = por %p47, %p48
    %p50 = scmp.ne.s32.totalorder %s39, %s40
    %p51 = scmp.eq.s32.totalorder %s17, 0
    %p52 = por %p50, %p51
    %p53 = scmp.ne.s32.totalorder %s39, %s40
    %p54 = scmp.eq.s32.totalorder %s18, 3
    %p55 = por %p53, %p54
    %p57 = scmp.ne.s32.totalorder %s40, %s56
    %p58 = scmp.eq.s32.totalorder %s18, 0
    %p59 = por %p57, %p58
    %s60 = ssub.s32 %s19, %s31
    %s61 = ssub.s32 %s20, %s27
    %s62 = sor.u32 %s60, %s61
    %p63 = scmp.eq.s32.totalorder %s62, 0
    %s65 = sadd.s32 %s64, 1
    %s66 = scalar_select %p63, %s64, %s65
    %p69 = pneg %p63
    %p70 = scmp.eq.s32.totalorder %s12, 3
    %p71 = por %p69, %p70
    %p72 = scmp.ne.s32.totalorder %s64, %s67
    %p73 = scmp.eq.s32.totalorder %s12, 0
    %p74 = por %p72, %p73
    %p75 = scmp.ne.s32.totalorder %s64, %s67
    %p76 = scmp.eq.s32.totalorder %s17, 3
    %p77 = por %p75, %p76
    %p78 = scmp.ne.s32.totalorder %s67, %s68
    %p79 = scmp.eq.s32.totalorder %s17, 0
    %p80 = por %p78, %p79
    %p81 = scmp.ne.s32.totalorder %s67, %s68
    %p82 = scmp.eq.s32.totalorder %s18, 3
    %p83 = por %p81, %p82
    %p85 = scmp.ne.s32.totalorder %s68, %s84
    %p86 = scmp.eq.s32.totalorder %s18, 0
    %p87 = por %p85, %p86
    %s88 = ssub.s32 %s19, %s31
    %s89 = ssub.s32 %s20, %s27
    %s90 = sor.u32 %s88, %s89
    %p91 = scmp.eq.s32.totalorder %s90, 0
    %s93 = sadd.s32 %s92, 1
    %s94 = scalar_select %p91, %s92, %s93
    %p97 = pneg %p91
    %p98 = scmp.eq.s32.totalorder %s12, 3
    %p99 = por %p97, %p98
    %p100 = scmp.ne.s32.totalorder %s92, %s95
    %p101 = scmp.eq.s32.totalorder %s12, 0
    %p102 = por %p100, %p101
    %p103 = scmp.ne.s32.totalorder %s92, %s95
    %p104 = scmp.eq.s32.totalorder %s17, 3
    %p105 = por %p103, %p104
    %p106 = scmp.ne.s32.totalorder %s95, %s96
    %p107 = scmp.eq.s32.totalorder %s17, 0
    %p108 = por %p106, %p107
    %p109 = scmp.ne.s32.totalorder %s95, %s96
    %p110 = scmp.eq.s32.totalorder %s18, 3
    %p111 = por %p109, %p110
    %p113 = scmp.ne.s32.totalorder %s96, %s112
    %p114 = scmp.eq.s32.totalorder %s18, 0
    %p115 = por %p113, %p114
    %s117 = sadd.s32 %s116, 1
    %p120 = scmp.eq.s32.totalorder %s12, 3
    %p121 = scmp.ne.s32.totalorder %s116, %s118
    %p122 = scmp.eq.s32.totalorder %s12, 0
    %p123 = por %p121, %p122
    %p124 = scmp.ne.s32.totalorder %s116, %s118
    %p125 = scmp.eq.s32.totalorder %s17, 3
    %p126 = por %p124, %p125
    %p127 = scmp.ne.s32.totalorder %s118, %s119
    %p128 = scmp.eq.s32.totalorder %s17, 0
    %p129 = por %p127, %p128
    %p130 = scmp.ne.s32.totalorder %s118, %s119
    %p131 = scmp.eq.s32.totalorder %s18, 3
    %p132 = por %p130, %p131
    %p134 = scmp.ne.s32.totalorder %s119, %s133
    %p135 = scmp.eq.s32.totalorder %s18, 0
    %p136 = por %p134, %p135
    %s137 = ssub.s32 %s19, %s31
    %s138 = ssub.s32 %s20, %s27
    %s139 = sor.u32 %s137, %s138
    %p140 = scmp.eq.s32.totalorder %s139, 0
    %s142 = sadd.s32 %s141, 1
    %s143 = scalar_select %p140, %s141, %s142
    %p146 = pneg %p140
    %p147 = scmp.eq.s32.totalorder %s12, 3
    %p148 = por %p146, %p147
    %p149 = scmp.ne.s32.totalorder %s141, %s144
    %p150 = scmp.eq.s32.totalorder %s12, 0
    %p151 = por %p149, %p150
    %p152 = scmp.ne.s32.totalorder %s141, %s144
    %p153 = scmp.eq.s32.totalorder %s17, 3
    %p154 = por %p152, %p153
    %p155 = scmp.ne.s32.totalorder %s144, %s145
    %p156 = scmp.eq.s32.totalorder %s17, 0
    %p157 = por %p155, %p156
    %p158 = scmp.ne.s32.totalorder %s144, %s145
    %p159 = scmp.eq.s32.totalorder %s18, 3
    %p160 = por %p158, %p159
    %p162 = scmp.ne.s32.totalorder %s145, %s161
    %p163 = scmp.eq.s32.totalorder %s18, 0
    %p164 = por %p162, %p163
    %s165 = ssub.s32 %s19, %s31
    %s166 = ssub.s32 %s20, %s27
    %s167 = sor.u32 %s165, %s166
    %p168 = scmp.eq.s32.totalorder %s167, 0
    %s170 = sadd.s32 %s169, 1
    %s171 = scalar_select %p168, %s169, %s170
    %p174 = pneg %p168
    %p175 = scmp.eq.s32.totalorder %s12, 3
    %p176 = por %p174, %p175
    %p177 = scmp.ne.s32.totalorder %s169, %s172
    %p178 = scmp.eq.s32.totalorder %s12, 0
    %p179 = por %p177, %p178
    %p180 = scmp.ne.s32.totalorder %s169, %s172
    %p181 = scmp.eq.s32.totalorder %s17, 3
    %p182 = por %p180, %p181
    %p183 = scmp.ne.s32.totalorder %s172, %s173
    %p184 = scmp.eq.s32.totalorder %s17, 0
    %p185 = por %p183, %p184
    %p186 = scmp.ne.s32.totalorder %s172, %s173
    %p187 = scmp.eq.s32.totalorder %s18, 3
    %p188 = por %p186, %p187
    %p190 = scmp.ne.s32.totalorder %s173, %s189
    %p191 = scmp.eq.s32.totalorder %s18, 0
    %p192 = por %p190, %p191
    %p193 = scmp.le.s32.totalorder 1, %s12
    %p194 = scmp.lt.s32.totalorder %s12, 5
    %p195 = pnand %p193, %p194
    %p196 = pneg %p195
    // Predicated region
    $region9: #{unet_conv2_forward.3} parent=5 // pred_check
      _
    $region10: #{unet_conv2_forward.3} parent=5 // pred_check_branch
      %198 = sbr.rel (%p195) target = $region12
    $region11: #{unet_conv2_forward.3} parent=5 // pred_region
      %s199 = ssub.s32 %s12, 1
      // Predicated region
      $region13: #{unet_conv2_forward.3} parent=11 // pred_check
        %p200 = pneg %p129
      $region14: #{unet_conv2_forward.3} parent=11 // pred_check_branch
        %202 = sbr.rel (%p200) target = $region16
      $region15: #{unet_conv2_forward.3} parent=11 // pred_region
        _
      $region16: #{unet_conv2_forward.3} parent=11 // pred_fallthru
        _
    $region12: #{unet_conv2_forward.3} parent=5 // pred_fallthru
      _
    %p203 = scmp.lt.s32.totalorder %s12, 4
    // Predicated region
    $region17: #{unet_conv2_forward.3} parent=5 // pred_check
      %p204 = pneg %p203
    $region18: #{unet_conv2_forward.3} parent=5 // pred_check_branch
      %206 = sbr.rel (%p204) target = $region20
    $region19: #{unet_conv2_forward.3} parent=5 // pred_region
      // Predicated region
      $region21: #{unet_conv2_forward.3} parent=19 // pred_check
        %p207 = pneg %p46
      $region22: #{unet_conv2_forward.3} parent=19 // pred_check_branch
        %209 = sbr.rel (%p207) target = $region24
      $region23: #{unet_conv2_forward.3} parent=19 // pred_region
        %s210 = smul.u32 16, %s20
        %p211 = scmp.lt.s32.totalorder %s19, 1
        %s212 = scalar_select %p211, %s19, 1
        %p213 = scmp.lt.s32.totalorder %s210, 31
        %s214 = scalar_select %p213, %s210, 31
        %s215 = smul.addr %s212, 32
        %s216 = sadd.s32 %s214, %s215
        %s217 = smul.addr %s216, 8
        %s218 = scalar_lea.vmem %s0, %s217
        %s219 = smul.u32 16, %s20
      $region24: #{unet_conv2_forward.3} parent=19 // pred_fallthru
        _
      // Predicated region
      $region25: #{unet_conv2_forward.3} parent=19 // pred_check
        %p220 = pneg %p74
      $region26: #{unet_conv2_forward.3} parent=19 // pred_check_branch
        %222 = sbr.rel (%p220) target = $region28
      $region27: #{unet_conv2_forward.3} parent=19 // pred_region
        %p223 = scmp.lt.s32.totalorder %s19, 1
        %s224 = scalar_select %p223, %s19, 1
        %p225 = scmp.lt.s32.totalorder %s20, 1
        %s226 = scalar_select %p225, %s20, 1
        %s227 = smul.addr %s226, 2
        %s228 = smul.addr %s224, 4
        %s229 = sadd.s32 %s227, %s228
        %s230 = smul.addr %s229, 8
        %s231 = scalar_lea.vmem %s1, %s230
      $region28: #{unet_conv2_forward.3} parent=19 // pred_fallthru
        _
      // Predicated region
      $region29: #{unet_conv2_forward.3} parent=19 // pred_check
        %p232 = pneg %p102
      $region30: #{unet_conv2_forward.3} parent=19 // pred_check_branch
        %234 = sbr.rel (%p232) target = $region32
      $region31: #{unet_conv2_forward.3} parent=19 // pred_region
        %p235 = scmp.lt.s32.totalorder %s19, 1
        %s236 = scalar_select %p235, %s19, 1
        %p237 = scmp.lt.s32.totalorder %s20, 1
        %s238 = scalar_select %p237, %s20, 1
        %s239 = smul.addr %s238, 2
        %s240 = smul.addr %s236, 4
        %s241 = sadd.s32 %s239, %s240
        %s242 = smul.addr %s241, 8
        %s243 = scalar_lea.vmem %s2, %s242
      $region32: #{unet_conv2_forward.3} parent=19 // pred_fallthru
        _
    $region20: #{unet_conv2_forward.3} parent=5 // pred_fallthru
      _
    %p244 = scmp.le.s32.totalorder 1, %s12
    %p245 = scmp.lt.s32.totalorder %s12, 5
    %p246 = pnand %p244, %p245
    %p247 = pneg %p246
    // Predicated region
    $region33: #{unet_conv2_forward.3} parent=5 // pred_check
      _
    $region34: #{unet_conv2_forward.3} parent=5 // pred_check_branch
      %249 = sbr.rel (%p246) target = $region36
    $region35: #{unet_conv2_forward.3} parent=5 // pred_region
      %s250 = ssub.s32 %s12, 1
      %s251 = smul.u32 16, %s22
      %p252 = scmp.lt.s32.totalorder %s21, 1
      %s253 = scalar_select %p252, %s21, 1
      %p254 = scmp.lt.s32.totalorder %s251, 31
      %s255 = scalar_select %p254, %s251, 31
      %s256 = smul.addr %s253, 32
      %s257 = sadd.s32 %s255, %s256
      %s258 = smul.addr %s257, 8
      %s259 = scalar_lea.vmem %s0, %s258
      %p260 = pneg %p52
      %p261 = pneg %p49
      %p262 = scmp.lt.s32.totalorder %s21, 1
      %s263 = scalar_select %p262, %s21, 1
      %p264 = scmp.lt.s32.totalorder %s22, 1
      %s265 = scalar_select %p264, %s22, 1
      %s266 = smul.addr %s265, 2
      %s267 = smul.addr %s263, 4
      %s268 = sadd.s32 %s266, %s267
      %s269 = smul.addr %s268, 8
      %s270 = scalar_lea.vmem %s1, %s269
      %p271 = pneg %p80
      %p272 = pneg %p77
      %p273 = scmp.lt.s32.totalorder %s21, 1
      %s274 = scalar_select %p273, %s21, 1
      %p275 = scmp.lt.s32.totalorder %s22, 1
      %s276 = scalar_select %p275, %s22, 1
      %s277 = smul.addr %s276, 2
      %s278 = smul.addr %s274, 4
      %s279 = sadd.s32 %s277, %s278
      %s280 = smul.addr %s279, 8
      %s281 = scalar_lea.vmem %s2, %s280
      %p282 = pneg %p108
      %p283 = pneg %p105
      %p284 = pneg %p129
      %p285 = pneg %p126
      %p286 = pneg %p157
      %p287 = pneg %p154
      %s288 = smul.u32 16, %s22
      %p289 = scmp.lt.s32.totalorder %s21, 1
      %s290 = scalar_select %p289, %s21, 1
      %p291 = scmp.lt.s32.totalorder %s288, 31
      %s292 = scalar_select %p291, %s288, 31
      %s293 = smul.addr %s290, 32
      %s294 = sadd.s32 %s292, %s293
      %s295 = smul.addr %s294, 8
      %s296 = scalar_lea.vmem %s4, %s295
      %p297 = pneg %p185
      %p298 = pneg %p182
      %p299 = scmp.lt.s32.totalorder %s21, 1
      %s300 = scalar_select %p299, %s21, 1
      %p301 = scmp.lt.s32.totalorder %s22, 1
      %s302 = scalar_select %p301, %s22, 1
      %s303 = smul.addr %s300, 2
      %s304 = sadd.s32 %s302, %s303
      %s305 = smul.addr %s304, 2
      %s306 = scalar_lea.vmem %s5, %s305
      %s307 = smul.u32 16, %s22
      %p308 = scmp.lt.s32.totalorder %s21, 1
      %s309 = scalar_select %p308, %s21, 1
      %p310 = scmp.lt.s32.totalorder %s307, 31
      %s311 = scalar_select %p310, %s307, 31
      %s312 = smul.addr %s309, 32
      %s313 = sadd.s32 %s311, %s312
      %s314 = smul.addr %s313, 8
      %s315 = scalar_lea.vmem %s0, %s314
      %s316 = smul.u32 16, %s22
      %p317 = scmp.lt.s32.totalorder %s21, 1
      %s318 = scalar_select %p317, %s21, 1
      %p319 = scmp.lt.s32.totalorder %s22, 1
      %s320 = scalar_select %p319, %s22, 1
      %s321 = smul.addr %s320, 2
      %s322 = smul.addr %s318, 4
      %s323 = sadd.s32 %s321, %s322
      %s324 = smul.addr %s323, 8
      %s325 = scalar_lea.vmem %s1, %s324
      %p326 = scmp.lt.s32.totalorder %s21, 1
      %s327 = scalar_select %p326, %s21, 1
      %p328 = scmp.lt.s32.totalorder %s22, 1
      %s329 = scalar_select %p328, %s22, 1
      %s330 = smul.addr %s329, 2
      %s331 = smul.addr %s327, 4
      %s332 = sadd.s32 %s330, %s331
      %s333 = smul.addr %s332, 8
      %s334 = scalar_lea.vmem %s2, %s333
      %s335 = smul.u32 16, %s22
      %p336 = scmp.lt.s32.totalorder %s21, 1
      %s337 = scalar_select %p336, %s21, 1
      %p338 = scmp.lt.s32.totalorder %s335, 31
      %s339 = scalar_select %p338, %s335, 31
      %s340 = smul.addr %s337, 32
      %s341 = sadd.s32 %s339, %s340
      %s342 = smul.addr %s341, 8
      %s343 = scalar_lea.vmem %s4, %s342
      %s344 = smul.u32 16, %s22
      %p345 = scmp.lt.s32.totalorder %s21, 1
      %s346 = scalar_select %p345, %s21, 1
      %p347 = scmp.lt.s32.totalorder %s22, 1
      %s348 = scalar_select %p347, %s22, 1
      %s349 = smul.addr %s346, 2
      %s350 = sadd.s32 %s348, %s349
      %s351 = smul.addr %s350, 2
      %s352 = scalar_lea.vmem %s5, %s351
      %v353 = vld [vmem:[%s315] sm:$0xff]
      %v354 = vld [vmem:[%s315 + $0x8] sm:$0xff]
      %v355 = vld [vmem:[%s315 + $0x10] sm:$0xff]
      %v356 = vld [vmem:[%s315 + $0x18] sm:$0xff]
      %v357 = vld [vmem:[%s315 + $0x20] sm:$0xff]
      %v358 = vld [vmem:[%s315 + $0x28] sm:$0xff]
      %v359 = vld [vmem:[%s315 + $0x30] sm:$0xff]
      %v360 = vld [vmem:[%s315 + $0x38] sm:$0xff]
      %v361 = vld [vmem:[%s315 + $0x40] sm:$0xff]
      %v362 = vld [vmem:[%s315 + $0x48] sm:$0xff]
      %v363 = vld [vmem:[%s315 + $0x50] sm:$0xff]
      %v364 = vld [vmem:[%s315 + $0x58] sm:$0xff]
      %v365 = vld [vmem:[%s315 + $0x60] sm:$0xff]
      %v366 = vld [vmem:[%s315 + $0x68] sm:$0xff]
      %v367 = vld [vmem:[%s315 + $0x70] sm:$0xff]
      %v368 = vld [vmem:[%s315 + $0x78] sm:$0xff]
      %v369 = vld [vmem:[%s325] sm:$0xff]
      %v370 = vld [vmem:[%s325 + $0x8] sm:$0xff]
      %v371 = vld [vmem:[%s334] sm:$0xff]
      %v372 = vld [vmem:[%s334 + $0x8] sm:$0xff]
      %v373 = vlaneseq
      %v374 = vshrl.u32 %v373, 7
      %v375 = vadd.s32 %v374, 8
      %v376 = vadd.s32 %v374, 16
      %v377 = vadd.s32 %v374, 24
      %v378 = vadd.s32 %v374, 32
      %v379 = vadd.s32 %v374, 40
      %v380 = vadd.s32 %v374, 48
      %v381 = vadd.s32 %v374, 56
      %v382 = vadd.s32 %v374, 64
      %v383 = vadd.s32 %v374, 72
      %v384 = vadd.s32 %v374, 80
      %v385 = vadd.s32 %v374, 88
      %v386 = vadd.s32 %v374, 96
      %v387 = vadd.s32 %v374, 104
      %v388 = vadd.s32 %v374, 112
      %v389 = vadd.s32 %v374, 120
      %v390 = vadd.s32 %v374, 128
      %v391 = vadd.s32 %v374, 136
      %v392 = vadd.s32 %v374, 144
      %v393 = vadd.s32 %v374, 152
      %vm394 = vcmp.lt.s32.totalorder %v374, 0
      %v395 = vsub.s32 0, %v374
      %v396 = vsel %vm394, %v395, %v374
      %v397 = vshrl.u32 %v396, 4
      %v398 = vand.u32 %v396, 15
      %v399 = vsub.s32 0, %v398
      %v400 = vsel %vm394, %v399, %v398
      %vm401 = vcmp.lt.s32.totalorder %v375, 0
      %v402 = vsub.s32 0, %v375
      %v403 = vsel %vm401, %v402, %v375
      %v404 = vshrl.u32 %v403, 4
      %v405 = vand.u32 %v403, 15
      %v406 = vsub.s32 0, %v405
      %v407 = vsel %vm401, %v406, %v405
      %vm408 = vcmp.lt.s32.totalorder %v376, 0
      %v409 = vsub.s32 0, %v376
      %v410 = vsel %vm408, %v409, %v376
      %v411 = vshrl.u32 %v410, 4
      %v412 = vand.u32 %v410, 15
      %v413 = vsub.s32 0, %v412
      %v414 = vsel %vm408, %v413, %v412
      %vm415 = vcmp.lt.s32.totalorder %v377, 0
      %v416 = vsub.s32 0, %v377
      %v417 = vsel %vm415, %v416, %v377
      %v418 = vshrl.u32 %v417, 4
      %v419 = vand.u32 %v417, 15
      %v420 = vsub.s32 0, %v419
      %v421 = vsel %vm415, %v420, %v419
      %vm422 = vcmp.lt.s32.totalorder %v378, 0
      %v423 = vsub.s32 0, %v378
      %v424 = vsel %vm422, %v423, %v378
      %v425 = vshrl.u32 %v424, 4
      %v426 = vand.u32 %v424, 15
      %v427 = vsub.s32 0, %v426
      %v428 = vsel %vm422, %v427, %v426
      %vm429 = vcmp.lt.s32.totalorder %v379, 0
      %v430 = vsub.s32 0, %v379
      %v431 = vsel %vm429, %v430, %v379
      %v432 = vshrl.u32 %v431, 4
      %v433 = vand.u32 %v431, 15
      %v434 = vsub.s32 0, %v433
      %v435 = vsel %vm429, %v434, %v433
      %vm436 = vcmp.lt.s32.totalorder %v380, 0
      %v437 = vsub.s32 0, %v380
      %v438 = vsel %vm436, %v437, %v380
      %v439 = vshrl.u32 %v438, 4
      %v440 = vand.u32 %v438, 15
      %v441 = vsub.s32 0, %v440
      %v442 = vsel %vm436, %v441, %v440
      %vm443 = vcmp.lt.s32.totalorder %v381, 0
      %v444 = vsub.s32 0, %v381
      %v445 = vsel %vm443, %v444, %v381
      %v446 = vshrl.u32 %v445, 4
      %v447 = vand.u32 %v445, 15
      %v448 = vsub.s32 0, %v447
      %v449 = vsel %vm443, %v448, %v447
      %vm450 = vcmp.lt.s32.totalorder %v382, 0
      %v451 = vsub.s32 0, %v382
      %v452 = vsel %vm450, %v451, %v382
      %v453 = vshrl.u32 %v452, 4
      %v454 = vand.u32 %v452, 15
      %v455 = vsub.s32 0, %v454
      %v456 = vsel %vm450, %v455, %v454
      %vm457 = vcmp.lt.s32.totalorder %v383, 0
      %v458 = vsub.s32 0, %v383
      %v459 = vsel %vm457, %v458, %v383
      %v460 = vshrl.u32 %v459, 4
      %v461 = vand.u32 %v459, 15
      %v462 = vsub.s32 0, %v461
      %v463 = vsel %vm457, %v462, %v461
      %vm464 = vcmp.lt.s32.totalorder %v384, 0
      %v465 = vsub.s32 0, %v384
      %v466 = vsel %vm464, %v465, %v384
      %v467 = vshrl.u32 %v466, 4
      %v468 = vand.u32 %v466, 15
      %v469 = vsub.s32 0, %v468
      %v470 = vsel %vm464, %v469, %v468
      %vm471 = vcmp.lt.s32.totalorder %v385, 0
      %v472 = vsub.s32 0, %v385
      %v473 = vsel %vm471, %v472, %v385
      %v474 = vshrl.u32 %v473, 4
      %v475 = vand.u32 %v473, 15
      %v476 = vsub.s32 0, %v475
      %v477 = vsel %vm471, %v476, %v475
      %vm478 = vcmp.lt.s32.totalorder %v386, 0
      %v479 = vsub.s32 0, %v386
      %v480 = vsel %vm478, %v479, %v386
      %v481 = vshrl.u32 %v480, 4
      %v482 = vand.u32 %v480, 15
      %v483 = vsub.s32 0, %v482
      %v484 = vsel %vm478, %v483, %v482
      %vm485 = vcmp.lt.s32.totalorder %v387, 0
      %v486 = vsub.s32 0, %v387
      %v487 = vsel %vm485, %v486, %v387
      %v488 = vshrl.u32 %v487, 4
      %v489 = vand.u32 %v487, 15
      %v490 = vsub.s32 0, %v489
      %v491 = vsel %vm485, %v490, %v489
      %vm492 = vcmp.lt.s32.totalorder %v388, 0
      %v493 = vsub.s32 0, %v388
      %v494 = vsel %vm492, %v493, %v388
      %v495 = vshrl.u32 %v494, 4
      %v496 = vand.u32 %v494, 15
      %v497 = vsub.s32 0, %v496
      %v498 = vsel %vm492, %v497, %v496
      %vm499 = vcmp.lt.s32.totalorder %v389, 0
      %v500 = vsub.s32 0, %v389
      %v501 = vsel %vm499, %v500, %v389
      %v502 = vshrl.u32 %v501, 4
      %v503 = vand.u32 %v501, 15
      %v504 = vsub.s32 0, %v503
      %v505 = vsel %vm499, %v504, %v503
      %vm506 = vcmp.lt.s32.totalorder %v390, 0
      %v507 = vsub.s32 0, %v390
      %v508 = vsel %vm506, %v507, %v390
      %v509 = vshrl.u32 %v508, 4
      %v510 = vand.u32 %v508, 15
      %v511 = vsub.s32 0, %v510
      %v512 = vsel %vm506, %v511, %v510
      %vm513 = vcmp.lt.s32.totalorder %v391, 0
      %v514 = vsub.s32 0, %v391
      %v515 = vsel %vm513, %v514, %v391
      %v516 = vshrl.u32 %v515, 4
      %v517 = vand.u32 %v515, 15
      %v518 = vsub.s32 0, %v517
      %v519 = vsel %vm513, %v518, %v517
      %vm520 = vcmp.lt.s32.totalorder %v392, 0
      %v521 = vsub.s32 0, %v392
      %v522 = vsel %vm520, %v521, %v392
      %v523 = vshrl.u32 %v522, 4
      %v524 = vand.u32 %v522, 15
      %v525 = vsub.s32 0, %v524
      %v526 = vsel %vm520, %v525, %v524
      %vm527 = vcmp.lt.s32.totalorder %v393, 0
      %v528 = vsub.s32 0, %v393
      %v529 = vsel %vm527, %v528, %v393
      %v530 = vshrl.u32 %v529, 4
      %v531 = vand.u32 %v529, 15
      %v532 = vsub.s32 0, %v531
      %v533 = vsel %vm527, %v532, %v531
      %vm534 = vcmp.ne.s32.totalorder %v400, 0
      %vm535 = vcmp.ne.s32.totalorder %v407, 0
      %vm536 = vcmp.ne.s32.totalorder %v414, 0
      %vm537 = vcmp.ne.s32.totalorder %v421, 0
      %vm538 = vcmp.ne.s32.totalorder %v428, 0
      %vm539 = vcmp.ne.s32.totalorder %v435, 0
      %vm540 = vcmp.ne.s32.totalorder %v442, 0
      %vm541 = vcmp.ne.s32.totalorder %v449, 0
      %vm542 = vcmp.ne.s32.totalorder %v456, 0
      %vm543 = vcmp.ne.s32.totalorder %v463, 0
      %vm544 = vcmp.ne.s32.totalorder %v470, 0
      %vm545 = vcmp.ne.s32.totalorder %v477, 0
      %vm546 = vcmp.ne.s32.totalorder %v484, 0
      %vm547 = vcmp.ne.s32.totalorder %v491, 0
      %vm548 = vcmp.ne.s32.totalorder %v498, 0
      %vm549 = vcmp.ne.s32.totalorder %v505, 0
      %vm550 = vcmp.ne.s32.totalorder %v512, 0
      %vm551 = vcmp.ne.s32.totalorder %v519, 0
      %vm552 = vcmp.ne.s32.totalorder %v526, 0
      %vm553 = vcmp.ne.s32.totalorder %v533, 0
      %vm554 = vcmp.lt.s32.totalorder %v400, 0
      %vm555 = vcmp.lt.s32.totalorder %v407, 0
      %vm556 = vcmp.lt.s32.totalorder %v414, 0
      %vm557 = vcmp.lt.s32.totalorder %v421, 0
      %vm558 = vcmp.lt.s32.totalorder %v428, 0
      %vm559 = vcmp.lt.s32.totalorder %v435, 0
      %vm560 = vcmp.lt.s32.totalorder %v442, 0
      %vm561 = vcmp.lt.s32.totalorder %v449, 0
      %vm562 = vcmp.lt.s32.totalorder %v456, 0
      %vm563 = vcmp.lt.s32.totalorder %v463, 0
      %vm564 = vcmp.lt.s32.totalorder %v470, 0
      %vm565 = vcmp.lt.s32.totalorder %v477, 0
      %vm566 = vcmp.lt.s32.totalorder %v484, 0
      %vm567 = vcmp.lt.s32.totalorder %v491, 0
      %vm568 = vcmp.lt.s32.totalorder %v498, 0
      %vm569 = vcmp.lt.s32.totalorder %v505, 0
      %vm570 = vcmp.lt.s32.totalorder %v512, 0
      %vm571 = vcmp.lt.s32.totalorder %v519, 0
      %vm572 = vcmp.lt.s32.totalorder %v526, 0
      %vm573 = vcmp.lt.s32.totalorder %v533, 0
      %vm574 = vmand %vm554, %vm534
      %vm575 = vmand %vm555, %vm535
      %vm576 = vmand %vm556, %vm536
      %vm577 = vmand %vm557, %vm537
      %vm578 = vmand %vm558, %vm538
      %vm579 = vmand %vm559, %vm539
      %vm580 = vmand %vm560, %vm540
      %vm581 = vmand %vm561, %vm541
      %vm582 = vmand %vm562, %vm542
      %vm583 = vmand %vm563, %vm543
      %vm584 = vmand %vm564, %vm544
      %vm585 = vmand %vm565, %vm545
      %vm586 = vmand %vm566, %vm546
      %vm587 = vmand %vm567, %vm547
      %vm588 = vmand %vm568, %vm548
      %vm589 = vmand %vm569, %vm549
      %vm590 = vmand %vm570, %vm550
      %vm591 = vmand %vm571, %vm551
      %vm592 = vmand %vm572, %vm552
      %vm593 = vmand %vm573, %vm553
      %v594 = vadd.s32 %v400, 16
      %v595 = vadd.s32 %v407, 16
      %v596 = vadd.s32 %v414, 16
      %v597 = vadd.s32 %v421, 16
      %v598 = vadd.s32 %v428, 16
      %v599 = vadd.s32 %v435, 16
      %v600 = vadd.s32 %v442, 16
      %v601 = vadd.s32 %v449, 16
      %v602 = vadd.s32 %v456, 16
      %v603 = vadd.s32 %v463, 16
      %v604 = vadd.s32 %v470, 16
      %v605 = vadd.s32 %v477, 16
      %v606 = vadd.s32 %v484, 16
      %v607 = vadd.s32 %v491, 16
      %v608 = vadd.s32 %v498, 16
      %v609 = vadd.s32 %v505, 16
      %v610 = vadd.s32 %v512, 16
      %v611 = vadd.s32 %v519, 16
      %v612 = vadd.s32 %v526, 16
      %v613 = vadd.s32 %v533, 16
      %v614 = vsel %vm574, %v594, %v400
      %v615 = vsel %vm575, %v595, %v407
      %v616 = vsel %vm576, %v596, %v414
      %v617 = vsel %vm577, %v597, %v421
      %v618 = vsel %vm578, %v598, %v428
      %v619 = vsel %vm579, %v599, %v435
      %v620 = vsel %vm580, %v600, %v442
      %v621 = vsel %vm581, %v601, %v449
      %v622 = vsel %vm582, %v602, %v456
      %v623 = vsel %vm583, %v603, %v463
      %v624 = vsel %vm584, %v604, %v470
      %v625 = vsel %vm585, %v605, %v477
      %v626 = vsel %vm586, %v606, %v484
      %v627 = vsel %vm587, %v607, %v491
      %v628 = vsel %vm588, %v608, %v498
      %v629 = vsel %vm589, %v609, %v505
      %v630 = vsel %vm590, %v610, %v512
      %v631 = vsel %vm591, %v611, %v519
      %v632 = vsel %vm592, %v612, %v526
      %v633 = vsel %vm593, %v613, %v533
      %vm634 = vcmp.ge.s32.totalorder %v614, 1
      %vm635 = vcmp.ge.s32.totalorder %v615, 1
      %vm636 = vcmp.ge.s32.totalorder %v616, 1
      %vm637 = vcmp.ge.s32.totalorder %v617, 1
      %vm638 = vcmp.ge.s32.totalorder %v618, 1
      %vm639 = vcmp.ge.s32.totalorder %v619, 1
      %vm640 = vcmp.ge.s32.totalorder %v620, 1
      %vm641 = vcmp.ge.s32.totalorder %v621, 1
      %vm642 = vcmp.ge.s32.totalorder %v622, 1
      %vm643 = vcmp.ge.s32.totalorder %v623, 1
      %vm644 = vcmp.ge.s32.totalorder %v624, 1
      %vm645 = vcmp.ge.s32.totalorder %v625, 1
      %vm646 = vcmp.ge.s32.totalorder %v626, 1
      %vm647 = vcmp.ge.s32.totalorder %v627, 1
      %vm648 = vcmp.ge.s32.totalorder %v628, 1
      %vm649 = vcmp.ge.s32.totalorder %v629, 1
      %vm650 = vcmp.ge.s32.totalorder %v630, 1
      %vm651 = vcmp.ge.s32.totalorder %v631, 1
      %vm652 = vcmp.ge.s32.totalorder %v632, 1
      %vm653 = vcmp.ge.s32.totalorder %v633, 1
      %vm674 = vcmask 1040384
      %v675 = vrot.slane %v369, 7
      %v676 = vrot.slane %v370, 7
      %v677 = vsel %vm674, %v675, %v676
      %v678 = vrot.slane %v353, 7
      %v679 = vsel %vm674, %v676, %v678
      %v680 = vrot.slane %v354, 7
      %v681 = vsel %vm674, %v678, %v680
      %v682 = vrot.slane %v355, 7
      %v683 = vsel %vm674, %v680, %v682
      %v684 = vrot.slane %v356, 7
      %v685 = vsel %vm674, %v682, %v684
      %v686 = vrot.slane %v357, 7
      %v687 = vsel %vm674, %v684, %v686
      %v688 = vrot.slane %v358, 7
      %v689 = vsel %vm674, %v686, %v688
      %v690 = vrot.slane %v359, 7
      %v691 = vsel %vm674, %v688, %v690
      %v692 = vrot.slane %v360, 7
      %v693 = vsel %vm674, %v690, %v692
      %v694 = vrot.slane %v361, 7
      %v695 = vsel %vm674, %v692, %v694
      %v696 = vrot.slane %v362, 7
      %v697 = vsel %vm674, %v694, %v696
      %v698 = vrot.slane %v363, 7
      %v699 = vsel %vm674, %v696, %v698
      %v700 = vrot.slane %v364, 7
      %v701 = vsel %vm674, %v698, %v700
      %v702 = vrot.slane %v365, 7
      %v703 = vsel %vm674, %v700, %v702
      %v704 = vrot.slane %v366, 7
      %v705 = vsel %vm674, %v702, %v704
      %v706 = vrot.slane %v367, 7
      %v707 = vsel %vm674, %v704, %v706
      %v708 = vrot.slane %v368, 7
      %v709 = vsel %vm674, %v706, %v708
      %v710 = vrot.slane %v371, 7
      %v711 = vsel %vm674, %v708, %v710
      %v712 = vrot.slane %v372, 7
      %v713 = vsel %vm674, %v710, %v712
      %v734 = vsel %vm674, 0.0, %v675
      %v735 = vsel %vm634, 1, 0
      %v736 = vsel %vm635, 1, 0
      %v737 = vsel %vm636, 1, 0
      %v738 = vsel %vm637, 1, 0
      %v739 = vsel %vm638, 1, 0
      %v740 = vsel %vm639, 1, 0
      %v741 = vsel %vm640, 1, 0
      %v742 = vsel %vm641, 1, 0
      %v743 = vsel %vm642, 1, 0
      %v744 = vsel %vm643, 1, 0
      %v745 = vsel %vm644, 1, 0
      %v746 = vsel %vm645, 1, 0
      %v747 = vsel %vm646, 1, 0
      %v748 = vsel %vm647, 1, 0
      %v749 = vsel %vm648, 1, 0
      %v750 = vsel %vm649, 1, 0
      %v751 = vsel %vm650, 1, 0
      %v752 = vsel %vm651, 1, 0
      %v753 = vsel %vm652, 1, 0
      %v754 = vsel %vm653, 1, 0
      %vm755 = vcmp.eq.s32.totalorder %v735, 1
      %vm756 = vcmp.eq.s32.totalorder %v736, 1
      %vm757 = vcmp.eq.s32.totalorder %v737, 1
      %vm758 = vcmp.eq.s32.totalorder %v738, 1
      %vm759 = vcmp.eq.s32.totalorder %v739, 1
      %vm760 = vcmp.eq.s32.totalorder %v740, 1
      %vm761 = vcmp.eq.s32.totalorder %v741, 1
      %vm762 = vcmp.eq.s32.totalorder %v742, 1
      %vm763 = vcmp.eq.s32.totalorder %v743, 1
      %vm764 = vcmp.eq.s32.totalorder %v744, 1
      %vm765 = vcmp.eq.s32.totalorder %v745, 1
      %vm766 = vcmp.eq.s32.totalorder %v746, 1
      %vm767 = vcmp.eq.s32.totalorder %v747, 1
      %vm768 = vcmp.eq.s32.totalorder %v748, 1
      %vm769 = vcmp.eq.s32.totalorder %v749, 1
      %vm770 = vcmp.eq.s32.totalorder %v750, 1
      %vm771 = vcmp.eq.s32.totalorder %v751, 1
      %vm772 = vcmp.eq.s32.totalorder %v752, 1
      %vm773 = vcmp.eq.s32.totalorder %v753, 1
      %vm774 = vcmp.eq.s32.totalorder %v754, 1
      %v775 = vsel %vm755, %v734, 0.0
      %v776 = vsel %vm756, %v677, 0.0
      %v777 = vsel %vm757, %v679, 0.0
      %v778 = vsel %vm758, %v681, 0.0
      %v779 = vsel %vm759, %v683, 0.0
      %v780 = vsel %vm760, %v685, 0.0
      %v781 = vsel %vm761, %v687, 0.0
      %v782 = vsel %vm762, %v689, 0.0
      %v783 = vsel %vm763, %v691, 0.0
      %v784 = vsel %vm764, %v693, 0.0
      %v785 = vsel %vm765, %v695, 0.0
      %v786 = vsel %vm766, %v697, 0.0
      %v787 = vsel %vm767, %v699, 0.0
      %v788 = vsel %vm768, %v701, 0.0
      %v789 = vsel %vm769, %v703, 0.0
      %v790 = vsel %vm770, %v705, 0.0
      %v791 = vsel %vm771, %v707, 0.0
      %v792 = vsel %vm772, %v709, 0.0
      %v793 = vsel %vm773, %v711, 0.0
      %v794 = vsel %vm774, %v713, 0.0
      %vm795 = vcmp.le.s32.totalorder %v614, 14
      %vm796 = vcmp.le.s32.totalorder %v615, 14
      %vm797 = vcmp.le.s32.totalorder %v616, 14
      %vm798 = vcmp.le.s32.totalorder %v617, 14
      %vm799 = vcmp.le.s32.totalorder %v618, 14
      %vm800 = vcmp.le.s32.totalorder %v619, 14
      %vm801 = vcmp.le.s32.totalorder %v620, 14
      %vm802 = vcmp.le.s32.totalorder %v621, 14
      %vm803 = vcmp.le.s32.totalorder %v622, 14
      %vm804 = vcmp.le.s32.totalorder %v623, 14
      %vm805 = vcmp.le.s32.totalorder %v624, 14
      %vm806 = vcmp.le.s32.totalorder %v625, 14
      %vm807 = vcmp.le.s32.totalorder %v626, 14
      %vm808 = vcmp.le.s32.totalorder %v627, 14
      %vm809 = vcmp.le.s32.totalorder %v628, 14
      %vm810 = vcmp.le.s32.totalorder %v629, 14
      %vm811 = vcmp.le.s32.totalorder %v630, 14
      %vm812 = vcmp.le.s32.totalorder %v631, 14
      %vm813 = vcmp.le.s32.totalorder %v632, 14
      %vm814 = vcmp.le.s32.totalorder %v633, 14
      %vm815 = vcmask 1046528
      %v816 = vrot.slane %v369, 1
      %v817 = vrot.slane %v370, 1
      %v818 = vsel %vm815, %v816, %v817
      %v819 = vrot.slane %v353, 1
      %v820 = vsel %vm815, %v817, %v819
      %v821 = vrot.slane %v354, 1
      %v822 = vsel %vm815, %v819, %v821
      %v823 = vrot.slane %v355, 1
      %v824 = vsel %vm815, %v821, %v823
      %v825 = vrot.slane %v356, 1
      %v826 = vsel %vm815, %v823, %v825
      %v827 = vrot.slane %v357, 1
      %v828 = vsel %vm815, %v825, %v827
      %v829 = vrot.slane %v358, 1
      %v830 = vsel %vm815, %v827, %v829
      %v831 = vrot.slane %v359, 1
      %v832 = vsel %vm815, %v829, %v831
      %v833 = vrot.slane %v360, 1
      %v834 = vsel %vm815, %v831, %v833
      %v835 = vrot.slane %v361, 1
      %v836 = vsel %vm815, %v833, %v835
      %v837 = vrot.slane %v362, 1
      %v838 = vsel %vm815, %v835, %v837
      %v839 = vrot.slane %v363, 1
      %v840 = vsel %vm815, %v837, %v839
      %v841 = vrot.slane %v364, 1
      %v842 = vsel %vm815, %v839, %v841
      %v843 = vrot.slane %v365, 1
      %v844 = vsel %vm815, %v841, %v843
      %v845 = vrot.slane %v366, 1
      %v846 = vsel %vm815, %v843, %v845
      %v847 = vrot.slane %v367, 1
      %v848 = vsel %vm815, %v845, %v847
      %v849 = vrot.slane %v368, 1
      %v850 = vsel %vm815, %v847, %v849
      %v851 = vrot.slane %v371, 1
      %v852 = vsel %vm815, %v849, %v851
      %v853 = vrot.slane %v372, 1
      %v854 = vsel %vm815, %v851, %v853
      %v875 = vsel %vm815, %v853, 0.0
      %v876 = vsel %vm795, 1, 0
      %v877 = vsel %vm796, 1, 0
      %v878 = vsel %vm797, 1, 0
      %v879 = vsel %vm798, 1, 0
      %v880 = vsel %vm799, 1, 0
      %v881 = vsel %vm800, 1, 0
      %v882 = vsel %vm801, 1, 0
      %v883 = vsel %vm802, 1, 0
      %v884 = vsel %vm803, 1, 0
      %v885 = vsel %vm804, 1, 0
      %v886 = vsel %vm805, 1, 0
      %v887 = vsel %vm806, 1, 0
      %v888 = vsel %vm807, 1, 0
      %v889 = vsel %vm808, 1, 0
      %v890 = vsel %vm809, 1, 0
      %v891 = vsel %vm810, 1, 0
      %v892 = vsel %vm811, 1, 0
      %v893 = vsel %vm812, 1, 0
      %v894 = vsel %vm813, 1, 0
      %v895 = vsel %vm814, 1, 0
      %vm896 = vcmp.eq.s32.totalorder %v876, 1
      %vm897 = vcmp.eq.s32.totalorder %v877, 1
      %vm898 = vcmp.eq.s32.totalorder %v878, 1
      %vm899 = vcmp.eq.s32.totalorder %v879, 1
      %vm900 = vcmp.eq.s32.totalorder %v880, 1
      %vm901 = vcmp.eq.s32.totalorder %v881, 1
      %vm902 = vcmp.eq.s32.totalorder %v882, 1
      %vm903 = vcmp.eq.s32.totalorder %v883, 1
      %vm904 = vcmp.eq.s32.totalorder %v884, 1
      %vm905 = vcmp.eq.s32.totalorder %v885, 1
      %vm906 = vcmp.eq.s32.totalorder %v886, 1
      %vm907 = vcmp.eq.s32.totalorder %v887, 1
      %vm908 = vcmp.eq.s32.totalorder %v888, 1
      %vm909 = vcmp.eq.s32.totalorder %v889, 1
      %vm910 = vcmp.eq.s32.totalorder %v890, 1
      %vm911 = vcmp.eq.s32.totalorder %v891, 1
      %vm912 = vcmp.eq.s32.totalorder %v892, 1
      %vm913 = vcmp.eq.s32.totalorder %v893, 1
      %vm914 = vcmp.eq.s32.totalorder %v894, 1
      %vm915 = vcmp.eq.s32.totalorder %v895, 1
      %v916 = vsel %vm896, %v818, 0.0
      %v917 = vsel %vm897, %v820, 0.0
      %v918 = vsel %vm898, %v822, 0.0
      %v919 = vsel %vm899, %v824, 0.0
      %v920 = vsel %vm900, %v826, 0.0
      %v921 = vsel %vm901, %v828, 0.0
      %v922 = vsel %vm902, %v830, 0.0
      %v923 = vsel %vm903, %v832, 0.0
      %v924 = vsel %vm904, %v834, 0.0
      %v925 = vsel %vm905, %v836, 0.0
      %v926 = vsel %vm906, %v838, 0.0
      %v927 = vsel %vm907, %v840, 0.0
      %v928 = vsel %vm908, %v842, 0.0
      %v929 = vsel %vm909, %v844, 0.0
      %v930 = vsel %vm910, %v846, 0.0
      %v931 = vsel %vm911, %v848, 0.0
      %v932 = vsel %vm912, %v850, 0.0
      %v933 = vsel %vm913, %v852, 0.0
      %v934 = vsel %vm914, %v854, 0.0
      %v935 = vsel %vm915, %v875, 0.0
      %936 = vrot.lane.b32.xlu0 %v369, 4
      %v937 = vpop.permute.xlu0 %936
      %938 = vrot.lane.b32.xlu0 %v370, 4
      %v939 = vpop.permute.xlu0 %938
      %940 = vrot.lane.b32.xlu0 %v353, 4
      %v941 = vpop.permute.xlu0 %940
      %942 = vrot.lane.b32.xlu0 %v354, 4
      %v943 = vpop.permute.xlu0 %942
      %944 = vrot.lane.b32.xlu0 %v355, 4
      %v945 = vpop.permute.xlu0 %944
      %946 = vrot.lane.b32.xlu0 %v356, 4
      %v947 = vpop.permute.xlu0 %946
      %948 = vrot.lane.b32.xlu0 %v357, 4
      %v949 = vpop.permute.xlu0 %948
      %950 = vrot.lane.b32.xlu0 %v358, 4
      %v951 = vpop.permute.xlu0 %950
      %952 = vrot.lane.b32.xlu0 %v359, 4
      %v953 = vpop.permute.xlu0 %952
      %954 = vrot.lane.b32.xlu0 %v360, 4
      %v955 = vpop.permute.xlu0 %954
      %956 = vrot.lane.b32.xlu0 %v361, 4
      %v957 = vpop.permute.xlu0 %956
      %958 = vrot.lane.b32.xlu0 %v362, 4
      %v959 = vpop.permute.xlu0 %958
      %960 = vrot.lane.b32.xlu0 %v363, 4
      %v961 = vpop.permute.xlu0 %960
      %962 = vrot.lane.b32.xlu0 %v364, 4
      %v963 = vpop.permute.xlu0 %962
      %964 = vrot.lane.b32.xlu0 %v365, 4
      %v965 = vpop.permute.xlu0 %964
      %966 = vrot.lane.b32.xlu0 %v366, 4
      %v967 = vpop.permute.xlu0 %966
      %968 = vrot.lane.b32.xlu0 %v367, 4
      %v969 = vpop.permute.xlu0 %968
      %970 = vrot.lane.b32.xlu0 %v368, 4
      %v971 = vpop.permute.xlu0 %970
      %972 = vrot.lane.b32.xlu0 %v371, 4
      %v973 = vpop.permute.xlu0 %972
      %974 = vrot.lane.b32.xlu0 %v372, 4
      %v975 = vpop.permute.xlu0 %974
      %1016 = vrot.lane.b32.xlu0 %v916, 8
      %v1017 = vpop.permute.xlu0 %1016
      %1018 = vrot.lane.b32.xlu0 %v917, 8
      %v1019 = vpop.permute.xlu0 %1018
      %1020 = vrot.lane.b32.xlu0 %v918, 8
      %v1021 = vpop.permute.xlu0 %1020
      %1022 = vrot.lane.b32.xlu0 %v919, 8
      %v1023 = vpop.permute.xlu0 %1022
      %1024 = vrot.lane.b32.xlu0 %v920, 8
      %v1025 = vpop.permute.xlu0 %1024
      %1026 = vrot.lane.b32.xlu0 %v921, 8
      %v1027 = vpop.permute.xlu0 %1026
      %1028 = vrot.lane.b32.xlu0 %v922, 8
      %v1029 = vpop.permute.xlu0 %1028
      %1030 = vrot.lane.b32.xlu0 %v923, 8
      %v1031 = vpop.permute.xlu0 %1030
      %1032 = vrot.lane.b32.xlu0 %v924, 8
      %v1033 = vpop.permute.xlu0 %1032
      %1034 = vrot.lane.b32.xlu0 %v925, 8
      %v1035 = vpop.permute.xlu0 %1034
      %1036 = vrot.lane.b32.xlu0 %v926, 8
      %v1037 = vpop.permute.xlu0 %1036
      %1038 = vrot.lane.b32.xlu0 %v927, 8
      %v1039 = vpop.permute.xlu0 %1038
      %1040 = vrot.lane.b32.xlu0 %v928, 8
      %v1041 = vpop.permute.xlu0 %1040
      %1042 = vrot.lane.b32.xlu0 %v929, 8
      %v1043 = vpop.permute.xlu0 %1042
      %1044 = vrot.lane.b32.xlu0 %v930, 8
      %v1045 = vpop.permute.xlu0 %1044
      %1046 = vrot.lane.b32.xlu0 %v931, 8
      %v1047 = vpop.permute.xlu0 %1046
      %1048 = vrot.lane.b32.xlu0 %v932, 8
      %v1049 = vpop.permute.xlu0 %1048
      %1050 = vrot.lane.b32.xlu0 %v933, 8
      %v1051 = vpop.permute.xlu0 %1050
      %1052 = vrot.lane.b32.xlu0 %v934, 8
      %v1053 = vpop.permute.xlu0 %1052
      %1054 = vrot.lane.b32.xlu0 %v935, 8
      %v1055 = vpop.permute.xlu0 %1054
      %vm1076 = vcmask 31744
      %v1077 = vsel %vm1076, %v775, %v937
      %v1078 = vsel %vm1076, %v776, %v939
      %v1079 = vsel %vm1076, %v777, %v941
      %v1080 = vsel %vm1076, %v778, %v943
      %v1081 = vsel %vm1076, %v779, %v945
      %v1082 = vsel %vm1076, %v780, %v947
      %v1083 = vsel %vm1076, %v781, %v949
      %v1084 = vsel %vm1076, %v782, %v951
      %v1085 = vsel %vm1076, %v783, %v953
      %v1086 = vsel %vm1076, %v784, %v955
      %v1087 = vsel %vm1076, %v785, %v957
      %v1088 = vsel %vm1076, %v786, %v959
      %v1089 = vsel %vm1076, %v787, %v961
      %v1090 = vsel %vm1076, %v788, %v963
      %v1091 = vsel %vm1076, %v789, %v965
      %v1092 = vsel %vm1076, %v790, %v967
      %v1093 = vsel %vm1076, %v791, %v969
      %v1094 = vsel %vm1076, %v792, %v971
      %v1095 = vsel %vm1076, %v793, %v973
      %v1096 = vsel %vm1076, %v794, %v975
      %vm1097 = vcmask 64512
      %v1098 = vsel %vm1097, %v1077, %v1017
      %v1099 = vsel %vm1097, %v1078, %v1019
      %v1100 = vsel %vm1097, %v1079, %v1021
      %v1101 = vsel %vm1097, %v1080, %v1023
      %v1102 = vsel %vm1097, %v1081, %v1025
      %v1103 = vsel %vm1097, %v1082, %v1027
      %v1104 = vsel %vm1097, %v1083, %v1029
      %v1105 = vsel %vm1097, %v1084, %v1031
      %v1106 = vsel %vm1097, %v1085, %v1033
      %v1107 = vsel %vm1097, %v1086, %v1035
      %v1108 = vsel %vm1097, %v1087, %v1037
      %v1109 = vsel %vm1097, %v1088, %v1039
      %v1110 = vsel %vm1097, %v1089, %v1041
      %v1111 = vsel %vm1097, %v1090, %v1043
      %v1112 = vsel %vm1097, %v1091, %v1045
      %v1113 = vsel %vm1097, %v1092, %v1047
      %v1114 = vsel %vm1097, %v1093, %v1049
      %v1115 = vsel %vm1097, %v1094, %v1051
      %v1116 = vsel %vm1097, %v1095, %v1053
      %v1117 = vsel %vm1097, %v1096, %v1055
      %v1118 = vld [vmem:[%s3] sm:$0xff]
      %v1119 = vld [vmem:[%s3 + $0x8] sm:$0xf]
      %s1120 = scalar_lea.vmem %s3, 16
      %v1121 = vld [vmem:[%s1120] sm:$0xff]
      %v1122 = vld [vmem:[%s1120 + $0x8] sm:$0xf]
      %vm1123 = vcmask 97280
      %v1125 = vsel %vm1123, %v1100, 0
      %v1128 = vsel %vm1123, %v1101, 0
      %v1131 = vsel %vm1123, %v1102, 0
      %v1134 = vsel %vm1123, %v1103, 0
      %v1137 = vsel %vm1123, %v1104, 0
      %v1140 = vsel %vm1123, %v1105, 0
      %v1143 = vsel %vm1123, %v1106, 0
      %v1146 = vsel %vm1123, %v1107, 0
      %v1149 = vsel %vm1123, %v1108, 0
      %v1152 = vsel %vm1123, %v1109, 0
      %v1155 = vsel %vm1123, %v1110, 0
      %v1158 = vsel %vm1123, %v1111, 0
      %v1161 = vsel %vm1123, %v1112, 0
      %v1164 = vsel %vm1123, %v1113, 0
      %v1167 = vsel %vm1123, %v1114, 0
      %v1170 = vsel %vm1123, %v1115, 0
      %vm1172 = vcmask 1043456
      %v1174 = vsel %vm1172, %v1122, 0
      %1176 = vmatpush.msra.mxu0 0.0
      %1177 = vmatpush.msra.mxu0 0.0
      %1178 = vmatpush.msra.mxu0 0.0
      %1179 = vmatpush.msra.mxu0 0.0
      %1180 = vmatpush.msra.mxu0 0.0
      %1181 = vmatpush.msra.mxu0 0.0
      %1182 = vmatpush.msra.mxu0 0.0
      %1183 = vmatpush.msra.mxu0 0.0
      %1184 = vmatpush.msra.mxu0 0.0
      %1185 = vmatpush.msra.mxu0 0.0
      %1186 = vmatpush.msra.mxu0 0.0
      %1187 = vmatpush.msra.mxu0 0.0
      %1188 = vmatpush.msra.mxu0 0.0
      %1189 = vmatpush.msra.mxu0 0.0
      %1190 = vmatpush.msra.mxu0 %v1174
      %1191 = vmatpush.msra.mxu0 %v1121
      %1192 = vmatmul.f32.gmra.mxu0 %v1125
      %v1193 = vpop.f32.mrf.mxu0
      %v1194 = vadd.f32 0.0, %v1193
      %1195 = vmatmul.f32.gmra.mxu0 %v1128
      %v1196 = vpop.f32.mrf.mxu0
      %v1197 = vadd.f32 0.0, %v1196
      %1198 = vmatmul.f32.gmra.mxu0 %v1131
      %v1199 = vpop.f32.mrf.mxu0
      %v1200 = vadd.f32 0.0, %v1199
      %1201 = vmatmul.f32.gmra.mxu0 %v1134
      %v1202 = vpop.f32.mrf.mxu0
      %v1203 = vadd.f32 0.0, %v1202
      %1204 = vmatmul.f32.gmra.mxu0 %v1137
      %v1205 = vpop.f32.mrf.mxu0
      %v1206 = vadd.f32 0.0, %v1205
      %1207 = vmatmul.f32.gmra.mxu0 %v1140
      %v1208 = vpop.f32.mrf.mxu0
      %v1209 = vadd.f32 0.0, %v1208
      %1210 = vmatmul.f32.gmra.mxu0 %v1143
      %v1211 = vpop.f32.mrf.mxu0
      %v1212 = vadd.f32 0.0, %v1211
      %1213 = vmatmul.f32.gmra.mxu0 %v1146
      %v1214 = vpop.f32.mrf.mxu0
      %v1215 = vadd.f32 0.0, %v1214
      %1216 = vmatmul.f32.gmra.mxu0 %v1149
      %v1217 = vpop.f32.mrf.mxu0
      %v1218 = vadd.f32 0.0, %v1217
      %1219 = vmatmul.f32.gmra.mxu0 %v1152
      %v1220 = vpop.f32.mrf.mxu0
      %v1221 = vadd.f32 0.0, %v1220
      %1222 = vmatmul.f32.gmra.mxu0 %v1155
      %v1223 = vpop.f32.mrf.mxu0
      %v1224 = vadd.f32 0.0, %v1223
      %1225 = vmatmul.f32.gmra.mxu0 %v1158
      %v1226 = vpop.f32.mrf.mxu0
      %v1227 = vadd.f32 0.0, %v1226
      %1228 = vmatmul.f32.gmra.mxu0 %v1161
      %v1229 = vpop.f32.mrf.mxu0
      %v1230 = vadd.f32 0.0, %v1229
      %1231 = vmatmul.f32.gmra.mxu0 %v1164
      %v1232 = vpop.f32.mrf.mxu0
      %v1233 = vadd.f32 0.0, %v1232
      %1234 = vmatmul.f32.gmra.mxu0 %v1167
      %v1235 = vpop.f32.mrf.mxu0
      %v1236 = vadd.f32 0.0, %v1235
      %1237 = vmatmul.f32.gmra.mxu0 %v1170
      %v1238 = vpop.f32.mrf.mxu0
      %v1239 = vadd.f32 0.0, %v1238
      %1240 = vdwg.mxu0
      %v1242 = vsel %vm1123, %v1098, 0
      %v1245 = vsel %vm1123, %v1099, 0
      %v1248 = vsel %vm1172, %v1119, 0
      %1250 = vmatpush.msra.mxu0 0.0
      %1251 = vmatpush.msra.mxu0 0.0
      %1252 = vmatpush.msra.mxu0 0.0
      %1253 = vmatpush.msra.mxu0 0.0
      %1254 = vmatpush.msra.mxu0 0.0
      %1255 = vmatpush.msra.mxu0 0.0
      %1256 = vmatpush.msra.mxu0 0.0
      %1257 = vmatpush.msra.mxu0 0.0
      %1258 = vmatpush.msra.mxu0 0.0
      %1259 = vmatpush.msra.mxu0 0.0
      %1260 = vmatpush.msra.mxu0 0.0
      %1261 = vmatpush.msra.mxu0 0.0
      %1262 = vmatpush.msra.mxu0 0.0
      %1263 = vmatpush.msra.mxu0 0.0
      %1264 = vmatpush.msra.mxu0 %v1248
      %1265 = vmatpush.msra.mxu0 %v1118
      %1266 = vmatmul.f32.gmra.mxu0 %v1242
      %v1267 = vpop.f32.mrf.mxu0
      %v1268 = vadd.f32 %v1194, %v1267
      %1269 = vmatmul.f32.gmra.mxu0 %v1245
      %v1270 = vpop.f32.mrf.mxu0
      %v1271 = vadd.f32 %v1197, %v1270
      %1272 = vmatmul.f32.gmra.mxu0 %v1125
      %v1273 = vpop.f32.mrf.mxu0
      %v1274 = vadd.f32 %v1200, %v1273
      %1275 = vmatmul.f32.gmra.mxu0 %v1128
      %v1276 = vpop.f32.mrf.mxu0
      %v1277 = vadd.f32 %v1203, %v1276
      %1278 = vmatmul.f32.gmra.mxu0 %v1131
      %v1279 = vpop.f32.mrf.mxu0
      %v1280 = vadd.f32 %v1206, %v1279
      %1281 = vmatmul.f32.gmra.mxu0 %v1134
      %v1282 = vpop.f32.mrf.mxu0
      %v1283 = vadd.f32 %v1209, %v1282
      %1284 = vmatmul.f32.gmra.mxu0 %v1137
      %v1285 = vpop.f32.mrf.mxu0
      %v1286 = vadd.f32 %v1212, %v1285
      %1287 = vmatmul.f32.gmra.mxu0 %v1140
      %v1288 = vpop.f32.mrf.mxu0
      %v1289 = vadd.f32 %v1215, %v1288
      %1290 = vmatmul.f32.gmra.mxu0 %v1143
      %v1291 = vpop.f32.mrf.mxu0
      %v1292 = vadd.f32 %v1218, %v1291
      %1293 = vmatmul.f32.gmra.mxu0 %v1146
      %v1294 = vpop.f32.mrf.mxu0
      %v1295 = vadd.f32 %v1221, %v1294
      %1296 = vmatmul.f32.gmra.mxu0 %v1149
      %v1297 = vpop.f32.mrf.mxu0
      %v1298 = vadd.f32 %v1224, %v1297
      %1299 = vmatmul.f32.gmra.mxu0 %v1152
      %v1300 = vpop.f32.mrf.mxu0
      %v1301 = vadd.f32 %v1227, %v1300
      %1302 = vmatmul.f32.gmra.mxu0 %v1155
      %v1303 = vpop.f32.mrf.mxu0
      %v1304 = vadd.f32 %v1230, %v1303
      %1305 = vmatmul.f32.gmra.mxu0 %v1158
      %v1306 = vpop.f32.mrf.mxu0
      %v1307 = vadd.f32 %v1233, %v1306
      %1308 = vmatmul.f32.gmra.mxu0 %v1161
      %v1309 = vpop.f32.mrf.mxu0
      %v1310 = vadd.f32 %v1236, %v1309
      %1311 = vmatmul.f32.gmra.mxu0 %v1164
      %v1312 = vpop.f32.mrf.mxu0
      %v1313 = vadd.f32 %v1239, %v1312
      %1314 = vdwg.mxu0
      %s1315 = scalar_lea.vmem %s3, 32
      %v1316 = vld [vmem:[%s1315] sm:$0xff]
      %v1317 = vld [vmem:[%s1315 + $0x8] sm:$0xf]
      %v1319 = vsel %vm1123, %v1116, 0
      %v1322 = vsel %vm1123, %v1117, 0
      %v1325 = vsel %vm1172, %v1317, 0
      %1327 = vmatpush.msra.mxu0 0.0
      %1328 = vmatpush.msra.mxu0 0.0
      %1329 = vmatpush.msra.mxu0 0.0
      %1330 = vmatpush.msra.mxu0 0.0
      %1331 = vmatpush.msra.mxu0 0.0
      %1332 = vmatpush.msra.mxu0 0.0
      %1333 = vmatpush.msra.mxu0 0.0
      %1334 = vmatpush.msra.mxu0 0.0
      %1335 = vmatpush.msra.mxu0 0.0
      %1336 = vmatpush.msra.mxu0 0.0
      %1337 = vmatpush.msra.mxu0 0.0
      %1338 = vmatpush.msra.mxu0 0.0
      %1339 = vmatpush.msra.mxu0 0.0
      %1340 = vmatpush.msra.mxu0 0.0
      %1341 = vmatpush.msra.mxu0 %v1325
      %1342 = vmatpush.msra.mxu0 %v1316
      %1343 = vmatmul.f32.gmra.mxu0 %v1131
      %v1344 = vpop.f32.mrf.mxu0
      %v1345 = vadd.f32 0.0, %v1344
      %1346 = vmatmul.f32.gmra.mxu0 %v1134
      %v1347 = vpop.f32.mrf.mxu0
      %v1348 = vadd.f32 0.0, %v1347
      %1349 = vmatmul.f32.gmra.mxu0 %v1137
      %v1350 = vpop.f32.mrf.mxu0
      %v1351 = vadd.f32 0.0, %v1350
      %1352 = vmatmul.f32.gmra.mxu0 %v1140
      %v1353 = vpop.f32.mrf.mxu0
      %v1354 = vadd.f32 0.0, %v1353
      %1355 = vmatmul.f32.gmra.mxu0 %v1143
      %v1356 = vpop.f32.mrf.mxu0
      %v1357 = vadd.f32 0.0, %v1356
      %1358 = vmatmul.f32.gmra.mxu0 %v1146
      %v1359 = vpop.f32.mrf.mxu0
      %v1360 = vadd.f32 0.0, %v1359
      %1361 = vmatmul.f32.gmra.mxu0 %v1149
      %v1362 = vpop.f32.mrf.mxu0
      %v1363 = vadd.f32 0.0, %v1362
      %1364 = vmatmul.f32.gmra.mxu0 %v1152
      %v1365 = vpop.f32.mrf.mxu0
      %v1366 = vadd.f32 0.0, %v1365
      %1367 = vmatmul.f32.gmra.mxu0 %v1155
      %v1368 = vpop.f32.mrf.mxu0
      %v1369 = vadd.f32 0.0, %v1368
      %1370 = vmatmul.f32.gmra.mxu0 %v1158
      %v1371 = vpop.f32.mrf.mxu0
      %v1372 = vadd.f32 0.0, %v1371
      %1373 = vmatmul.f32.gmra.mxu0 %v1161
      %v1374 = vpop.f32.mrf.mxu0
      %v1375 = vadd.f32 0.0, %v1374
      %1376 = vmatmul.f32.gmra.mxu0 %v1164
      %v1377 = vpop.f32.mrf.mxu0
      %v1378 = vadd.f32 0.0, %v1377
      %1379 = vmatmul.f32.gmra.mxu0 %v1167
      %v1380 = vpop.f32.mrf.mxu0
      %v1381 = vadd.f32 0.0, %v1380
      %1382 = vmatmul.f32.gmra.mxu0 %v1170
      %v1383 = vpop.f32.mrf.mxu0
      %v1384 = vadd.f32 0.0, %v1383
      %1385 = vmatmul.f32.gmra.mxu0 %v1319
      %v1386 = vpop.f32.mrf.mxu0
      %v1387 = vadd.f32 0.0, %v1386
      %1388 = vmatmul.f32.gmra.mxu0 %v1322
      %v1389 = vpop.f32.mrf.mxu0
      %v1390 = vadd.f32 0.0, %v1389
      %1391 = vdwg.mxu0
      %v1392 = vadd.f32 %v1268, %v1345
      %v1393 = vadd.f32 %v1271, %v1348
      %v1394 = vadd.f32 %v1274, %v1351
      %v1395 = vadd.f32 %v1277, %v1354
      %v1396 = vadd.f32 %v1280, %v1357
      %v1397 = vadd.f32 %v1283, %v1360
      %v1398 = vadd.f32 %v1286, %v1363
      %v1399 = vadd.f32 %v1289, %v1366
      %v1400 = vadd.f32 %v1292, %v1369
      %v1401 = vadd.f32 %v1295, %v1372
      %v1402 = vadd.f32 %v1298, %v1375
      %v1403 = vadd.f32 %v1301, %v1378
      %v1404 = vadd.f32 %v1304, %v1381
      %v1405 = vadd.f32 %v1307, %v1384
      %v1406 = vadd.f32 %v1310, %v1387
      %v1407 = vadd.f32 %v1313, %v1390
      %v1408 = vadd.f32 %v1392, %v1393
      %v1409 = vadd.f32 %v1408, %v1394
      %v1410 = vadd.f32 %v1409, %v1395
      %v1411 = vadd.f32 %v1410, %v1396
      %v1412 = vadd.f32 %v1411, %v1397
      %v1413 = vadd.f32 %v1412, %v1398
      %v1414 = vadd.f32 %v1413, %v1399
      %v1415 = vadd.f32 %v1414, %v1400
      %v1416 = vadd.f32 %v1415, %v1401
      %v1417 = vadd.f32 %v1416, %v1402
      %v1418 = vadd.f32 %v1417, %v1403
      %v1419 = vadd.f32 %v1418, %v1404
      %v1420 = vadd.f32 %v1419, %v1405
      %v1421 = vadd.f32 %v1420, %v1406
      %v1422 = vadd.f32 %v1421, %v1407
      %v1423 = vrot.slane %v1422, 4
      %v1424 = vadd.f32 %v1422, %v1423
      %v1425 = vrot.slane %v1424, 2
      %v1426 = vadd.f32 %v1424, %v1425
      %v1427 = vrot.slane %v1426, 1
      %v1428 = vadd.f32 %v1426, %v1427
      %v1429 = vmul.f32 %v1392, %v1392
      %v1430 = vmul.f32 %v1393, %v1393
      %v1431 = vmul.f32 %v1394, %v1394
      %v1432 = vmul.f32 %v1395, %v1395
      %v1433 = vmul.f32 %v1396, %v1396
      %v1434 = vmul.f32 %v1397, %v1397
      %v1435 = vmul.f32 %v1398, %v1398
      %v1436 = vmul.f32 %v1399, %v1399
      %v1437 = vmul.f32 %v1400, %v1400
      %v1438 = vmul.f32 %v1401, %v1401
      %v1439 = vmul.f32 %v1402, %v1402
      %v1440 = vmul.f32 %v1403, %v1403
      %v1441 = vmul.f32 %v1404, %v1404
      %v1442 = vmul.f32 %v1405, %v1405
      %v1443 = vmul.f32 %v1406, %v1406
      %v1444 = vmul.f32 %v1407, %v1407
      %v1445 = vadd.f32 %v1429, %v1430
      %v1446 = vadd.f32 %v1445, %v1431
      %v1447 = vadd.f32 %v1446, %v1432
      %v1448 = vadd.f32 %v1447, %v1433
      %v1449 = vadd.f32 %v1448, %v1434
      %v1450 = vadd.f32 %v1449, %v1435
      %v1451 = vadd.f32 %v1450, %v1436
      %v1452 = vadd.f32 %v1451, %v1437
      %v1453 = vadd.f32 %v1452, %v1438
      %v1454 = vadd.f32 %v1453, %v1439
      %v1455 = vadd.f32 %v1454, %v1440
      %v1456 = vadd.f32 %v1455, %v1441
      %v1457 = vadd.f32 %v1456, %v1442
      %v1458 = vadd.f32 %v1457, %v1443
      %v1459 = vadd.f32 %v1458, %v1444
      %v1460 = vrot.slane %v1459, 4
      %v1461 = vadd.f32 %v1459, %v1460
      %v1462 = vrot.slane %v1461, 2
      %v1463 = vadd.f32 %v1461, %v1462
      %v1464 = vrot.slane %v1463, 1
      %v1465 = vadd.f32 %v1463, %v1464
      %v1466 = vsel %vm674, %v1428, %v1465
      %1467 = vst [vmem:[%s352] sm:$0x3] %v1466
      %1468 = vst [vmem:[%s343] sm:$0xff] %v1392
      %1469 = vst [vmem:[%s343 + $0x8] sm:$0xff] %v1393
      %1470 = vst [vmem:[%s343 + $0x10] sm:$0xff] %v1394
      %1471 = vst [vmem:[%s343 + $0x18] sm:$0xff] %v1395
      %1472 = vst [vmem:[%s343 + $0x20] sm:$0xff] %v1396
      %1473 = vst [vmem:[%s343 + $0x28] sm:$0xff] %v1397
      %1474 = vst [vmem:[%s343 + $0x30] sm:$0xff] %v1398
      %1475 = vst [vmem:[%s343 + $0x38] sm:$0xff] %v1399
      %1476 = vst [vmem:[%s343 + $0x40] sm:$0xff] %v1400
      %1477 = vst [vmem:[%s343 + $0x48] sm:$0xff] %v1401
      %1478 = vst [vmem:[%s343 + $0x50] sm:$0xff] %v1402
      %1479 = vst [vmem:[%s343 + $0x58] sm:$0xff] %v1403
      %1480 = vst [vmem:[%s343 + $0x60] sm:$0xff] %v1404
      %1481 = vst [vmem:[%s343 + $0x68] sm:$0xff] %v1405
      %1482 = vst [vmem:[%s343 + $0x70] sm:$0xff] %v1406
      %1483 = vst [vmem:[%s343 + $0x78] sm:$0xff] %v1407
      %s1484 = smul.u32 16, %s22
      %p1485 = scmp.lt.s32.totalorder %s21, 1
      %s1486 = scalar_select %p1485, %s21, 1
      %p1487 = scmp.lt.s32.totalorder %s1484, 31
      %s1488 = scalar_select %p1487, %s1484, 31
      %s1489 = smul.addr %s1486, 32
      %s1490 = sadd.s32 %s1488, %s1489
      %s1491 = smul.addr %s1490, 8
      %s1492 = scalar_lea.vmem %s4, %s1491
      %p1493 = scmp.lt.s32.totalorder %s21, 1
      %s1494 = scalar_select %p1493, %s21, 1
      %p1495 = scmp.lt.s32.totalorder %s22, 1
      %s1496 = scalar_select %p1495, %s22, 1
      %s1497 = smul.addr %s1494, 2
      %s1498 = sadd.s32 %s1496, %s1497
      %s1499 = smul.addr %s1498, 2
      %s1500 = scalar_lea.vmem %s5, %s1499
      // Predicated region
      $region37: #{unet_conv2_forward.3} parent=35 // pred_check
        %p1501 = pneg %p154
      $region38: #{unet_conv2_forward.3} parent=35 // pred_check_branch
        %1503 = sbr.rel (%p1501) target = $region40
      $region39: #{unet_conv2_forward.3} parent=35 // pred_region
        %s1504 = smul.u32 16, %s22
      $region40: #{unet_conv2_forward.3} parent=35 // pred_fallthru
        _
      // Predicated region
      $region41: #{unet_conv2_forward.3} parent=35 // pred_check
        %p1505 = pneg %p182
      $region42: #{unet_conv2_forward.3} parent=35 // pred_check_branch
        %1507 = sbr.rel (%p1505) target = $region44
      $region43: #{unet_conv2_forward.3} parent=35 // pred_region
        _
      $region44: #{unet_conv2_forward.3} parent=35 // pred_fallthru
        _
    $region36: #{unet_conv2_forward.3} parent=5 // pred_fallthru
      _
    %p1508 = scmp.le.s32.totalorder 2, %s12
    // Predicated region
    $region45: #{unet_conv2_forward.3} parent=5 // pred_check
      %p1509 = pneg %p1508
    $region46: #{unet_conv2_forward.3} parent=5 // pred_check_branch
      %1511 = sbr.rel (%p1509) target = $region48
    $region47: #{unet_conv2_forward.3} parent=5 // pred_region
      %s1512 = ssub.s32 %s12, 2
      // Predicated region
      $region49: #{unet_conv2_forward.3} parent=47 // pred_check
        %p1513 = pneg %p160
      $region50: #{unet_conv2_forward.3} parent=47 // pred_check_branch
        %1515 = sbr.rel (%p1513) target = $region52
      $region51: #{unet_conv2_forward.3} parent=47 // pred_region
        %s1516 = smul.u32 16, %s24
        %p1517 = scmp.lt.s32.totalorder %s23, 1
        %s1518 = scalar_select %p1517, %s23, 1
        %p1519 = scmp.lt.s32.totalorder %s1516, 31
        %s1520 = scalar_select %p1519, %s1516, 31
        %s1521 = smul.addr %s1518, 32
        %s1522 = sadd.s32 %s1520, %s1521
        %s1523 = smul.addr %s1522, 8
        %s1524 = scalar_lea.vmem %s4, %s1523
      $region52: #{unet_conv2_forward.3} parent=47 // pred_fallthru
        _
      // Predicated region
      $region53: #{unet_conv2_forward.3} parent=47 // pred_check
        %p1525 = pneg %p188
      $region54: #{unet_conv2_forward.3} parent=47 // pred_check_branch
        %1527 = sbr.rel (%p1525) target = $region56
      $region55: #{unet_conv2_forward.3} parent=47 // pred_region
        %p1528 = scmp.lt.s32.totalorder %s23, 1
        %s1529 = scalar_select %p1528, %s23, 1
        %p1530 = scmp.lt.s32.totalorder %s24, 1
        %s1531 = scalar_select %p1530, %s24, 1
        %s1532 = smul.addr %s1529, 2
        %s1533 = sadd.s32 %s1531, %s1532
        %s1534 = smul.addr %s1533, 2
        %s1535 = scalar_lea.vmem %s5, %s1534
      $region56: #{unet_conv2_forward.3} parent=47 // pred_fallthru
        _
    $region48: #{unet_conv2_forward.3} parent=5 // pred_fallthru
      _
  $region6: #{unet_conv2_forward.3} parent=0 // loop_footer
    %s16 = sadd.s32 1, %s12
  $region7: #{unet_conv2_forward.3} parent=0 // loop_footer_branch
    %11 = sbr.rel target = $region3
  $region8: #{unet_conv2_forward.3} parent=0 // loop_exit
    _

// kernel: unet_conv2_forward.4
$region0: #{unet_conv2_forward.4}
  #allocation0 [shape = 'u32[]', space=smem, size = 0x4, offset = 0x4, fixed_abs, tag = 'smem constant byte address 0x4 - core index']
  #allocation1 [shape = 'u32[72,128]{1,0:T(1,128)}', space=vmem, size = 0x9000, scoped, tag = 'internal scratch']
  %s0 = inlined_call_operand.vmem [shape: f32[2,256,128], index: 0, kind: input, shape index: {}]
  %s1 = inlined_call_operand.vmem [shape: f32[2,2,16,128], index: 1, kind: input, shape index: {}]
  %s2 = inlined_call_operand.vmem [shape: f32[2,2,16,128], index: 2, kind: input, shape index: {}]
  %s3 = inlined_call_operand.vmem [shape: f32[1,128], index: 3, kind: input, shape index: {}]
  %s4 = inlined_call_operand.vmem [shape: f32[1,128], index: 4, kind: input, shape index: {}]
  %s5 = inlined_call_operand.vmem [shape: f32[3,384,128], index: 5, kind: input, shape index: {}]
  %s6 = inlined_call_operand.vmem [shape: f32[2,256,128], index: 6, kind: output, shape index: {0}]
  %s7 = inlined_call_operand.vmem [shape: f32[2,2,2,128], index: 7, kind: output, shape index: {1}]
  %8 = xla_tuple %s6, %s7
  %s9 = sld [smem:[#allocation0]]
  $region65: #{unet_conv2_forward.4} parent=0
    _
  %s11 = ssub.s32 1, %s9
  %s12 = scalar_select 0, %s11, %s9
  loop: start=0, step=1, limit=6
  $region2: #{unet_conv2_forward.4} parent=0 // loop_pre_header
    _
  $region3: #{unet_conv2_forward.4} parent=0 // loop_header
    %s14 = sphi 0, %s18
    %p15 = scmp.ge.s32.totalorder %s14, 6
    %s21 = sphi 0, %s33
    %s22 = sphi 0, %s29
    %s23 = sphi 0, %s21
    %s24 = sphi 0, %s22
    %s25 = sphi 0, %s23
    %s26 = sphi 0, %s24
    %s38 = sphi 0, %s40
    %s41 = sphi 0, %s38
    %s42 = sphi 0, %s41
    %s58 = sphi 0, %s42
    %s66 = sphi 0, %s68
    %s69 = sphi 0, %s66
    %s70 = sphi 0, %s69
    %s86 = sphi 0, %s70
    %s94 = sphi 0, %s96
    %s97 = sphi 0, %s94
    %s98 = sphi 0, %s97
    %s114 = sphi 0, %s98
    %s118 = sphi 0, %s118
    %s120 = sphi 0, %s118
    %s121 = sphi 0, %s120
    %s135 = sphi 0, %s121
    %s139 = sphi 0, %s139
    %s141 = sphi 0, %s139
    %s142 = sphi 0, %s141
    %s156 = sphi 0, %s142
    %s160 = sphi 0, %s160
    %s162 = sphi 0, %s160
    %s163 = sphi 0, %s162
    %s177 = sphi 0, %s163
    %s185 = sphi 0, %s187
    %s188 = sphi 0, %s185
    %s189 = sphi 0, %s188
    %s205 = sphi 0, %s189
    %s213 = sphi 0, %s215
    %s216 = sphi 0, %s213
    %s217 = sphi 0, %s216
    %s233 = sphi 0, %s217
  $region4: #{unet_conv2_forward.4} parent=0 // loop_header_branch
    %17 = sbr.rel (%p15) target = $region8
  $region5: #{unet_conv2_forward.4} parent=0 // loop_body
    %s19 = ssub.s32 %s14, 1
    %s20 = ssub.s32 %s14, 2
    %s27 = sadd.s32 1, %s22
    %p28 = scmp.ge.s32.totalorder %s27, 2
    %s29 = scalar_select %p28, 0, %s27
    %s30 = sadd.s32 1, %s21
    %s31 = scalar_select %p28, %s30, %s21
    %p32 = scmp.ge.s32.totalorder %s31, 2
    %s33 = scalar_select %p32, 0, %s31
    %s34 = ssub.s32 %s21, %s33
    %s35 = ssub.s32 %s22, %s29
    %s36 = sor.u32 %s34, %s35
    %p37 = scmp.eq.s32.totalorder %s36, 0
    %s39 = sadd.s32 %s38, 1
    %s40 = scalar_select %p37, %s38, %s39
    %p43 = pneg %p37
    %p44 = scmp.eq.s32.totalorder %s14, 3
    %p45 = por %p43, %p44
    %p46 = scmp.ne.s32.totalorder %s38, %s41
    %p47 = scmp.eq.s32.totalorder %s14, 0
    %p48 = por %p46, %p47
    %p49 = scmp.ne.s32.totalorder %s38, %s41
    %p50 = scmp.eq.s32.totalorder %s19, 3
    %p51 = por %p49, %p50
    %p52 = scmp.ne.s32.totalorder %s41, %s42
    %p53 = scmp.eq.s32.totalorder %s19, 0
    %p54 = por %p52, %p53
    %p55 = scmp.ne.s32.totalorder %s41, %s42
    %p56 = scmp.eq.s32.totalorder %s20, 3
    %p57 = por %p55, %p56
    %p59 = scmp.ne.s32.totalorder %s42, %s58
    %p60 = scmp.eq.s32.totalorder %s20, 0
    %p61 = por %p59, %p60
    %s62 = ssub.s32 %s21, %s33
    %s63 = ssub.s32 %s22, %s29
    %s64 = sor.u32 %s62, %s63
    %p65 = scmp.eq.s32.totalorder %s64, 0
    %s67 = sadd.s32 %s66, 1
    %s68 = scalar_select %p65, %s66, %s67
    %p71 = pneg %p65
    %p72 = scmp.eq.s32.totalorder %s14, 3
    %p73 = por %p71, %p72
    %p74 = scmp.ne.s32.totalorder %s66, %s69
    %p75 = scmp.eq.s32.totalorder %s14, 0
    %p76 = por %p74, %p75
    %p77 = scmp.ne.s32.totalorder %s66, %s69
    %p78 = scmp.eq.s32.totalorder %s19, 3
    %p79 = por %p77, %p78
    %p80 = scmp.ne.s32.totalorder %s69, %s70
    %p81 = scmp.eq.s32.totalorder %s19, 0
    %p82 = por %p80, %p81
    %p83 = scmp.ne.s32.totalorder %s69, %s70
    %p84 = scmp.eq.s32.totalorder %s20, 3
    %p85 = por %p83, %p84
    %p87 = scmp.ne.s32.totalorder %s70, %s86
    %p88 = scmp.eq.s32.totalorder %s20, 0
    %p89 = por %p87, %p88
    %s90 = ssub.s32 %s21, %s33
    %s91 = ssub.s32 %s22, %s29
    %s92 = sor.u32 %s90, %s91
    %p93 = scmp.eq.s32.totalorder %s92, 0
    %s95 = sadd.s32 %s94, 1
    %s96 = scalar_select %p93, %s94, %s95
    %p99 = pneg %p93
    %p100 = scmp.eq.s32.totalorder %s14, 3
    %p101 = por %p99, %p100
    %p102 = scmp.ne.s32.totalorder %s94, %s97
    %p103 = scmp.eq.s32.totalorder %s14, 0
    %p104 = por %p102, %p103
    %p105 = scmp.ne.s32.totalorder %s94, %s97
    %p106 = scmp.eq.s32.totalorder %s19, 3
    %p107 = por %p105, %p106
    %p108 = scmp.ne.s32.totalorder %s97, %s98
    %p109 = scmp.eq.s32.totalorder %s19, 0
    %p110 = por %p108, %p109
    %p111 = scmp.ne.s32.totalorder %s97, %s98
    %p112 = scmp.eq.s32.totalorder %s20, 3
    %p113 = por %p111, %p112
    %p115 = scmp.ne.s32.totalorder %s98, %s114
    %p116 = scmp.eq.s32.totalorder %s20, 0
    %p117 = por %p115, %p116
    %s119 = sadd.s32 %s118, 1
    %p122 = scmp.eq.s32.totalorder %s14, 3
    %p123 = scmp.ne.s32.totalorder %s118, %s120
    %p124 = scmp.eq.s32.totalorder %s14, 0
    %p125 = por %p123, %p124
    %p126 = scmp.ne.s32.totalorder %s118, %s120
    %p127 = scmp.eq.s32.totalorder %s19, 3
    %p128 = por %p126, %p127
    %p129 = scmp.ne.s32.totalorder %s120, %s121
    %p130 = scmp.eq.s32.totalorder %s19, 0
    %p131 = por %p129, %p130
    %p132 = scmp.ne.s32.totalorder %s120, %s121
    %p133 = scmp.eq.s32.totalorder %s20, 3
    %p134 = por %p132, %p133
    %p136 = scmp.ne.s32.totalorder %s121, %s135
    %p137 = scmp.eq.s32.totalorder %s20, 0
    %p138 = por %p136, %p137
    %s140 = sadd.s32 %s139, 1
    %p143 = scmp.eq.s32.totalorder %s14, 3
    %p144 = scmp.ne.s32.totalorder %s139, %s141
    %p145 = scmp.eq.s32.totalorder %s14, 0
    %p146 = por %p144, %p145
    %p147 = scmp.ne.s32.totalorder %s139, %s141
    %p148 = scmp.eq.s32.totalorder %s19, 3
    %p149 = por %p147, %p148
    %p150 = scmp.ne.s32.totalorder %s141, %s142
    %p151 = scmp.eq.s32.totalorder %s19, 0
    %p152 = por %p150, %p151
    %p153 = scmp.ne.s32.totalorder %s141, %s142
    %p154 = scmp.eq.s32.totalorder %s20, 3
    %p155 = por %p153, %p154
    %p157 = scmp.ne.s32.totalorder %s142, %s156
    %p158 = scmp.eq.s32.totalorder %s20, 0
    %p159 = por %p157, %p158
    %s161 = sadd.s32 %s160, 1
    %p164 = scmp.eq.s32.totalorder %s14, 3
    %p165 = scmp.ne.s32.totalorder %s160, %s162
    %p166 = scmp.eq.s32.totalorder %s14, 0
    %p167 = por %p165, %p166
    %p168 = scmp.ne.s32.totalorder %s160, %s162
    %p169 = scmp.eq.s32.totalorder %s19, 3
    %p170 = por %p168, %p169
    %p171 = scmp.ne.s32.totalorder %s162, %s163
    %p172 = scmp.eq.s32.totalorder %s19, 0
    %p173 = por %p171, %p172
    %p174 = scmp.ne.s32.totalorder %s162, %s163
    %p175 = scmp.eq.s32.totalorder %s20, 3
    %p176 = por %p174, %p175
    %p178 = scmp.ne.s32.totalorder %s163, %s177
    %p179 = scmp.eq.s32.totalorder %s20, 0
    %p180 = por %p178, %p179
    %s181 = ssub.s32 %s21, %s33
    %s182 = ssub.s32 %s22, %s29
    %s183 = sor.u32 %s181, %s182
    %p184 = scmp.eq.s32.totalorder %s183, 0
    %s186 = sadd.s32 %s185, 1
    %s187 = scalar_select %p184, %s185, %s186
    %p190 = pneg %p184
    %p191 = scmp.eq.s32.totalorder %s14, 3
    %p192 = por %p190, %p191
    %p193 = scmp.ne.s32.totalorder %s185, %s188
    %p194 = scmp.eq.s32.totalorder %s14, 0
    %p195 = por %p193, %p194
    %p196 = scmp.ne.s32.totalorder %s185, %s188
    %p197 = scmp.eq.s32.totalorder %s19, 3
    %p198 = por %p196, %p197
    %p199 = scmp.ne.s32.totalorder %s188, %s189
    %p200 = scmp.eq.s32.totalorder %s19, 0
    %p201 = por %p199, %p200
    %p202 = scmp.ne.s32.totalorder %s188, %s189
    %p203 = scmp.eq.s32.totalorder %s20, 3
    %p204 = por %p202, %p203
    %p206 = scmp.ne.s32.totalorder %s189, %s205
    %p207 = scmp.eq.s32.totalorder %s20, 0
    %p208 = por %p206, %p207
    %s209 = ssub.s32 %s21, %s33
    %s210 = ssub.s32 %s22, %s29
    %s211 = sor.u32 %s209, %s210
    %p212 = scmp.eq.s32.totalorder %s211, 0
    %s214 = sadd.s32 %s213, 1
    %s215 = scalar_select %p212, %s213, %s214
    %p218 = pneg %p212
    %p219 = scmp.eq.s32.totalorder %s14, 3
    %p220 = por %p218, %p219
    %p221 = scmp.ne.s32.totalorder %s213, %s216
    %p222 = scmp.eq.s32.totalorder %s14, 0
    %p223 = por %p221, %p222
    %p224 = scmp.ne.s32.totalorder %s213, %s216
    %p225 = scmp.eq.s32.totalorder %s19, 3
    %p226 = por %p224, %p225
    %p227 = scmp.ne.s32.totalorder %s216, %s217
    %p228 = scmp.eq.s32.totalorder %s19, 0
    %p229 = por %p227, %p228
    %p230 = scmp.ne.s32.totalorder %s216, %s217
    %p231 = scmp.eq.s32.totalorder %s20, 3
    %p232 = por %p230, %p231
    %p234 = scmp.ne.s32.totalorder %s217, %s233
    %p235 = scmp.eq.s32.totalorder %s20, 0
    %p236 = por %p234, %p235
    %p237 = scmp.le.s32.totalorder 1, %s14
    %p238 = scmp.lt.s32.totalorder %s14, 5
    %p239 = pnand %p237, %p238
    %p240 = pneg %p239
    // Predicated region
    $region9: #{unet_conv2_forward.4} parent=5 // pred_check
      _
    $region10: #{unet_conv2_forward.4} parent=5 // pred_check_branch
      %242 = sbr.rel (%p239) target = $region12
    $region11: #{unet_conv2_forward.4} parent=5 // pred_region
      %s243 = ssub.s32 %s14, 1
      // Predicated region
      $region13: #{unet_conv2_forward.4} parent=11 // pred_check
        %p244 = pneg %p131
      $region14: #{unet_conv2_forward.4} parent=11 // pred_check_branch
        %246 = sbr.rel (%p244) target = $region16
      $region15: #{unet_conv2_forward.4} parent=11 // pred_region
        _
      $region16: #{unet_conv2_forward.4} parent=11 // pred_fallthru
        _
      // Predicated region
      $region17: #{unet_conv2_forward.4} parent=11 // pred_check
        %p247 = pneg %p152
      $region18: #{unet_conv2_forward.4} parent=11 // pred_check_branch
        %249 = sbr.rel (%p247) target = $region20
      $region19: #{unet_conv2_forward.4} parent=11 // pred_region
        _
      $region20: #{unet_conv2_forward.4} parent=11 // pred_fallthru
        _
      // Predicated region
      $region21: #{unet_conv2_forward.4} parent=11 // pred_check
        %p250 = pneg %p173
      $region22: #{unet_conv2_forward.4} parent=11 // pred_check_branch
        %252 = sbr.rel (%p250) target = $region24
      $region23: #{unet_conv2_forward.4} parent=11 // pred_region
        _
      $region24: #{unet_conv2_forward.4} parent=11 // pred_fallthru
        _
    $region12: #{unet_conv2_forward.4} parent=5 // pred_fallthru
      _
    %p253 = scmp.lt.s32.totalorder %s14, 4
    // Predicated region
    $region25: #{unet_conv2_forward.4} parent=5 // pred_check
      %p254 = pneg %p253
    $region26: #{unet_conv2_forward.4} parent=5 // pred_check_branch
      %256 = sbr.rel (%p254) target = $region28
    $region27: #{unet_conv2_forward.4} parent=5 // pred_region
      // Predicated region
      $region29: #{unet_conv2_forward.4} parent=27 // pred_check
        %p257 = pneg %p48
      $region30: #{unet_conv2_forward.4} parent=27 // pred_check_branch
        %259 = sbr.rel (%p257) target = $region32
      $region31: #{unet_conv2_forward.4} parent=27 // pred_region
        %s260 = smul.u32 16, %s22
        %p261 = scmp.lt.s32.totalorder %s21, 1
        %s262 = scalar_select %p261, %s21, 1
        %p263 = scmp.lt.s32.totalorder %s260, 31
        %s264 = scalar_select %p263, %s260, 31
        %s265 = smul.addr %s262, 32
        %s266 = sadd.s32 %s264, %s265
        %s267 = smul.addr %s266, 8
        %s268 = scalar_lea.vmem %s0, %s267
        %s269 = smul.u32 16, %s22
      $region32: #{unet_conv2_forward.4} parent=27 // pred_fallthru
        _
      // Predicated region
      $region33: #{unet_conv2_forward.4} parent=27 // pred_check
        %p270 = pneg %p76
      $region34: #{unet_conv2_forward.4} parent=27 // pred_check_branch
        %272 = sbr.rel (%p270) target = $region36
      $region35: #{unet_conv2_forward.4} parent=27 // pred_region
        %p273 = scmp.lt.s32.totalorder %s21, 1
        %s274 = scalar_select %p273, %s21, 1
        %p275 = scmp.lt.s32.totalorder %s22, 1
        %s276 = scalar_select %p275, %s22, 1
        %s277 = smul.addr %s276, 2
        %s278 = smul.addr %s274, 4
        %s279 = sadd.s32 %s277, %s278
        %s280 = smul.addr %s279, 8
        %s281 = scalar_lea.vmem %s1, %s280
      $region36: #{unet_conv2_forward.4} parent=27 // pred_fallthru
        _
      // Predicated region
      $region37: #{unet_conv2_forward.4} parent=27 // pred_check
        %p282 = pneg %p104
      $region38: #{unet_conv2_forward.4} parent=27 // pred_check_branch
        %284 = sbr.rel (%p282) target = $region40
      $region39: #{unet_conv2_forward.4} parent=27 // pred_region
        %p285 = scmp.lt.s32.totalorder %s21, 1
        %s286 = scalar_select %p285, %s21, 1
        %p287 = scmp.lt.s32.totalorder %s22, 1
        %s288 = scalar_select %p287, %s22, 1
        %s289 = smul.addr %s288, 2
        %s290 = smul.addr %s286, 4
        %s291 = sadd.s32 %s289, %s290
        %s292 = smul.addr %s291, 8
        %s293 = scalar_lea.vmem %s2, %s292
      $region40: #{unet_conv2_forward.4} parent=27 // pred_fallthru
        _
    $region28: #{unet_conv2_forward.4} parent=5 // pred_fallthru
      _
    %p294 = scmp.le.s32.totalorder 1, %s14
    %p295 = scmp.lt.s32.totalorder %s14, 5
    %p296 = pnand %p294, %p295
    %p297 = pneg %p296
    // Predicated region
    $region41: #{unet_conv2_forward.4} parent=5 // pred_check
      _
    $region42: #{unet_conv2_forward.4} parent=5 // pred_check_branch
      %299 = sbr.rel (%p296) target = $region44
    $region43: #{unet_conv2_forward.4} parent=5 // pred_region
      %s300 = ssub.s32 %s14, 1
      %s301 = smul.u32 16, %s24
      %p302 = scmp.lt.s32.totalorder %s23, 1
      %s303 = scalar_select %p302, %s23, 1
      %p304 = scmp.lt.s32.totalorder %s301, 31
      %s305 = scalar_select %p304, %s301, 31
      %s306 = smul.addr %s303, 32
      %s307 = sadd.s32 %s305, %s306
      %s308 = smul.addr %s307, 8
      %s309 = scalar_lea.vmem %s0, %s308
      %p310 = pneg %p54
      %p311 = pneg %p51
      %p312 = scmp.lt.s32.totalorder %s23, 1
      %s313 = scalar_select %p312, %s23, 1
      %p314 = scmp.lt.s32.totalorder %s24, 1
      %s315 = scalar_select %p314, %s24, 1
      %s316 = smul.addr %s315, 2
      %s317 = smul.addr %s313, 4
      %s318 = sadd.s32 %s316, %s317
      %s319 = smul.addr %s318, 8
      %s320 = scalar_lea.vmem %s1, %s319
      %p321 = pneg %p82
      %p322 = pneg %p79
      %p323 = scmp.lt.s32.totalorder %s23, 1
      %s324 = scalar_select %p323, %s23, 1
      %p325 = scmp.lt.s32.totalorder %s24, 1
      %s326 = scalar_select %p325, %s24, 1
      %s327 = smul.addr %s326, 2
      %s328 = smul.addr %s324, 4
      %s329 = sadd.s32 %s327, %s328
      %s330 = smul.addr %s329, 8
      %s331 = scalar_lea.vmem %s2, %s330
      %p332 = pneg %p110
      %p333 = pneg %p107
      %p334 = pneg %p131
      %p335 = pneg %p128
      %p336 = pneg %p152
      %p337 = pneg %p149
      %p338 = pneg %p173
      %p339 = pneg %p170
      %p340 = pneg %p201
      %p341 = pneg %p198
      %s342 = smul.u32 16, %s24
      %p343 = scmp.lt.s32.totalorder %s23, 1
      %s344 = scalar_select %p343, %s23, 1
      %p345 = scmp.lt.s32.totalorder %s342, 31
      %s346 = scalar_select %p345, %s342, 31
      %s347 = smul.addr %s344, 32
      %s348 = sadd.s32 %s346, %s347
      %s349 = smul.addr %s348, 8
      %s350 = scalar_lea.vmem %s6, %s349
      %p351 = pneg %p229
      %p352 = pneg %p226
      %p353 = scmp.lt.s32.totalorder %s23, 1
      %s354 = scalar_select %p353, %s23, 1
      %p355 = scmp.lt.s32.totalorder %s24, 1
      %s356 = scalar_select %p355, %s24, 1
      %s357 = smul.addr %s354, 2
      %s358 = sadd.s32 %s356, %s357
      %s359 = smul.addr %s358, 2
      %s360 = scalar_lea.vmem %s7, %s359
      %s361 = smul.u32 16, %s24
      %p362 = scmp.lt.s32.totalorder %s23, 1
      %s363 = scalar_select %p362, %s23, 1
      %p364 = scmp.lt.s32.totalorder %s361, 31
      %s365 = scalar_select %p364, %s361, 31
      %s366 = smul.addr %s363, 32
      %s367 = sadd.s32 %s365, %s366
      %s368 = smul.addr %s367, 8
      %s369 = scalar_lea.vmem %s0, %s368
      %s370 = smul.u32 16, %s24
      %p371 = scmp.lt.s32.totalorder %s23, 1
      %s372 = scalar_select %p371, %s23, 1
      %p373 = scmp.lt.s32.totalorder %s24, 1
      %s374 = scalar_select %p373, %s24, 1
      %s375 = smul.addr %s374, 2
      %s376 = smul.addr %s372, 4
      %s377 = sadd.s32 %s375, %s376
      %s378 = smul.addr %s377, 8
      %s379 = scalar_lea.vmem %s1, %s378
      %p380 = scmp.lt.s32.totalorder %s23, 1
      %s381 = scalar_select %p380, %s23, 1
      %p382 = scmp.lt.s32.totalorder %s24, 1
      %s383 = scalar_select %p382, %s24, 1
      %s384 = smul.addr %s383, 2
      %s385 = smul.addr %s381, 4
      %s386 = sadd.s32 %s384, %s385
      %s387 = smul.addr %s386, 8
      %s388 = scalar_lea.vmem %s2, %s387
      %s389 = smul.u32 16, %s24
      %p390 = scmp.lt.s32.totalorder %s23, 1
      %s391 = scalar_select %p390, %s23, 1
      %p392 = scmp.lt.s32.totalorder %s389, 31
      %s393 = scalar_select %p392, %s389, 31
      %s394 = smul.addr %s391, 32
      %s395 = sadd.s32 %s393, %s394
      %s396 = smul.addr %s395, 8
      %s397 = scalar_lea.vmem %s6, %s396
      %s398 = smul.u32 16, %s24
      %p399 = scmp.lt.s32.totalorder %s23, 1
      %s400 = scalar_select %p399, %s23, 1
      %p401 = scmp.lt.s32.totalorder %s24, 1
      %s402 = scalar_select %p401, %s24, 1
      %s403 = smul.addr %s400, 2
      %s404 = sadd.s32 %s402, %s403
      %s405 = smul.addr %s404, 2
      %s406 = scalar_lea.vmem %s7, %s405
      %v407 = vld [vmem:[%s3] sm:$0x1]
      %v408 = vld [vmem:[%s4] sm:$0x1]
      %v409 = vld [vmem:[%s369] sm:$0xff]
      %v410 = vld [vmem:[%s369 + $0x8] sm:$0xff]
      %v411 = vld [vmem:[%s369 + $0x10] sm:$0xff]
      %v412 = vld [vmem:[%s369 + $0x18] sm:$0xff]
      %v413 = vld [vmem:[%s369 + $0x20] sm:$0xff]
      %v414 = vld [vmem:[%s369 + $0x28] sm:$0xff]
      %v415 = vld [vmem:[%s369 + $0x30] sm:$0xff]
      %v416 = vld [vmem:[%s369 + $0x38] sm:$0xff]
      %v417 = vld [vmem:[%s369 + $0x40] sm:$0xff]
      %v418 = vld [vmem:[%s369 + $0x48] sm:$0xff]
      %v419 = vld [vmem:[%s369 + $0x50] sm:$0xff]
      %v420 = vld [vmem:[%s369 + $0x58] sm:$0xff]
      %v421 = vld [vmem:[%s369 + $0x60] sm:$0xff]
      %v422 = vld [vmem:[%s369 + $0x68] sm:$0xff]
      %v423 = vld [vmem:[%s369 + $0x70] sm:$0xff]
      %v424 = vld [vmem:[%s369 + $0x78] sm:$0xff]
      %v426 = vperm.slane %v407, 0
      %v428 = vmul.f32 %v409, %v426
      %v429 = vmul.f32 %v410, %v426
      %v430 = vmul.f32 %v411, %v426
      %v431 = vmul.f32 %v412, %v426
      %v432 = vmul.f32 %v413, %v426
      %v433 = vmul.f32 %v414, %v426
      %v434 = vmul.f32 %v415, %v426
      %v435 = vmul.f32 %v416, %v426
      %v436 = vmul.f32 %v417, %v426
      %v437 = vmul.f32 %v418, %v426
      %v438 = vmul.f32 %v419, %v426
      %v439 = vmul.f32 %v420, %v426
      %v440 = vmul.f32 %v421, %v426
      %v441 = vmul.f32 %v422, %v426
      %v442 = vmul.f32 %v423, %v426
      %v443 = vmul.f32 %v424, %v426
      %v445 = vperm.slane %v408, 0
      %v447 = vadd.f32 %v428, %v445
      %v448 = vadd.f32 %v429, %v445
      %v449 = vadd.f32 %v430, %v445
      %v450 = vadd.f32 %v431, %v445
      %v451 = vadd.f32 %v432, %v445
      %v452 = vadd.f32 %v433, %v445
      %v453 = vadd.f32 %v434, %v445
      %v454 = vadd.f32 %v435, %v445
      %v455 = vadd.f32 %v436, %v445
      %v456 = vadd.f32 %v437, %v445
      %v457 = vadd.f32 %v438, %v445
      %v458 = vadd.f32 %v439, %v445
      %v459 = vadd.f32 %v440, %v445
      %v460 = vadd.f32 %v441, %v445
      %v461 = vadd.f32 %v442, %v445
      %v462 = vadd.f32 %v443, %v445
      %v463 = vmax.f32 %v447, 0.0
      %v464 = vmax.f32 %v448, 0.0
      %v465 = vmax.f32 %v449, 0.0
      %v466 = vmax.f32 %v450, 0.0
      %v467 = vmax.f32 %v451, 0.0
      %v468 = vmax.f32 %v452, 0.0
      %v469 = vmax.f32 %v453, 0.0
      %v470 = vmax.f32 %v454, 0.0
      %v471 = vmax.f32 %v455, 0.0
      %v472 = vmax.f32 %v456, 0.0
      %v473 = vmax.f32 %v457, 0.0
      %v474 = vmax.f32 %v458, 0.0
      %v475 = vmax.f32 %v459, 0.0
      %v476 = vmax.f32 %v460, 0.0
      %v477 = vmax.f32 %v461, 0.0
      %v478 = vmax.f32 %v462, 0.0
      %v479 = vld [vmem:[%s379] sm:$0xff]
      %v480 = vld [vmem:[%s379 + $0x8] sm:$0xff]
      %v481 = vmul.f32 %v479, %v426
      %v482 = vmul.f32 %v480, %v426
      %v483 = vadd.f32 %v481, %v445
      %v484 = vadd.f32 %v482, %v445
      %v485 = vmax.f32 %v483, 0.0
      %v486 = vmax.f32 %v484, 0.0
      %v487 = vld [vmem:[%s388] sm:$0xff]
      %v488 = vld [vmem:[%s388 + $0x8] sm:$0xff]
      %v489 = vmul.f32 %v487, %v426
      %v490 = vmul.f32 %v488, %v426
      %v491 = vadd.f32 %v489, %v445
      %v492 = vadd.f32 %v490, %v445
      %v493 = vmax.f32 %v491, 0.0
      %v494 = vmax.f32 %v492, 0.0
      %p495 = scmp.eq.s32.totalorder %s24, 0
      %s496 = scalar_select %p495, 1, 0
      %v497 = vstv %s496
      %vm498 = vcmp.eq.s32.totalorder %v497, 1
      %v499 = vsel %vm498, 0.0, %v485
      %v500 = vsel %vm498, 0.0, %v486
      %p501 = scmp.eq.s32.totalorder %s24, 1
      %s502 = scalar_select %p501, 1, 0
      %v503 = vstv %s502
      %vm504 = vcmp.eq.s32.totalorder %v503, 1
      %v505 = vsel %vm504, 0.0, %v493
      %v506 = vsel %vm504, 0.0, %v494
      %v507 = vlaneseq
      %v508 = vshrl.u32 %v507, 7
      %v509 = vadd.s32 %v508, 8
      %v510 = vadd.s32 %v508, 16
      %v511 = vadd.s32 %v508, 24
      %v512 = vadd.s32 %v508, 32
      %v513 = vadd.s32 %v508, 40
      %v514 = vadd.s32 %v508, 48
      %v515 = vadd.s32 %v508, 56
      %v516 = vadd.s32 %v508, 64
      %v517 = vadd.s32 %v508, 72
      %v518 = vadd.s32 %v508, 80
      %v519 = vadd.s32 %v508, 88
      %v520 = vadd.s32 %v508, 96
      %v521 = vadd.s32 %v508, 104
      %v522 = vadd.s32 %v508, 112
      %v523 = vadd.s32 %v508, 120
      %v524 = vadd.s32 %v508, 128
      %v525 = vadd.s32 %v508, 136
      %v526 = vadd.s32 %v508, 144
      %v527 = vadd.s32 %v508, 152
      %vm528 = vcmp.lt.s32.totalorder %v508, 0
      %v529 = vsub.s32 0, %v508
      %v530 = vsel %vm528, %v529, %v508
      %v531 = vshrl.u32 %v530, 4
      %v532 = vand.u32 %v530, 15
      %v533 = vsub.s32 0, %v532
      %v534 = vsel %vm528, %v533, %v532
      %vm535 = vcmp.lt.s32.totalorder %v509, 0
      %v536 = vsub.s32 0, %v509
      %v537 = vsel %vm535, %v536, %v509
      %v538 = vshrl.u32 %v537, 4
      %v539 = vand.u32 %v537, 15
      %v540 = vsub.s32 0, %v539
      %v541 = vsel %vm535, %v540, %v539
      %vm542 = vcmp.lt.s32.totalorder %v510, 0
      %v543 = vsub.s32 0, %v510
      %v544 = vsel %vm542, %v543, %v510
      %v545 = vshrl.u32 %v544, 4
      %v546 = vand.u32 %v544, 15
      %v547 = vsub.s32 0, %v546
      %v548 = vsel %vm542, %v547, %v546
      %vm549 = vcmp.lt.s32.totalorder %v511, 0
      %v550 = vsub.s32 0, %v511
      %v551 = vsel %vm549, %v550, %v511
      %v552 = vshrl.u32 %v551, 4
      %v553 = vand.u32 %v551, 15
      %v554 = vsub.s32 0, %v553
      %v555 = vsel %vm549, %v554, %v553
      %vm556 = vcmp.lt.s32.totalorder %v512, 0
      %v557 = vsub.s32 0, %v512
      %v558 = vsel %vm556, %v557, %v512
      %v559 = vshrl.u32 %v558, 4
      %v560 = vand.u32 %v558, 15
      %v561 = vsub.s32 0, %v560
      %v562 = vsel %vm556, %v561, %v560
      %vm563 = vcmp.lt.s32.totalorder %v513, 0
      %v564 = vsub.s32 0, %v513
      %v565 = vsel %vm563, %v564, %v513
      %v566 = vshrl.u32 %v565, 4
      %v567 = vand.u32 %v565, 15
      %v568 = vsub.s32 0, %v567
      %v569 = vsel %vm563, %v568, %v567
      %vm570 = vcmp.lt.s32.totalorder %v514, 0
      %v571 = vsub.s32 0, %v514
      %v572 = vsel %vm570, %v571, %v514
      %v573 = vshrl.u32 %v572, 4
      %v574 = vand.u32 %v572, 15
      %v575 = vsub.s32 0, %v574
      %v576 = vsel %vm570, %v575, %v574
      %vm577 = vcmp.lt.s32.totalorder %v515, 0
      %v578 = vsub.s32 0, %v515
      %v579 = vsel %vm577, %v578, %v515
      %v580 = vshrl.u32 %v579, 4
      %v581 = vand.u32 %v579, 15
      %v582 = vsub.s32 0, %v581
      %v583 = vsel %vm577, %v582, %v581
      %vm584 = vcmp.lt.s32.totalorder %v516, 0
      %v585 = vsub.s32 0, %v516
      %v586 = vsel %vm584, %v585, %v516
      %v587 = vshrl.u32 %v586, 4
      %v588 = vand.u32 %v586, 15
      %v589 = vsub.s32 0, %v588
      %v590 = vsel %vm584, %v589, %v588
      %vm591 = vcmp.lt.s32.totalorder %v517, 0
      %v592 = vsub.s32 0, %v517
      %v593 = vsel %vm591, %v592, %v517
      %v594 = vshrl.u32 %v593, 4
      %v595 = vand.u32 %v593, 15
      %v596 = vsub.s32 0, %v595
      %v597 = vsel %vm591, %v596, %v595
      %vm598 = vcmp.lt.s32.totalorder %v518, 0
      %v599 = vsub.s32 0, %v518
      %v600 = vsel %vm598, %v599, %v518
      %v601 = vshrl.u32 %v600, 4
      %v602 = vand.u32 %v600, 15
      %v603 = vsub.s32 0, %v602
      %v604 = vsel %vm598, %v603, %v602
      %vm605 = vcmp.lt.s32.totalorder %v519, 0
      %v606 = vsub.s32 0, %v519
      %v607 = vsel %vm605, %v606, %v519
      %v608 = vshrl.u32 %v607, 4
      %v609 = vand.u32 %v607, 15
      %v610 = vsub.s32 0, %v609
      %v611 = vsel %vm605, %v610, %v609
      %vm612 = vcmp.lt.s32.totalorder %v520, 0
      %v613 = vsub.s32 0, %v520
      %v614 = vsel %vm612, %v613, %v520
      %v615 = vshrl.u32 %v614, 4
      %v616 = vand.u32 %v614, 15
      %v617 = vsub.s32 0, %v616
      %v618 = vsel %vm612, %v617, %v616
      %vm619 = vcmp.lt.s32.totalorder %v521, 0
      %v620 = vsub.s32 0, %v521
      %v621 = vsel %vm619, %v620, %v521
      %v622 = vshrl.u32 %v621, 4
      %v623 = vand.u32 %v621, 15
      %v624 = vsub.s32 0, %v623
      %v625 = vsel %vm619, %v624, %v623
      %vm626 = vcmp.lt.s32.totalorder %v522, 0
      %v627 = vsub.s32 0, %v522
      %v628 = vsel %vm626, %v627, %v522
      %v629 = vshrl.u32 %v628, 4
      %v630 = vand.u32 %v628, 15
      %v631 = vsub.s32 0, %v630
      %v632 = vsel %vm626, %v631, %v630
      %vm633 = vcmp.lt.s32.totalorder %v523, 0
      %v634 = vsub.s32 0, %v523
      %v635 = vsel %vm633, %v634, %v523
      %v636 = vshrl.u32 %v635, 4
      %v637 = vand.u32 %v635, 15
      %v638 = vsub.s32 0, %v637
      %v639 = vsel %vm633, %v638, %v637
      %vm640 = vcmp.lt.s32.totalorder %v524, 0
      %v641 = vsub.s32 0, %v524
      %v642 = vsel %vm640, %v641, %v524
      %v643 = vshrl.u32 %v642, 4
      %v644 = vand.u32 %v642, 15
      %v645 = vsub.s32 0, %v644
      %v646 = vsel %vm640, %v645, %v644
      %vm647 = vcmp.lt.s32.totalorder %v525, 0
      %v648 = vsub.s32 0, %v525
      %v649 = vsel %vm647, %v648, %v525
      %v650 = vshrl.u32 %v649, 4
      %v651 = vand.u32 %v649, 15
      %v652 = vsub.s32 0, %v651
      %v653 = vsel %vm647, %v652, %v651
      %vm654 = vcmp.lt.s32.totalorder %v526, 0
      %v655 = vsub.s32 0, %v526
      %v656 = vsel %vm654, %v655, %v526
      %v657 = vshrl.u32 %v656, 4
      %v658 = vand.u32 %v656, 15
      %v659 = vsub.s32 0, %v658
      %v660 = vsel %vm654, %v659, %v658
      %vm661 = vcmp.lt.s32.totalorder %v527, 0
      %v662 = vsub.s32 0, %v527
      %v663 = vsel %vm661, %v662, %v527
      %v664 = vshrl.u32 %v663, 4
      %v665 = vand.u32 %v663, 15
      %v666 = vsub.s32 0, %v665
      %v667 = vsel %vm661, %v666, %v665
      %vm668 = vcmp.ne.s32.totalorder %v534, 0
      %vm669 = vcmp.ne.s32.totalorder %v541, 0
      %vm670 = vcmp.ne.s32.totalorder %v548, 0
      %vm671 = vcmp.ne.s32.totalorder %v555, 0
      %vm672 = vcmp.ne.s32.totalorder %v562, 0
      %vm673 = vcmp.ne.s32.totalorder %v569, 0
      %vm674 = vcmp.ne.s32.totalorder %v576, 0
      %vm675 = vcmp.ne.s32.totalorder %v583, 0
      %vm676 = vcmp.ne.s32.totalorder %v590, 0
      %vm677 = vcmp.ne.s32.totalorder %v597, 0
      %vm678 = vcmp.ne.s32.totalorder %v604, 0
      %vm679 = vcmp.ne.s32.totalorder %v611, 0
      %vm680 = vcmp.ne.s32.totalorder %v618, 0
      %vm681 = vcmp.ne.s32.totalorder %v625, 0
      %vm682 = vcmp.ne.s32.totalorder %v632, 0
      %vm683 = vcmp.ne.s32.totalorder %v639, 0
      %vm684 = vcmp.ne.s32.totalorder %v646, 0
      %vm685 = vcmp.ne.s32.totalorder %v653, 0
      %vm686 = vcmp.ne.s32.totalorder %v660, 0
      %vm687 = vcmp.ne.s32.totalorder %v667, 0
      %vm688 = vcmp.lt.s32.totalorder %v534, 0
      %vm689 = vcmp.lt.s32.totalorder %v541, 0
      %vm690 = vcmp.lt.s32.totalorder %v548, 0
      %vm691 = vcmp.lt.s32.totalorder %v555, 0
      %vm692 = vcmp.lt.s32.totalorder %v562, 0
      %vm693 = vcmp.lt.s32.totalorder %v569, 0
      %vm694 = vcmp.lt.s32.totalorder %v576, 0
      %vm695 = vcmp.lt.s32.totalorder %v583, 0
      %vm696 = vcmp.lt.s32.totalorder %v590, 0
      %vm697 = vcmp.lt.s32.totalorder %v597, 0
      %vm698 = vcmp.lt.s32.totalorder %v604, 0
      %vm699 = vcmp.lt.s32.totalorder %v611, 0
      %vm700 = vcmp.lt.s32.totalorder %v618, 0
      %vm701 = vcmp.lt.s32.totalorder %v625, 0
      %vm702 = vcmp.lt.s32.totalorder %v632, 0
      %vm703 = vcmp.lt.s32.totalorder %v639, 0
      %vm704 = vcmp.lt.s32.totalorder %v646, 0
      %vm705 = vcmp.lt.s32.totalorder %v653, 0
      %vm706 = vcmp.lt.s32.totalorder %v660, 0
      %vm707 = vcmp.lt.s32.totalorder %v667, 0
      %vm708 = vmand %vm688, %vm668
      %vm709 = vmand %vm689, %vm669
      %vm710 = vmand %vm690, %vm670
      %vm711 = vmand %vm691, %vm671
      %vm712 = vmand %vm692, %vm672
      %vm713 = vmand %vm693, %vm673
      %vm714 = vmand %vm694, %vm674
      %vm715 = vmand %vm695, %vm675
      %vm716 = vmand %vm696, %vm676
      %vm717 = vmand %vm697, %vm677
      %vm718 = vmand %vm698, %vm678
      %vm719 = vmand %vm699, %vm679
      %vm720 = vmand %vm700, %vm680
      %vm721 = vmand %vm701, %vm681
      %vm722 = vmand %vm702, %vm682
      %vm723 = vmand %vm703, %vm683
      %vm724 = vmand %vm704, %vm684
      %vm725 = vmand %vm705, %vm685
      %vm726 = vmand %vm706, %vm686
      %vm727 = vmand %vm707, %vm687
      %v728 = vadd.s32 %v534, 16
      %v729 = vadd.s32 %v541, 16
      %v730 = vadd.s32 %v548, 16
      %v731 = vadd.s32 %v555, 16
      %v732 = vadd.s32 %v562, 16
      %v733 = vadd.s32 %v569, 16
      %v734 = vadd.s32 %v576, 16
      %v735 = vadd.s32 %v583, 16
      %v736 = vadd.s32 %v590, 16
      %v737 = vadd.s32 %v597, 16
      %v738 = vadd.s32 %v604, 16
      %v739 = vadd.s32 %v611, 16
      %v740 = vadd.s32 %v618, 16
      %v741 = vadd.s32 %v625, 16
      %v742 = vadd.s32 %v632, 16
      %v743 = vadd.s32 %v639, 16
      %v744 = vadd.s32 %v646, 16
      %v745 = vadd.s32 %v653, 16
      %v746 = vadd.s32 %v660, 16
      %v747 = vadd.s32 %v667, 16
      %v748 = vsel %vm708, %v728, %v534
      %v749 = vsel %vm709, %v729, %v541
      %v750 = vsel %vm710, %v730, %v548
      %v751 = vsel %vm711, %v731, %v555
      %v752 = vsel %vm712, %v732, %v562
      %v753 = vsel %vm713, %v733, %v569
      %v754 = vsel %vm714, %v734, %v576
      %v755 = vsel %vm715, %v735, %v583
      %v756 = vsel %vm716, %v736, %v590
      %v757 = vsel %vm717, %v737, %v597
      %v758 = vsel %vm718, %v738, %v604
      %v759 = vsel %vm719, %v739, %v611
      %v760 = vsel %vm720, %v740, %v618
      %v761 = vsel %vm721, %v741, %v625
      %v762 = vsel %vm722, %v742, %v632
      %v763 = vsel %vm723, %v743, %v639
      %v764 = vsel %vm724, %v744, %v646
      %v765 = vsel %vm725, %v745, %v653
      %v766 = vsel %vm726, %v746, %v660
      %v767 = vsel %vm727, %v747, %v667
      %vm768 = vcmp.ge.s32.totalorder %v748, 1
      %vm769 = vcmp.ge.s32.totalorder %v749, 1
      %vm770 = vcmp.ge.s32.totalorder %v750, 1
      %vm771 = vcmp.ge.s32.totalorder %v751, 1
      %vm772 = vcmp.ge.s32.totalorder %v752, 1
      %vm773 = vcmp.ge.s32.totalorder %v753, 1
      %vm774 = vcmp.ge.s32.totalorder %v754, 1
      %vm775 = vcmp.ge.s32.totalorder %v755, 1
      %vm776 = vcmp.ge.s32.totalorder %v756, 1
      %vm777 = vcmp.ge.s32.totalorder %v757, 1
      %vm778 = vcmp.ge.s32.totalorder %v758, 1
      %vm779 = vcmp.ge.s32.totalorder %v759, 1
      %vm780 = vcmp.ge.s32.totalorder %v760, 1
      %vm781 = vcmp.ge.s32.totalorder %v761, 1
      %vm782 = vcmp.ge.s32.totalorder %v762, 1
      %vm783 = vcmp.ge.s32.totalorder %v763, 1
      %vm784 = vcmp.ge.s32.totalorder %v764, 1
      %vm785 = vcmp.ge.s32.totalorder %v765, 1
      %vm786 = vcmp.ge.s32.totalorder %v766, 1
      %vm787 = vcmp.ge.s32.totalorder %v767, 1
      %vm808 = vcmask 1040384
      %v809 = vrot.slane %v499, 7
      %v810 = vrot.slane %v500, 7
      %v811 = vsel %vm808, %v809, %v810
      %v812 = vrot.slane %v463, 7
      %v813 = vsel %vm808, %v810, %v812
      %v814 = vrot.slane %v464, 7
      %v815 = vsel %vm808, %v812, %v814
      %v816 = vrot.slane %v465, 7
      %v817 = vsel %vm808, %v814, %v816
      %v818 = vrot.slane %v466, 7
      %v819 = vsel %vm808, %v816, %v818
      %v820 = vrot.slane %v467, 7
      %v821 = vsel %vm808, %v818, %v820
      %v822 = vrot.slane %v468, 7
      %v823 = vsel %vm808, %v820, %v822
      %v824 = vrot.slane %v469, 7
      %v825 = vsel %vm808, %v822, %v824
      %v826 = vrot.slane %v470, 7
      %v827 = vsel %vm808, %v824, %v826
      %v828 = vrot.slane %v471, 7
      %v829 = vsel %vm808, %v826, %v828
      %v830 = vrot.slane %v472, 7
      %v831 = vsel %vm808, %v828, %v830
      %v832 = vrot.slane %v473, 7
      %v833 = vsel %vm808, %v830, %v832
      %v834 = vrot.slane %v474, 7
      %v835 = vsel %vm808, %v832, %v834
      %v836 = vrot.slane %v475, 7
      %v837 = vsel %vm808, %v834, %v836
      %v838 = vrot.slane %v476, 7
      %v839 = vsel %vm808, %v836, %v838
      %v840 = vrot.slane %v477, 7
      %v841 = vsel %vm808, %v838, %v840
      %v842 = vrot.slane %v478, 7
      %v843 = vsel %vm808, %v840, %v842
      %v844 = vrot.slane %v505, 7
      %v845 = vsel %vm808, %v842, %v844
      %v846 = vrot.slane %v506, 7
      %v847 = vsel %vm808, %v844, %v846
      %v868 = vsel %vm808, 0.0, %v809
      %v869 = vsel %vm768, 1, 0
      %v870 = vsel %vm769, 1, 0
      %v871 = vsel %vm770, 1, 0
      %v872 = vsel %vm771, 1, 0
      %v873 = vsel %vm772, 1, 0
      %v874 = vsel %vm773, 1, 0
      %v875 = vsel %vm774, 1, 0
      %v876 = vsel %vm775, 1, 0
      %v877 = vsel %vm776, 1, 0
      %v878 = vsel %vm777, 1, 0
      %v879 = vsel %vm778, 1, 0
      %v880 = vsel %vm779, 1, 0
      %v881 = vsel %vm780, 1, 0
      %v882 = vsel %vm781, 1, 0
      %v883 = vsel %vm782, 1, 0
      %v884 = vsel %vm783, 1, 0
      %v885 = vsel %vm784, 1, 0
      %v886 = vsel %vm785, 1, 0
      %v887 = vsel %vm786, 1, 0
      %v888 = vsel %vm787, 1, 0
      %vm889 = vcmp.eq.s32.totalorder %v869, 1
      %vm890 = vcmp.eq.s32.totalorder %v870, 1
      %vm891 = vcmp.eq.s32.totalorder %v871, 1
      %vm892 = vcmp.eq.s32.totalorder %v872, 1
      %vm893 = vcmp.eq.s32.totalorder %v873, 1
      %vm894 = vcmp.eq.s32.totalorder %v874, 1
      %vm895 = vcmp.eq.s32.totalorder %v875, 1
      %vm896 = vcmp.eq.s32.totalorder %v876, 1
      %vm897 = vcmp.eq.s32.totalorder %v877, 1
      %vm898 = vcmp.eq.s32.totalorder %v878, 1
      %vm899 = vcmp.eq.s32.totalorder %v879, 1
      %vm900 = vcmp.eq.s32.totalorder %v880, 1
      %vm901 = vcmp.eq.s32.totalorder %v881, 1
      %vm902 = vcmp.eq.s32.totalorder %v882, 1
      %vm903 = vcmp.eq.s32.totalorder %v883, 1
      %vm904 = vcmp.eq.s32.totalorder %v884, 1
      %vm905 = vcmp.eq.s32.totalorder %v885, 1
      %vm906 = vcmp.eq.s32.totalorder %v886, 1
      %vm907 = vcmp.eq.s32.totalorder %v887, 1
      %vm908 = vcmp.eq.s32.totalorder %v888, 1
      %v909 = vsel %vm889, %v868, 0.0
      %v910 = vsel %vm890, %v811, 0.0
      %v911 = vsel %vm891, %v813, 0.0
      %v912 = vsel %vm892, %v815, 0.0
      %v913 = vsel %vm893, %v817, 0.0
      %v914 = vsel %vm894, %v819, 0.0
      %v915 = vsel %vm895, %v821, 0.0
      %v916 = vsel %vm896, %v823, 0.0
      %v917 = vsel %vm897, %v825, 0.0
      %v918 = vsel %vm898, %v827, 0.0
      %v919 = vsel %vm899, %v829, 0.0
      %v920 = vsel %vm900, %v831, 0.0
      %v921 = vsel %vm901, %v833, 0.0
      %v922 = vsel %vm902, %v835, 0.0
      %v923 = vsel %vm903, %v837, 0.0
      %v924 = vsel %vm904, %v839, 0.0
      %v925 = vsel %vm905, %v841, 0.0
      %v926 = vsel %vm906, %v843, 0.0
      %v927 = vsel %vm907, %v845, 0.0
      %v928 = vsel %vm908, %v847, 0.0
      %vm929 = vcmp.le.s32.totalorder %v748, 14
      %vm930 = vcmp.le.s32.totalorder %v749, 14
      %vm931 = vcmp.le.s32.totalorder %v750, 14
      %vm932 = vcmp.le.s32.totalorder %v751, 14
      %vm933 = vcmp.le.s32.totalorder %v752, 14
      %vm934 = vcmp.le.s32.totalorder %v753, 14
      %vm935 = vcmp.le.s32.totalorder %v754, 14
      %vm936 = vcmp.le.s32.totalorder %v755, 14
      %vm937 = vcmp.le.s32.totalorder %v756, 14
      %vm938 = vcmp.le.s32.totalorder %v757, 14
      %vm939 = vcmp.le.s32.totalorder %v758, 14
      %vm940 = vcmp.le.s32.totalorder %v759, 14
      %vm941 = vcmp.le.s32.totalorder %v760, 14
      %vm942 = vcmp.le.s32.totalorder %v761, 14
      %vm943 = vcmp.le.s32.totalorder %v762, 14
      %vm944 = vcmp.le.s32.totalorder %v763, 14
      %vm945 = vcmp.le.s32.totalorder %v764, 14
      %vm946 = vcmp.le.s32.totalorder %v765, 14
      %vm947 = vcmp.le.s32.totalorder %v766, 14
      %vm948 = vcmp.le.s32.totalorder %v767, 14
      %vm949 = vcmask 1046528
      %v950 = vrot.slane %v499, 1
      %v951 = vrot.slane %v500, 1
      %v952 = vsel %vm949, %v950, %v951
      %v953 = vrot.slane %v463, 1
      %v954 = vsel %vm949, %v951, %v953
      %v955 = vrot.slane %v464, 1
      %v956 = vsel %vm949, %v953, %v955
      %v957 = vrot.slane %v465, 1
      %v958 = vsel %vm949, %v955, %v957
      %v959 = vrot.slane %v466, 1
      %v960 = vsel %vm949, %v957, %v959
      %v961 = vrot.slane %v467, 1
      %v962 = vsel %vm949, %v959, %v961
      %v963 = vrot.slane %v468, 1
      %v964 = vsel %vm949, %v961, %v963
      %v965 = vrot.slane %v469, 1
      %v966 = vsel %vm949, %v963, %v965
      %v967 = vrot.slane %v470, 1
      %v968 = vsel %vm949, %v965, %v967
      %v969 = vrot.slane %v471, 1
      %v970 = vsel %vm949, %v967, %v969
      %v971 = vrot.slane %v472, 1
      %v972 = vsel %vm949, %v969, %v971
      %v973 = vrot.slane %v473, 1
      %v974 = vsel %vm949, %v971, %v973
      %v975 = vrot.slane %v474, 1
      %v976 = vsel %vm949, %v973, %v975
      %v977 = vrot.slane %v475, 1
      %v978 = vsel %vm949, %v975, %v977
      %v979 = vrot.slane %v476, 1
      %v980 = vsel %vm949, %v977, %v979
      %v981 = vrot.slane %v477, 1
      %v982 = vsel %vm949, %v979, %v981
      %v983 = vrot.slane %v478, 1
      %v984 = vsel %vm949, %v981, %v983
      %v985 = vrot.slane %v505, 1
      %v986 = vsel %vm949, %v983, %v985
      %v987 = vrot.slane %v506, 1
      %v988 = vsel %vm949, %v985, %v987
      %v1009 = vsel %vm949, %v987, 0.0
      %v1010 = vsel %vm929, 1, 0
      %v1011 = vsel %vm930, 1, 0
      %v1012 = vsel %vm931, 1, 0
      %v1013 = vsel %vm932, 1, 0
      %v1014 = vsel %vm933, 1, 0
      %v1015 = vsel %vm934, 1, 0
      %v1016 = vsel %vm935, 1, 0
      %v1017 = vsel %vm936, 1, 0
      %v1018 = vsel %vm937, 1, 0
      %v1019 = vsel %vm938, 1, 0
      %v1020 = vsel %vm939, 1, 0
      %v1021 = vsel %vm940, 1, 0
      %v1022 = vsel %vm941, 1, 0
      %v1023 = vsel %vm942, 1, 0
      %v1024 = vsel %vm943, 1, 0
      %v1025 = vsel %vm944, 1, 0
      %v1026 = vsel %vm945, 1, 0
      %v1027 = vsel %vm946, 1, 0
      %v1028 = vsel %vm947, 1, 0
      %v1029 = vsel %vm948, 1, 0
      %vm1030 = vcmp.eq.s32.totalorder %v1010, 1
      %vm1031 = vcmp.eq.s32.totalorder %v1011, 1
      %vm1032 = vcmp.eq.s32.totalorder %v1012, 1
      %vm1033 = vcmp.eq.s32.totalorder %v1013, 1
      %vm1034 = vcmp.eq.s32.totalorder %v1014, 1
      %vm1035 = vcmp.eq.s32.totalorder %v1015, 1
      %vm1036 = vcmp.eq.s32.totalorder %v1016, 1
      %vm1037 = vcmp.eq.s32.totalorder %v1017, 1
      %vm1038 = vcmp.eq.s32.totalorder %v1018, 1
      %vm1039 = vcmp.eq.s32.totalorder %v1019, 1
      %vm1040 = vcmp.eq.s32.totalorder %v1020, 1
      %vm1041 = vcmp.eq.s32.totalorder %v1021, 1
      %vm1042 = vcmp.eq.s32.totalorder %v1022, 1
      %vm1043 = vcmp.eq.s32.totalorder %v1023, 1
      %vm1044 = vcmp.eq.s32.totalorder %v1024, 1
      %vm1045 = vcmp.eq.s32.totalorder %v1025, 1
      %vm1046 = vcmp.eq.s32.totalorder %v1026, 1
      %vm1047 = vcmp.eq.s32.totalorder %v1027, 1
      %vm1048 = vcmp.eq.s32.totalorder %v1028, 1
      %vm1049 = vcmp.eq.s32.totalorder %v1029, 1
      %v1050 = vsel %vm1030, %v952, 0.0
      %v1051 = vsel %vm1031, %v954, 0.0
      %v1052 = vsel %vm1032, %v956, 0.0
      %v1053 = vsel %vm1033, %v958, 0.0
      %v1054 = vsel %vm1034, %v960, 0.0
      %v1055 = vsel %vm1035, %v962, 0.0
      %v1056 = vsel %vm1036, %v964, 0.0
      %v1057 = vsel %vm1037, %v966, 0.0
      %v1058 = vsel %vm1038, %v968, 0.0
      %v1059 = vsel %vm1039, %v970, 0.0
      %v1060 = vsel %vm1040, %v972, 0.0
      %v1061 = vsel %vm1041, %v974, 0.0
      %v1062 = vsel %vm1042, %v976, 0.0
      %v1063 = vsel %vm1043, %v978, 0.0
      %v1064 = vsel %vm1044, %v980, 0.0
      %v1065 = vsel %vm1045, %v982, 0.0
      %v1066 = vsel %vm1046, %v984, 0.0
      %v1067 = vsel %vm1047, %v986, 0.0
      %v1068 = vsel %vm1048, %v988, 0.0
      %v1069 = vsel %vm1049, %v1009, 0.0
      %v1070 = vld [vmem:[%s5] sm:$0xff]
      %v1071 = vld [vmem:[%s5 + $0x8] sm:$0xff]
      %v1072 = vld [vmem:[%s5 + $0x10] sm:$0xff]
      %v1073 = vld [vmem:[%s5 + $0x18] sm:$0xff]
      %v1074 = vld [vmem:[%s5 + $0x20] sm:$0xff]
      %v1075 = vld [vmem:[%s5 + $0x28] sm:$0xff]
      %v1076 = vld [vmem:[%s5 + $0x30] sm:$0xff]
      %v1077 = vld [vmem:[%s5 + $0x38] sm:$0xff]
      %v1078 = vld [vmem:[%s5 + $0x40] sm:$0xff]
      %v1079 = vld [vmem:[%s5 + $0x48] sm:$0xff]
      %v1080 = vld [vmem:[%s5 + $0x50] sm:$0xff]
      %v1081 = vld [vmem:[%s5 + $0x58] sm:$0xff]
      %v1082 = vld [vmem:[%s5 + $0x60] sm:$0xff]
      %v1083 = vld [vmem:[%s5 + $0x68] sm:$0xff]
      %v1084 = vld [vmem:[%s5 + $0x70] sm:$0xff]
      %v1085 = vld [vmem:[%s5 + $0x78] sm:$0xff]
      %v1086 = vld [vmem:[%s5 + $0x80] sm:$0xff]
      %v1087 = vld [vmem:[%s5 + $0x88] sm:$0xff]
      %v1088 = vld [vmem:[%s5 + $0x90] sm:$0xff]
      %v1089 = vld [vmem:[%s5 + $0x98] sm:$0xff]
      %v1090 = vld [vmem:[%s5 + $0xa0] sm:$0xff]
      %v1091 = vld [vmem:[%s5 + $0xa8] sm:$0xff]
      %v1092 = vld [vmem:[%s5 + $0xb0] sm:$0xff]
      %v1093 = vld [vmem:[%s5 + $0xb8] sm:$0xff]
      %v1094 = vld [vmem:[%s5 + $0xc0] sm:$0xff]
      %v1095 = vld [vmem:[%s5 + $0xc8] sm:$0xff]
      %v1096 = vld [vmem:[%s5 + $0xd0] sm:$0xff]
      %v1097 = vld [vmem:[%s5 + $0xd8] sm:$0xff]
      %v1098 = vld [vmem:[%s5 + $0xe0] sm:$0xff]
      %v1099 = vld [vmem:[%s5 + $0xe8] sm:$0xff]
      %v1100 = vld [vmem:[%s5 + $0xf0] sm:$0xff]
      %v1101 = vld [vmem:[%s5 + $0xf8] sm:$0xff]
      %v1102 = vld [vmem:[%s5 + $0x100] sm:$0xff]
      %v1103 = vld [vmem:[%s5 + $0x108] sm:$0xff]
      %v1104 = vld [vmem:[%s5 + $0x110] sm:$0xff]
      %v1105 = vld [vmem:[%s5 + $0x118] sm:$0xff]
      %v1106 = vld [vmem:[%s5 + $0x120] sm:$0xff]
      %v1107 = vld [vmem:[%s5 + $0x128] sm:$0xff]
      %v1108 = vld [vmem:[%s5 + $0x130] sm:$0xff]
      %v1109 = vld [vmem:[%s5 + $0x138] sm:$0xff]
      %v1110 = vld [vmem:[%s5 + $0x140] sm:$0xff]
      %v1111 = vld [vmem:[%s5 + $0x148] sm:$0xff]
      %v1112 = vld [vmem:[%s5 + $0x150] sm:$0xff]
      %v1113 = vld [vmem:[%s5 + $0x158] sm:$0xff]
      %v1114 = vld [vmem:[%s5 + $0x160] sm:$0xff]
      %v1115 = vld [vmem:[%s5 + $0x168] sm:$0xff]
      %v1116 = vld [vmem:[%s5 + $0x170] sm:$0xff]
      %v1117 = vld [vmem:[%s5 + $0x178] sm:$0xff]
      %s1118 = scalar_lea.vmem %s5, 384
      %v1119 = vld [vmem:[%s1118] sm:$0xff]
      %v1120 = vld [vmem:[%s1118 + $0x8] sm:$0xff]
      %v1121 = vld [vmem:[%s1118 + $0x10] sm:$0xff]
      %v1122 = vld [vmem:[%s1118 + $0x18] sm:$0xff]
      %v1123 = vld [vmem:[%s1118 + $0x20] sm:$0xff]
      %v1124 = vld [vmem:[%s1118 + $0x28] sm:$0xff]
      %v1125 = vld [vmem:[%s1118 + $0x30] sm:$0xff]
      %v1126 = vld [vmem:[%s1118 + $0x38] sm:$0xff]
      %v1127 = vld [vmem:[%s1118 + $0x40] sm:$0xff]
      %v1128 = vld [vmem:[%s1118 + $0x48] sm:$0xff]
      %v1129 = vld [vmem:[%s1118 + $0x50] sm:$0xff]
      %v1130 = vld [vmem:[%s1118 + $0x58] sm:$0xff]
      %v1131 = vld [vmem:[%s1118 + $0x60] sm:$0xff]
      %v1132 = vld [vmem:[%s1118 + $0x68] sm:$0xff]
      %v1133 = vld [vmem:[%s1118 + $0x70] sm:$0xff]
      %v1134 = vld [vmem:[%s1118 + $0x78] sm:$0xff]
      %v1135 = vld [vmem:[%s1118 + $0x80] sm:$0xff]
      %v1136 = vld [vmem:[%s1118 + $0x88] sm:$0xff]
      %v1137 = vld [vmem:[%s1118 + $0x90] sm:$0xff]
      %v1138 = vld [vmem:[%s1118 + $0x98] sm:$0xff]
      %v1139 = vld [vmem:[%s1118 + $0xa0] sm:$0xff]
      %v1140 = vld [vmem:[%s1118 + $0xa8] sm:$0xff]
      %v1141 = vld [vmem:[%s1118 + $0xb0] sm:$0xff]
      %v1142 = vld [vmem:[%s1118 + $0xb8] sm:$0xff]
      %v1143 = vld [vmem:[%s1118 + $0xc0] sm:$0xff]
      %v1144 = vld [vmem:[%s1118 + $0xc8] sm:$0xff]
      %v1145 = vld [vmem:[%s1118 + $0xd0] sm:$0xff]
      %v1146 = vld [vmem:[%s1118 + $0xd8] sm:$0xff]
      %v1147 = vld [vmem:[%s1118 + $0xe0] sm:$0xff]
      %v1148 = vld [vmem:[%s1118 + $0xe8] sm:$0xff]
      %v1149 = vld [vmem:[%s1118 + $0xf0] sm:$0xff]
      %v1150 = vld [vmem:[%s1118 + $0xf8] sm:$0xff]
      %v1151 = vld [vmem:[%s1118 + $0x100] sm:$0xff]
      %v1152 = vld [vmem:[%s1118 + $0x108] sm:$0xff]
      %v1153 = vld [vmem:[%s1118 + $0x110] sm:$0xff]
      %v1154 = vld [vmem:[%s1118 + $0x118] sm:$0xff]
      %v1155 = vld [vmem:[%s1118 + $0x120] sm:$0xff]
      %v1156 = vld [vmem:[%s1118 + $0x128] sm:$0xff]
      %v1157 = vld [vmem:[%s1118 + $0x130] sm:$0xff]
      %v1158 = vld [vmem:[%s1118 + $0x138] sm:$0xff]
      %v1159 = vld [vmem:[%s1118 + $0x140] sm:$0xff]
      %v1160 = vld [vmem:[%s1118 + $0x148] sm:$0xff]
      %v1161 = vld [vmem:[%s1118 + $0x150] sm:$0xff]
      %v1162 = vld [vmem:[%s1118 + $0x158] sm:$0xff]
      %v1163 = vld [vmem:[%s1118 + $0x160] sm:$0xff]
      %v1164 = vld [vmem:[%s1118 + $0x168] sm:$0xff]
      %v1165 = vld [vmem:[%s1118 + $0x170] sm:$0xff]
      %v1166 = vld [vmem:[%s1118 + $0x178] sm:$0xff]
      %1167 = vmatpush.msra.mxu0 %v1134
      %1168 = vmatpush.msra.mxu0 %v1133
      %1169 = vmatpush.msra.mxu0 %v1132
      %1170 = vmatpush.msra.mxu0 %v1131
      %1171 = vmatpush.msra.mxu0 %v1130
      %1172 = vmatpush.msra.mxu0 %v1129
      %1173 = vmatpush.msra.mxu0 %v1128
      %1174 = vmatpush.msra.mxu0 %v1127
      %1175 = vmatpush.msra.mxu0 %v1126
      %1176 = vmatpush.msra.mxu0 %v1125
      %1177 = vmatpush.msra.mxu0 %v1124
      %1178 = vmatpush.msra.mxu0 %v1123
      %1179 = vmatpush.msra.mxu0 %v1122
      %1180 = vmatpush.msra.mxu0 %v1121
      %1181 = vmatpush.msra.mxu0 %v1120
      %1182 = vmatpush.msra.mxu0 %v1119
      %1183 = vmatmul.f32.gmra.mxu0 %v911
      %v1184 = vpop.f32.mrf.mxu0
      %v1185 = vadd.f32 0.0, %v1184
      %1186 = vmatmul.f32.gmra.mxu0 %v912
      %v1187 = vpop.f32.mrf.mxu0
      %v1188 = vadd.f32 0.0, %v1187
      %1189 = vmatmul.f32.gmra.mxu0 %v913
      %v1190 = vpop.f32.mrf.mxu0
      %v1191 = vadd.f32 0.0, %v1190
      %1192 = vmatmul.f32.gmra.mxu0 %v914
      %v1193 = vpop.f32.mrf.mxu0
      %v1194 = vadd.f32 0.0, %v1193
      %1195 = vmatmul.f32.gmra.mxu0 %v915
      %v1196 = vpop.f32.mrf.mxu0
      %v1197 = vadd.f32 0.0, %v1196
      %1198 = vmatmul.f32.gmra.mxu0 %v916
      %v1199 = vpop.f32.mrf.mxu0
      %v1200 = vadd.f32 0.0, %v1199
      %1201 = vmatmul.f32.gmra.mxu0 %v917
      %v1202 = vpop.f32.mrf.mxu0
      %v1203 = vadd.f32 0.0, %v1202
      %1204 = vmatmul.f32.gmra.mxu0 %v918
      %v1205 = vpop.f32.mrf.mxu0
      %v1206 = vadd.f32 0.0, %v1205
      %1207 = vmatmul.f32.gmra.mxu0 %v919
      %v1208 = vpop.f32.mrf.mxu0
      %v1209 = vadd.f32 0.0, %v1208
      %1210 = vmatmul.f32.gmra.mxu0 %v920
      %v1211 = vpop.f32.mrf.mxu0
      %v1212 = vadd.f32 0.0, %v1211
      %1213 = vmatmul.f32.gmra.mxu0 %v921
      %v1214 = vpop.f32.mrf.mxu0
      %v1215 = vadd.f32 0.0, %v1214
      %1216 = vmatmul.f32.gmra.mxu0 %v922
      %v1217 = vpop.f32.mrf.mxu0
      %v1218 = vadd.f32 0.0, %v1217
      %1219 = vmatmul.f32.gmra.mxu0 %v923
      %v1220 = vpop.f32.mrf.mxu0
      %v1221 = vadd.f32 0.0, %v1220
      %1222 = vmatmul.f32.gmra.mxu0 %v924
      %v1223 = vpop.f32.mrf.mxu0
      %v1224 = vadd.f32 0.0, %v1223
      %1225 = vmatmul.f32.gmra.mxu0 %v925
      %v1226 = vpop.f32.mrf.mxu0
      %v1227 = vadd.f32 0.0, %v1226
      %1228 = vmatmul.f32.gmra.mxu0 %v926
      %v1229 = vpop.f32.mrf.mxu0
      %v1230 = vadd.f32 0.0, %v1229
      %1231 = vdwg.mxu0
      %1232 = vmatpush.msra.mxu0 %v1150
      %1233 = vmatpush.msra.mxu0 %v1149
      %1234 = vmatpush.msra.mxu0 %v1148
      %1235 = vmatpush.msra.mxu0 %v1147
      %1236 = vmatpush.msra.mxu0 %v1146
      %1237 = vmatpush.msra.mxu0 %v1145
      %1238 = vmatpush.msra.mxu0 %v1144
      %1239 = vmatpush.msra.mxu0 %v1143
      %1240 = vmatpush.msra.mxu0 %v1142
      %1241 = vmatpush.msra.mxu0 %v1141
      %1242 = vmatpush.msra.mxu0 %v1140
      %1243 = vmatpush.msra.mxu0 %v1139
      %1244 = vmatpush.msra.mxu0 %v1138
      %1245 = vmatpush.msra.mxu0 %v1137
      %1246 = vmatpush.msra.mxu0 %v1136
      %1247 = vmatpush.msra.mxu0 %v1135
      %1248 = vmatmul.f32.gmra.mxu0 %v463
      %v1249 = vpop.f32.mrf.mxu0
      %v1250 = vadd.f32 %v1185, %v1249
      %1251 = vmatmul.f32.gmra.mxu0 %v464
      %v1252 = vpop.f32.mrf.mxu0
      %v1253 = vadd.f32 %v1188, %v1252
      %1254 = vmatmul.f32.gmra.mxu0 %v465
      %v1255 = vpop.f32.mrf.mxu0
      %v1256 = vadd.f32 %v1191, %v1255
      %1257 = vmatmul.f32.gmra.mxu0 %v466
      %v1258 = vpop.f32.mrf.mxu0
      %v1259 = vadd.f32 %v1194, %v1258
      %1260 = vmatmul.f32.gmra.mxu0 %v467
      %v1261 = vpop.f32.mrf.mxu0
      %v1262 = vadd.f32 %v1197, %v1261
      %1263 = vmatmul.f32.gmra.mxu0 %v468
      %v1264 = vpop.f32.mrf.mxu0
      %v1265 = vadd.f32 %v1200, %v1264
      %1266 = vmatmul.f32.gmra.mxu0 %v469
      %v1267 = vpop.f32.mrf.mxu0
      %v1268 = vadd.f32 %v1203, %v1267
      %1269 = vmatmul.f32.gmra.mxu0 %v470
      %v1270 = vpop.f32.mrf.mxu0
      %v1271 = vadd.f32 %v1206, %v1270
      %1272 = vmatmul.f32.gmra.mxu0 %v471
      %v1273 = vpop.f32.mrf.mxu0
      %v1274 = vadd.f32 %v1209, %v1273
      %1275 = vmatmul.f32.gmra.mxu0 %v472
      %v1276 = vpop.f32.mrf.mxu0
      %v1277 = vadd.f32 %v1212, %v1276
      %1278 = vmatmul.f32.gmra.mxu0 %v473
      %v1279 = vpop.f32.mrf.mxu0
      %v1280 = vadd.f32 %v1215, %v1279
      %1281 = vmatmul.f32.gmra.mxu0 %v474
      %v1282 = vpop.f32.mrf.mxu0
      %v1283 = vadd.f32 %v1218, %v1282
      %1284 = vmatmul.f32.gmra.mxu0 %v475
      %v1285 = vpop.f32.mrf.mxu0
      %v1286 = vadd.f32 %v1221, %v1285
      %1287 = vmatmul.f32.gmra.mxu0 %v476
      %v1288 = vpop.f32.mrf.mxu0
      %v1289 = vadd.f32 %v1224, %v1288
      %1290 = vmatmul.f32.gmra.mxu0 %v477
      %v1291 = vpop.f32.mrf.mxu0
      %v1292 = vadd.f32 %v1227, %v1291
      %1293 = vmatmul.f32.gmra.mxu0 %v478
      %v1294 = vpop.f32.mrf.mxu0
      %v1295 = vadd.f32 %v1230, %v1294
      %1296 = vdwg.mxu0
      %1297 = vmatpush.msra.mxu0 %v1166
      %1298 = vmatpush.msra.mxu0 %v1165
      %1299 = vmatpush.msra.mxu0 %v1164
      %1300 = vmatpush.msra.mxu0 %v1163
      %1301 = vmatpush.msra.mxu0 %v1162
      %1302 = vmatpush.msra.mxu0 %v1161
      %1303 = vmatpush.msra.mxu0 %v1160
      %1304 = vmatpush.msra.mxu0 %v1159
      %1305 = vmatpush.msra.mxu0 %v1158
      %1306 = vmatpush.msra.mxu0 %v1157
      %1307 = vmatpush.msra.mxu0 %v1156
      %1308 = vmatpush.msra.mxu0 %v1155
      %1309 = vmatpush.msra.mxu0 %v1154
      %1310 = vmatpush.msra.mxu0 %v1153
      %1311 = vmatpush.msra.mxu0 %v1152
      %1312 = vmatpush.msra.mxu0 %v1151
      %1313 = vmatmul.f32.gmra.mxu0 %v1052
      %v1314 = vpop.f32.mrf.mxu0
      %v1315 = vadd.f32 %v1250, %v1314
      %1316 = vmatmul.f32.gmra.mxu0 %v1053
      %v1317 = vpop.f32.mrf.mxu0
      %v1318 = vadd.f32 %v1253, %v1317
      %1319 = vmatmul.f32.gmra.mxu0 %v1054
      %v1320 = vpop.f32.mrf.mxu0
      %v1321 = vadd.f32 %v1256, %v1320
      %1322 = vmatmul.f32.gmra.mxu0 %v1055
      %v1323 = vpop.f32.mrf.mxu0
      %v1324 = vadd.f32 %v1259, %v1323
      %1325 = vmatmul.f32.gmra.mxu0 %v1056
      %v1326 = vpop.f32.mrf.mxu0
      %v1327 = vadd.f32 %v1262, %v1326
      %1328 = vmatmul.f32.gmra.mxu0 %v1057
      %v1329 = vpop.f32.mrf.mxu0
      %v1330 = vadd.f32 %v1265, %v1329
      %1331 = vmatmul.f32.gmra.mxu0 %v1058
      %v1332 = vpop.f32.mrf.mxu0
      %v1333 = vadd.f32 %v1268, %v1332
      %1334 = vmatmul.f32.gmra.mxu0 %v1059
      %v1335 = vpop.f32.mrf.mxu0
      %v1336 = vadd.f32 %v1271, %v1335
      %1337 = vmatmul.f32.gmra.mxu0 %v1060
      %v1338 = vpop.f32.mrf.mxu0
      %v1339 = vadd.f32 %v1274, %v1338
      %1340 = vmatmul.f32.gmra.mxu0 %v1061
      %v1341 = vpop.f32.mrf.mxu0
      %v1342 = vadd.f32 %v1277, %v1341
      %1343 = vmatmul.f32.gmra.mxu0 %v1062
      %v1344 = vpop.f32.mrf.mxu0
      %v1345 = vadd.f32 %v1280, %v1344
      %1346 = vmatmul.f32.gmra.mxu0 %v1063
      %v1347 = vpop.f32.mrf.mxu0
      %v1348 = vadd.f32 %v1283, %v1347
      %1349 = vmatmul.f32.gmra.mxu0 %v1064
      %v1350 = vpop.f32.mrf.mxu0
      %v1351 = vadd.f32 %v1286, %v1350
      %1352 = vmatmul.f32.gmra.mxu0 %v1065
      %v1353 = vpop.f32.mrf.mxu0
      %v1354 = vadd.f32 %v1289, %v1353
      %1355 = vmatmul.f32.gmra.mxu0 %v1066
      %v1356 = vpop.f32.mrf.mxu0
      %v1357 = vadd.f32 %v1292, %v1356
      %1358 = vmatmul.f32.gmra.mxu0 %v1067
      %v1359 = vpop.f32.mrf.mxu0
      %v1360 = vadd.f32 %v1295, %v1359
      %1361 = vdwg.mxu0
      %1362 = vmatpush.msra.mxu0 %v1085
      %1363 = vmatpush.msra.mxu0 %v1084
      %1364 = vmatpush.msra.mxu0 %v1083
      %1365 = vmatpush.msra.mxu0 %v1082
      %1366 = vmatpush.msra.mxu0 %v1081
      %1367 = vmatpush.msra.mxu0 %v1080
      %1368 = vmatpush.msra.mxu0 %v1079
      %1369 = vmatpush.msra.mxu0 %v1078
      %1370 = vmatpush.msra.mxu0 %v1077
      %1371 = vmatpush.msra.mxu0 %v1076
      %1372 = vmatpush.msra.mxu0 %v1075
      %1373 = vmatpush.msra.mxu0 %v1074
      %1374 = vmatpush.msra.mxu0 %v1073
      %1375 = vmatpush.msra.mxu0 %v1072
      %1376 = vmatpush.msra.mxu0 %v1071
      %1377 = vmatpush.msra.mxu0 %v1070
      %1378 = vmatmul.f32.gmra.mxu0 %v909
      %v1379 = vpop.f32.mrf.mxu0
      %v1380 = vadd.f32 %v1315, %v1379
      %1381 = vmatmul.f32.gmra.mxu0 %v910
      %v1382 = vpop.f32.mrf.mxu0
      %v1383 = vadd.f32 %v1318, %v1382
      %1384 = vmatmul.f32.gmra.mxu0 %v911
      %v1385 = vpop.f32.mrf.mxu0
      %v1386 = vadd.f32 %v1321, %v1385
      %1387 = vmatmul.f32.gmra.mxu0 %v912
      %v1388 = vpop.f32.mrf.mxu0
      %v1389 = vadd.f32 %v1324, %v1388
      %1390 = vmatmul.f32.gmra.mxu0 %v913
      %v1391 = vpop.f32.mrf.mxu0
      %v1392 = vadd.f32 %v1327, %v1391
      %1393 = vmatmul.f32.gmra.mxu0 %v914
      %v1394 = vpop.f32.mrf.mxu0
      %v1395 = vadd.f32 %v1330, %v1394
      %1396 = vmatmul.f32.gmra.mxu0 %v915
      %v1397 = vpop.f32.mrf.mxu0
      %v1398 = vadd.f32 %v1333, %v1397
      %1399 = vmatmul.f32.gmra.mxu0 %v916
      %v1400 = vpop.f32.mrf.mxu0
      %v1401 = vadd.f32 %v1336, %v1400
      %1402 = vmatmul.f32.gmra.mxu0 %v917
      %v1403 = vpop.f32.mrf.mxu0
      %v1404 = vadd.f32 %v1339, %v1403
      %1405 = vmatmul.f32.gmra.mxu0 %v918
      %v1406 = vpop.f32.mrf.mxu0
      %v1407 = vadd.f32 %v1342, %v1406
      %1408 = vmatmul.f32.gmra.mxu0 %v919
      %v1409 = vpop.f32.mrf.mxu0
      %v1410 = vadd.f32 %v1345, %v1409
      %1411 = vmatmul.f32.gmra.mxu0 %v920
      %v1412 = vpop.f32.mrf.mxu0
      %v1413 = vadd.f32 %v1348, %v1412
      %1414 = vmatmul.f32.gmra.mxu0 %v921
      %v1415 = vpop.f32.mrf.mxu0
      %v1416 = vadd.f32 %v1351, %v1415
      %1417 = vmatmul.f32.gmra.mxu0 %v922
      %v1418 = vpop.f32.mrf.mxu0
      %v1419 = vadd.f32 %v1354, %v1418
      %1420 = vmatmul.f32.gmra.mxu0 %v923
      %v1421 = vpop.f32.mrf.mxu0
      %v1422 = vadd.f32 %v1357, %v1421
      %1423 = vmatmul.f32.gmra.mxu0 %v924
      %v1424 = vpop.f32.mrf.mxu0
      %v1425 = vadd.f32 %v1360, %v1424
      %1426 = vdwg.mxu0
      %1427 = vmatpush.msra.mxu0 %v1101
      %1428 = vmatpush.msra.mxu0 %v1100
      %1429 = vmatpush.msra.mxu0 %v1099
      %1430 = vmatpush.msra.mxu0 %v1098
      %1431 = vmatpush.msra.mxu0 %v1097
      %1432 = vmatpush.msra.mxu0 %v1096
      %1433 = vmatpush.msra.mxu0 %v1095
      %1434 = vmatpush.msra.mxu0 %v1094
      %1435 = vmatpush.msra.mxu0 %v1093
      %1436 = vmatpush.msra.mxu0 %v1092
      %1437 = vmatpush.msra.mxu0 %v1091
      %1438 = vmatpush.msra.mxu0 %v1090
      %1439 = vmatpush.msra.mxu0 %v1089
      %1440 = vmatpush.msra.mxu0 %v1088
      %1441 = vmatpush.msra.mxu0 %v1087
      %1442 = vmatpush.msra.mxu0 %v1086
      %1443 = vmatmul.f32.gmra.mxu0 %v499
      %v1444 = vpop.f32.mrf.mxu0
      %v1445 = vadd.f32 %v1380, %v1444
      %1446 = vmatmul.f32.gmra.mxu0 %v500
      %v1447 = vpop.f32.mrf.mxu0
      %v1448 = vadd.f32 %v1383, %v1447
      %1449 = vmatmul.f32.gmra.mxu0 %v463
      %v1450 = vpop.f32.mrf.mxu0
      %v1451 = vadd.f32 %v1386, %v1450
      %1452 = vmatmul.f32.gmra.mxu0 %v464
      %v1453 = vpop.f32.mrf.mxu0
      %v1454 = vadd.f32 %v1389, %v1453
      %1455 = vmatmul.f32.gmra.mxu0 %v465
      %v1456 = vpop.f32.mrf.mxu0
      %v1457 = vadd.f32 %v1392, %v1456
      %1458 = vmatmul.f32.gmra.mxu0 %v466
      %v1459 = vpop.f32.mrf.mxu0
      %v1460 = vadd.f32 %v1395, %v1459
      %1461 = vmatmul.f32.gmra.mxu0 %v467
      %v1462 = vpop.f32.mrf.mxu0
      %v1463 = vadd.f32 %v1398, %v1462
      %1464 = vmatmul.f32.gmra.mxu0 %v468
      %v1465 = vpop.f32.mrf.mxu0
      %v1466 = vadd.f32 %v1401, %v1465
      %1467 = vmatmul.f32.gmra.mxu0 %v469
      %v1468 = vpop.f32.mrf.mxu0
      %v1469 = vadd.f32 %v1404, %v1468
      %1470 = vmatmul.f32.gmra.mxu0 %v470
      %v1471 = vpop.f32.mrf.mxu0
      %v1472 = vadd.f32 %v1407, %v1471
      %1473 = vmatmul.f32.gmra.mxu0 %v471
      %v1474 = vpop.f32.mrf.mxu0
      %v1475 = vadd.f32 %v1410, %v1474
      %1476 = vmatmul.f32.gmra.mxu0 %v472
      %v1477 = vpop.f32.mrf.mxu0
      %v1478 = vadd.f32 %v1413, %v1477
      %1479 = vmatmul.f32.gmra.mxu0 %v473
      %v1480 = vpop.f32.mrf.mxu0
      %v1481 = vadd.f32 %v1416, %v1480
      %1482 = vmatmul.f32.gmra.mxu0 %v474
      %v1483 = vpop.f32.mrf.mxu0
      %v1484 = vadd.f32 %v1419, %v1483
      %1485 = vmatmul.f32.gmra.mxu0 %v475
      %v1486 = vpop.f32.mrf.mxu0
      %v1487 = vadd.f32 %v1422, %v1486
      %1488 = vmatmul.f32.gmra.mxu0 %v476
      %v1489 = vpop.f32.mrf.mxu0
      %v1490 = vadd.f32 %v1425, %v1489
      %1491 = vdwg.mxu0
      %1492 = vmatpush.msra.mxu0 %v1117
      %1493 = vmatpush.msra.mxu0 %v1116
      %1494 = vmatpush.msra.mxu0 %v1115
      %1495 = vmatpush.msra.mxu0 %v1114
      %1496 = vmatpush.msra.mxu0 %v1113
      %1497 = vmatpush.msra.mxu0 %v1112
      %1498 = vmatpush.msra.mxu0 %v1111
      %1499 = vmatpush.msra.mxu0 %v1110
      %1500 = vmatpush.msra.mxu0 %v1109
      %1501 = vmatpush.msra.mxu0 %v1108
      %1502 = vmatpush.msra.mxu0 %v1107
      %1503 = vmatpush.msra.mxu0 %v1106
      %1504 = vmatpush.msra.mxu0 %v1105
      %1505 = vmatpush.msra.mxu0 %v1104
      %1506 = vmatpush.msra.mxu0 %v1103
      %1507 = vmatpush.msra.mxu0 %v1102
      %1508 = vmatmul.f32.gmra.mxu0 %v1050
      %v1509 = vpop.f32.mrf.mxu0
      %v1510 = vadd.f32 %v1445, %v1509
      %1511 = vmatmul.f32.gmra.mxu0 %v1051
      %v1512 = vpop.f32.mrf.mxu0
      %v1513 = vadd.f32 %v1448, %v1512
      %1514 = vmatmul.f32.gmra.mxu0 %v1052
      %v1515 = vpop.f32.mrf.mxu0
      %v1516 = vadd.f32 %v1451, %v1515
      %1517 = vmatmul.f32.gmra.mxu0 %v1053
      %v1518 = vpop.f32.mrf.mxu0
      %v1519 = vadd.f32 %v1454, %v1518
      %1520 = vmatmul.f32.gmra.mxu0 %v1054
      %v1521 = vpop.f32.mrf.mxu0
      %v1522 = vadd.f32 %v1457, %v1521
      %1523 = vmatmul.f32.gmra.mxu0 %v1055
      %v1524 = vpop.f32.mrf.mxu0
      %v1525 = vadd.f32 %v1460, %v1524
      %1526 = vmatmul.f32.gmra.mxu0 %v1056
      %v1527 = vpop.f32.mrf.mxu0
      %v1528 = vadd.f32 %v1463, %v1527
      %1529 = vmatmul.f32.gmra.mxu0 %v1057
      %v1530 = vpop.f32.mrf.mxu0
      %v1531 = vadd.f32 %v1466, %v1530
      %1532 = vmatmul.f32.gmra.mxu0 %v1058
      %v1533 = vpop.f32.mrf.mxu0
      %v1534 = vadd.f32 %v1469, %v1533
      %1535 = vmatmul.f32.gmra.mxu0 %v1059
      %v1536 = vpop.f32.mrf.mxu0
      %v1537 = vadd.f32 %v1472, %v1536
      %1538 = vmatmul.f32.gmra.mxu0 %v1060
      %v1539 = vpop.f32.mrf.mxu0
      %v1540 = vadd.f32 %v1475, %v1539
      %1541 = vmatmul.f32.gmra.mxu0 %v1061
      %v1542 = vpop.f32.mrf.mxu0
      %v1543 = vadd.f32 %v1478, %v1542
      %1544 = vmatmul.f32.gmra.mxu0 %v1062
      %v1545 = vpop.f32.mrf.mxu0
      %v1546 = vadd.f32 %v1481, %v1545
      %1547 = vmatmul.f32.gmra.mxu0 %v1063
      %v1548 = vpop.f32.mrf.mxu0
      %v1549 = vadd.f32 %v1484, %v1548
      %1550 = vmatmul.f32.gmra.mxu0 %v1064
      %v1551 = vpop.f32.mrf.mxu0
      %v1552 = vadd.f32 %v1487, %v1551
      %1553 = vmatmul.f32.gmra.mxu0 %v1065
      %v1554 = vpop.f32.mrf.mxu0
      %v1555 = vadd.f32 %v1490, %v1554
      %1556 = vdwg.mxu0
      %s1557 = scalar_lea.vmem %s5, 768
      %v1558 = vld [vmem:[%s1557] sm:$0xff]
      %v1559 = vld [vmem:[%s1557 + $0x8] sm:$0xff]
      %v1560 = vld [vmem:[%s1557 + $0x10] sm:$0xff]
      %v1561 = vld [vmem:[%s1557 + $0x18] sm:$0xff]
      %v1562 = vld [vmem:[%s1557 + $0x20] sm:$0xff]
      %v1563 = vld [vmem:[%s1557 + $0x28] sm:$0xff]
      %v1564 = vld [vmem:[%s1557 + $0x30] sm:$0xff]
      %v1565 = vld [vmem:[%s1557 + $0x38] sm:$0xff]
      %v1566 = vld [vmem:[%s1557 + $0x40] sm:$0xff]
      %v1567 = vld [vmem:[%s1557 + $0x48] sm:$0xff]
      %v1568 = vld [vmem:[%s1557 + $0x50] sm:$0xff]
      %v1569 = vld [vmem:[%s1557 + $0x58] sm:$0xff]
      %v1570 = vld [vmem:[%s1557 + $0x60] sm:$0xff]
      %v1571 = vld [vmem:[%s1557 + $0x68] sm:$0xff]
      %v1572 = vld [vmem:[%s1557 + $0x70] sm:$0xff]
      %v1573 = vld [vmem:[%s1557 + $0x78] sm:$0xff]
      %v1574 = vld [vmem:[%s1557 + $0x80] sm:$0xff]
      %v1575 = vld [vmem:[%s1557 + $0x88] sm:$0xff]
      %v1576 = vld [vmem:[%s1557 + $0x90] sm:$0xff]
      %v1577 = vld [vmem:[%s1557 + $0x98] sm:$0xff]
      %v1578 = vld [vmem:[%s1557 + $0xa0] sm:$0xff]
      %v1579 = vld [vmem:[%s1557 + $0xa8] sm:$0xff]
      %v1580 = vld [vmem:[%s1557 + $0xb0] sm:$0xff]
      %v1581 = vld [vmem:[%s1557 + $0xb8] sm:$0xff]
      %v1582 = vld [vmem:[%s1557 + $0xc0] sm:$0xff]
      %v1583 = vld [vmem:[%s1557 + $0xc8] sm:$0xff]
      %v1584 = vld [vmem:[%s1557 + $0xd0] sm:$0xff]
      %v1585 = vld [vmem:[%s1557 + $0xd8] sm:$0xff]
      %v1586 = vld [vmem:[%s1557 + $0xe0] sm:$0xff]
      %v1587 = vld [vmem:[%s1557 + $0xe8] sm:$0xff]
      %v1588 = vld [vmem:[%s1557 + $0xf0] sm:$0xff]
      %v1589 = vld [vmem:[%s1557 + $0xf8] sm:$0xff]
      %v1590 = vld [vmem:[%s1557 + $0x100] sm:$0xff]
      %v1591 = vld [vmem:[%s1557 + $0x108] sm:$0xff]
      %v1592 = vld [vmem:[%s1557 + $0x110] sm:$0xff]
      %v1593 = vld [vmem:[%s1557 + $0x118] sm:$0xff]
      %v1594 = vld [vmem:[%s1557 + $0x120] sm:$0xff]
      %v1595 = vld [vmem:[%s1557 + $0x128] sm:$0xff]
      %v1596 = vld [vmem:[%s1557 + $0x130] sm:$0xff]
      %v1597 = vld [vmem:[%s1557 + $0x138] sm:$0xff]
      %v1598 = vld [vmem:[%s1557 + $0x140] sm:$0xff]
      %v1599 = vld [vmem:[%s1557 + $0x148] sm:$0xff]
      %v1600 = vld [vmem:[%s1557 + $0x150] sm:$0xff]
      %v1601 = vld [vmem:[%s1557 + $0x158] sm:$0xff]
      %v1602 = vld [vmem:[%s1557 + $0x160] sm:$0xff]
      %v1603 = vld [vmem:[%s1557 + $0x168] sm:$0xff]
      %v1604 = vld [vmem:[%s1557 + $0x170] sm:$0xff]
      %v1605 = vld [vmem:[%s1557 + $0x178] sm:$0xff]
      %1606 = vmatpush.msra.mxu0 %v1573
      %1607 = vmatpush.msra.mxu0 %v1572
      %1608 = vmatpush.msra.mxu0 %v1571
      %1609 = vmatpush.msra.mxu0 %v1570
      %1610 = vmatpush.msra.mxu0 %v1569
      %1611 = vmatpush.msra.mxu0 %v1568
      %1612 = vmatpush.msra.mxu0 %v1567
      %1613 = vmatpush.msra.mxu0 %v1566
      %1614 = vmatpush.msra.mxu0 %v1565
      %1615 = vmatpush.msra.mxu0 %v1564
      %1616 = vmatpush.msra.mxu0 %v1563
      %1617 = vmatpush.msra.mxu0 %v1562
      %1618 = vmatpush.msra.mxu0 %v1561
      %1619 = vmatpush.msra.mxu0 %v1560
      %1620 = vmatpush.msra.mxu0 %v1559
      %1621 = vmatpush.msra.mxu0 %v1558
      %1622 = vmatmul.f32.gmra.mxu0 %v913
      %v1623 = vpop.f32.mrf.mxu0
      %v1624 = vadd.f32 0.0, %v1623
      %1625 = vmatmul.f32.gmra.mxu0 %v914
      %v1626 = vpop.f32.mrf.mxu0
      %v1627 = vadd.f32 0.0, %v1626
      %1628 = vmatmul.f32.gmra.mxu0 %v915
      %v1629 = vpop.f32.mrf.mxu0
      %v1630 = vadd.f32 0.0, %v1629
      %1631 = vmatmul.f32.gmra.mxu0 %v916
      %v1632 = vpop.f32.mrf.mxu0
      %v1633 = vadd.f32 0.0, %v1632
      %1634 = vmatmul.f32.gmra.mxu0 %v917
      %v1635 = vpop.f32.mrf.mxu0
      %v1636 = vadd.f32 0.0, %v1635
      %1637 = vmatmul.f32.gmra.mxu0 %v918
      %v1638 = vpop.f32.mrf.mxu0
      %v1639 = vadd.f32 0.0, %v1638
      %1640 = vmatmul.f32.gmra.mxu0 %v919
      %v1641 = vpop.f32.mrf.mxu0
      %v1642 = vadd.f32 0.0, %v1641
      %1643 = vmatmul.f32.gmra.mxu0 %v920
      %v1644 = vpop.f32.mrf.mxu0
      %v1645 = vadd.f32 0.0, %v1644
      %1646 = vmatmul.f32.gmra.mxu0 %v921
      %v1647 = vpop.f32.mrf.mxu0
      %v1648 = vadd.f32 0.0, %v1647
      %1649 = vmatmul.f32.gmra.mxu0 %v922
      %v1650 = vpop.f32.mrf.mxu0
      %v1651 = vadd.f32 0.0, %v1650
      %1652 = vmatmul.f32.gmra.mxu0 %v923
      %v1653 = vpop.f32.mrf.mxu0
      %v1654 = vadd.f32 0.0, %v1653
      %1655 = vmatmul.f32.gmra.mxu0 %v924
      %v1656 = vpop.f32.mrf.mxu0
      %v1657 = vadd.f32 0.0, %v1656
      %1658 = vmatmul.f32.gmra.mxu0 %v925
      %v1659 = vpop.f32.mrf.mxu0
      %v1660 = vadd.f32 0.0, %v1659
      %1661 = vmatmul.f32.gmra.mxu0 %v926
      %v1662 = vpop.f32.mrf.mxu0
      %v1663 = vadd.f32 0.0, %v1662
      %1664 = vmatmul.f32.gmra.mxu0 %v927
      %v1665 = vpop.f32.mrf.mxu0
      %v1666 = vadd.f32 0.0, %v1665
      %1667 = vmatmul.f32.gmra.mxu0 %v928
      %v1668 = vpop.f32.mrf.mxu0
      %v1669 = vadd.f32 0.0, %v1668
      %1670 = vdwg.mxu0
      %1671 = vmatpush.msra.mxu0 %v1589
      %1672 = vmatpush.msra.mxu0 %v1588
      %1673 = vmatpush.msra.mxu0 %v1587
      %1674 = vmatpush.msra.mxu0 %v1586
      %1675 = vmatpush.msra.mxu0 %v1585
      %1676 = vmatpush.msra.mxu0 %v1584
      %1677 = vmatpush.msra.mxu0 %v1583
      %1678 = vmatpush.msra.mxu0 %v1582
      %1679 = vmatpush.msra.mxu0 %v1581
      %1680 = vmatpush.msra.mxu0 %v1580
      %1681 = vmatpush.msra.mxu0 %v1579
      %1682 = vmatpush.msra.mxu0 %v1578
      %1683 = vmatpush.msra.mxu0 %v1577
      %1684 = vmatpush.msra.mxu0 %v1576
      %1685 = vmatpush.msra.mxu0 %v1575
      %1686 = vmatpush.msra.mxu0 %v1574
      %1687 = vmatmul.f32.gmra.mxu0 %v465
      %v1688 = vpop.f32.mrf.mxu0
      %v1689 = vadd.f32 %v1624, %v1688
      %1690 = vmatmul.f32.gmra.mxu0 %v466
      %v1691 = vpop.f32.mrf.mxu0
      %v1692 = vadd.f32 %v1627, %v1691
      %1693 = vmatmul.f32.gmra.mxu0 %v467
      %v1694 = vpop.f32.mrf.mxu0
      %v1695 = vadd.f32 %v1630, %v1694
      %1696 = vmatmul.f32.gmra.mxu0 %v468
      %v1697 = vpop.f32.mrf.mxu0
      %v1698 = vadd.f32 %v1633, %v1697
      %1699 = vmatmul.f32.gmra.mxu0 %v469
      %v1700 = vpop.f32.mrf.mxu0
      %v1701 = vadd.f32 %v1636, %v1700
      %1702 = vmatmul.f32.gmra.mxu0 %v470
      %v1703 = vpop.f32.mrf.mxu0
      %v1704 = vadd.f32 %v1639, %v1703
      %1705 = vmatmul.f32.gmra.mxu0 %v471
      %v1706 = vpop.f32.mrf.mxu0
      %v1707 = vadd.f32 %v1642, %v1706
      %1708 = vmatmul.f32.gmra.mxu0 %v472
      %v1709 = vpop.f32.mrf.mxu0
      %v1710 = vadd.f32 %v1645, %v1709
      %1711 = vmatmul.f32.gmra.mxu0 %v473
      %v1712 = vpop.f32.mrf.mxu0
      %v1713 = vadd.f32 %v1648, %v1712
      %1714 = vmatmul.f32.gmra.mxu0 %v474
      %v1715 = vpop.f32.mrf.mxu0
      %v1716 = vadd.f32 %v1651, %v1715
      %1717 = vmatmul.f32.gmra.mxu0 %v475
      %v1718 = vpop.f32.mrf.mxu0
      %v1719 = vadd.f32 %v1654, %v1718
      %1720 = vmatmul.f32.gmra.mxu0 %v476
      %v1721 = vpop.f32.mrf.mxu0
      %v1722 = vadd.f32 %v1657, %v1721
      %1723 = vmatmul.f32.gmra.mxu0 %v477
      %v1724 = vpop.f32.mrf.mxu0
      %v1725 = vadd.f32 %v1660, %v1724
      %1726 = vmatmul.f32.gmra.mxu0 %v478
      %v1727 = vpop.f32.mrf.mxu0
      %v1728 = vadd.f32 %v1663, %v1727
      %1729 = vmatmul.f32.gmra.mxu0 %v505
      %v1730 = vpop.f32.mrf.mxu0
      %v1731 = vadd.f32 %v1666, %v1730
      %1732 = vmatmul.f32.gmra.mxu0 %v506
      %v1733 = vpop.f32.mrf.mxu0
      %v1734 = vadd.f32 %v1669, %v1733
      %1735 = vdwg.mxu0
      %1736 = vmatpush.msra.mxu0 %v1605
      %1737 = vmatpush.msra.mxu0 %v1604
      %1738 = vmatpush.msra.mxu0 %v1603
      %1739 = vmatpush.msra.mxu0 %v1602
      %1740 = vmatpush.msra.mxu0 %v1601
      %1741 = vmatpush.msra.mxu0 %v1600
      %1742 = vmatpush.msra.mxu0 %v1599
      %1743 = vmatpush.msra.mxu0 %v1598
      %1744 = vmatpush.msra.mxu0 %v1597
      %1745 = vmatpush.msra.mxu0 %v1596
      %1746 = vmatpush.msra.mxu0 %v1595
      %1747 = vmatpush.msra.mxu0 %v1594
      %1748 = vmatpush.msra.mxu0 %v1593
      %1749 = vmatpush.msra.mxu0 %v1592
      %1750 = vmatpush.msra.mxu0 %v1591
      %1751 = vmatpush.msra.mxu0 %v1590
      %1752 = vmatmul.f32.gmra.mxu0 %v1054
      %v1753 = vpop.f32.mrf.mxu0
      %v1754 = vadd.f32 %v1689, %v1753
      %1755 = vmatmul.f32.gmra.mxu0 %v1055
      %v1756 = vpop.f32.mrf.mxu0
      %v1757 = vadd.f32 %v1692, %v1756
      %1758 = vmatmul.f32.gmra.mxu0 %v1056
      %v1759 = vpop.f32.mrf.mxu0
      %v1760 = vadd.f32 %v1695, %v1759
      %1761 = vmatmul.f32.gmra.mxu0 %v1057
      %v1762 = vpop.f32.mrf.mxu0
      %v1763 = vadd.f32 %v1698, %v1762
      %1764 = vmatmul.f32.gmra.mxu0 %v1058
      %v1765 = vpop.f32.mrf.mxu0
      %v1766 = vadd.f32 %v1701, %v1765
      %1767 = vmatmul.f32.gmra.mxu0 %v1059
      %v1768 = vpop.f32.mrf.mxu0
      %v1769 = vadd.f32 %v1704, %v1768
      %1770 = vmatmul.f32.gmra.mxu0 %v1060
      %v1771 = vpop.f32.mrf.mxu0
      %v1772 = vadd.f32 %v1707, %v1771
      %1773 = vmatmul.f32.gmra.mxu0 %v1061
      %v1774 = vpop.f32.mrf.mxu0
      %v1775 = vadd.f32 %v1710, %v1774
      %1776 = vmatmul.f32.gmra.mxu0 %v1062
      %v1777 = vpop.f32.mrf.mxu0
      %v1778 = vadd.f32 %v1713, %v1777
      %1779 = vmatmul.f32.gmra.mxu0 %v1063
      %v1780 = vpop.f32.mrf.mxu0
      %v1781 = vadd.f32 %v1716, %v1780
      %1782 = vmatmul.f32.gmra.mxu0 %v1064
      %v1783 = vpop.f32.mrf.mxu0
      %v1784 = vadd.f32 %v1719, %v1783
      %1785 = vmatmul.f32.gmra.mxu0 %v1065
      %v1786 = vpop.f32.mrf.mxu0
      %v1787 = vadd.f32 %v1722, %v1786
      %1788 = vmatmul.f32.gmra.mxu0 %v1066
      %v1789 = vpop.f32.mrf.mxu0
      %v1790 = vadd.f32 %v1725, %v1789
      %1791 = vmatmul.f32.gmra.mxu0 %v1067
      %v1792 = vpop.f32.mrf.mxu0
      %v1793 = vadd.f32 %v1728, %v1792
      %1794 = vmatmul.f32.gmra.mxu0 %v1068
      %v1795 = vpop.f32.mrf.mxu0
      %v1796 = vadd.f32 %v1731, %v1795
      %1797 = vmatmul.f32.gmra.mxu0 %v1069
      %v1798 = vpop.f32.mrf.mxu0
      %v1799 = vadd.f32 %v1734, %v1798
      %1800 = vdwg.mxu0
      %v1801 = vadd.f32 %v1510, %v1754
      %v1802 = vadd.f32 %v1513, %v1757
      %v1803 = vadd.f32 %v1516, %v1760
      %v1804 = vadd.f32 %v1519, %v1763
      %v1805 = vadd.f32 %v1522, %v1766
      %v1806 = vadd.f32 %v1525, %v1769
      %v1807 = vadd.f32 %v1528, %v1772
      %v1808 = vadd.f32 %v1531, %v1775
      %v1809 = vadd.f32 %v1534, %v1778
      %v1810 = vadd.f32 %v1537, %v1781
      %v1811 = vadd.f32 %v1540, %v1784
      %v1812 = vadd.f32 %v1543, %v1787
      %v1813 = vadd.f32 %v1546, %v1790
      %v1814 = vadd.f32 %v1549, %v1793
      %v1815 = vadd.f32 %v1552, %v1796
      %v1816 = vadd.f32 %v1555, %v1799
      %v1817 = vadd.f32 %v1801, %v1802
      %v1818 = vadd.f32 %v1817, %v1803
      %v1819 = vadd.f32 %v1818, %v1804
      %v1820 = vadd.f32 %v1819, %v1805
      %v1821 = vadd.f32 %v1820, %v1806
      %v1822 = vadd.f32 %v1821, %v1807
      %v1823 = vadd.f32 %v1822, %v1808
      %v1824 = vadd.f32 %v1823, %v1809
      %v1825 = vadd.f32 %v1824, %v1810
      %v1826 = vadd.f32 %v1825, %v1811
      %v1827 = vadd.f32 %v1826, %v1812
      %v1828 = vadd.f32 %v1827, %v1813
      %v1829 = vadd.f32 %v1828, %v1814
      %v1830 = vadd.f32 %v1829, %v1815
      %v1831 = vadd.f32 %v1830, %v1816
      %v1832 = vrot.slane %v1831, 4
      %v1833 = vadd.f32 %v1831, %v1832
      %v1834 = vrot.slane %v1833, 2
      %v1835 = vadd.f32 %v1833, %v1834
      %v1836 = vrot.slane %v1835, 1
      %v1837 = vadd.f32 %v1835, %v1836
      %v1838 = vmul.f32 %v1801, %v1801
      %v1839 = vmul.f32 %v1802, %v1802
      %v1840 = vmul.f32 %v1803, %v1803
      %v1841 = vmul.f32 %v1804, %v1804
      %v1842 = vmul.f32 %v1805, %v1805
      %v1843 = vmul.f32 %v1806, %v1806
      %v1844 = vmul.f32 %v1807, %v1807
      %v1845 = vmul.f32 %v1808, %v1808
      %v1846 = vmul.f32 %v1809, %v1809
      %v1847 = vmul.f32 %v1810, %v1810
      %v1848 = vmul.f32 %v1811, %v1811
      %v1849 = vmul.f32 %v1812, %v1812
      %v1850 = vmul.f32 %v1813, %v1813
      %v1851 = vmul.f32 %v1814, %v1814
      %v1852 = vmul.f32 %v1815, %v1815
      %v1853 = vmul.f32 %v1816, %v1816
      %v1854 = vadd.f32 %v1838, %v1839
      %v1855 = vadd.f32 %v1854, %v1840
      %v1856 = vadd.f32 %v1855, %v1841
      %v1857 = vadd.f32 %v1856, %v1842
      %v1858 = vadd.f32 %v1857, %v1843
      %v1859 = vadd.f32 %v1858, %v1844
      %v1860 = vadd.f32 %v1859, %v1845
      %v1861 = vadd.f32 %v1860, %v1846
      %v1862 = vadd.f32 %v1861, %v1847
      %v1863 = vadd.f32 %v1862, %v1848
      %v1864 = vadd.f32 %v1863, %v1849
      %v1865 = vadd.f32 %v1864, %v1850
      %v1866 = vadd.f32 %v1865, %v1851
      %v1867 = vadd.f32 %v1866, %v1852
      %v1868 = vadd.f32 %v1867, %v1853
      %v1869 = vrot.slane %v1868, 4
      %v1870 = vadd.f32 %v1868, %v1869
      %v1871 = vrot.slane %v1870, 2
      %v1872 = vadd.f32 %v1870, %v1871
      %v1873 = vrot.slane %v1872, 1
      %v1874 = vadd.f32 %v1872, %v1873
      %v1875 = vsel %vm808, %v1837, %v1874
      %1876 = vst [vmem:[%s406] sm:$0x3] %v1875
      %1877 = vst [vmem:[%s397] sm:$0xff] %v1801
      %1878 = vst [vmem:[%s397 + $0x8] sm:$0xff] %v1802
      %1879 = vst [vmem:[%s397 + $0x10] sm:$0xff] %v1803
      %1880 = vst [vmem:[%s397 + $0x18] sm:$0xff] %v1804
      %1881 = vst [vmem:[%s397 + $0x20] sm:$0xff] %v1805
      %1882 = vst [vmem:[%s397 + $0x28] sm:$0xff] %v1806
      %1883 = vst [vmem:[%s397 + $0x30] sm:$0xff] %v1807
      %1884 = vst [vmem:[%s397 + $0x38] sm:$0xff] %v1808
      %1885 = vst [vmem:[%s397 + $0x40] sm:$0xff] %v1809
      %1886 = vst [vmem:[%s397 + $0x48] sm:$0xff] %v1810
      %1887 = vst [vmem:[%s397 + $0x50] sm:$0xff] %v1811
      %1888 = vst [vmem:[%s397 + $0x58] sm:$0xff] %v1812
      %1889 = vst [vmem:[%s397 + $0x60] sm:$0xff] %v1813
      %1890 = vst [vmem:[%s397 + $0x68] sm:$0xff] %v1814
      %1891 = vst [vmem:[%s397 + $0x70] sm:$0xff] %v1815
      %1892 = vst [vmem:[%s397 + $0x78] sm:$0xff] %v1816
      %s1893 = smul.u32 16, %s24
      %p1894 = scmp.lt.s32.totalorder %s23, 1
      %s1895 = scalar_select %p1894, %s23, 1
      %p1896 = scmp.lt.s32.totalorder %s1893, 31
      %s1897 = scalar_select %p1896, %s1893, 31
      %s1898 = smul.addr %s1895, 32
      %s1899 = sadd.s32 %s1897, %s1898
      %s1900 = smul.addr %s1899, 8
      %s1901 = scalar_lea.vmem %s6, %s1900
      %p1902 = scmp.lt.s32.totalorder %s23, 1
      %s1903 = scalar_select %p1902, %s23, 1
      %p1904 = scmp.lt.s32.totalorder %s24, 1
      %s1905 = scalar_select %p1904, %s24, 1
      %s1906 = smul.addr %s1903, 2
      %s1907 = sadd.s32 %s1905, %s1906
      %s1908 = smul.addr %s1907, 2
      %s1909 = scalar_lea.vmem %s7, %s1908
      // Predicated region
      $region45: #{unet_conv2_forward.4} parent=43 // pred_check
        %p1910 = pneg %p198
      $region46: #{unet_conv2_forward.4} parent=43 // pred_check_branch
        %1912 = sbr.rel (%p1910) target = $region48
      $region47: #{unet_conv2_forward.4} parent=43 // pred_region
        %s1913 = smul.u32 16, %s24
      $region48: #{unet_conv2_forward.4} parent=43 // pred_fallthru
        _
      // Predicated region
      $region49: #{unet_conv2_forward.4} parent=43 // pred_check
        %p1914 = pneg %p226
      $region50: #{unet_conv2_forward.4} parent=43 // pred_check_branch
        %1916 = sbr.rel (%p1914) target = $region52
      $region51: #{unet_conv2_forward.4} parent=43 // pred_region
        _
      $region52: #{unet_conv2_forward.4} parent=43 // pred_fallthru
        _
    $region44: #{unet_conv2_forward.4} parent=5 // pred_fallthru
      _
    %p1917 = scmp.le.s32.totalorder 2, %s14
    // Predicated region
    $region53: #{unet_conv2_forward.4} parent=5 // pred_check
      %p1918 = pneg %p1917
    $region54: #{unet_conv2_forward.4} parent=5 // pred_check_branch
      %1920 = sbr.rel (%p1918) target = $region56
    $region55: #{unet_conv2_forward.4} parent=5 // pred_region
      %s1921 = ssub.s32 %s14, 2
      // Predicated region
      $region57: #{unet_conv2_forward.4} parent=55 // pred_check
        %p1922 = pneg %p204
      $region58: #{unet_conv2_forward.4} parent=55 // pred_check_branch
        %1924 = sbr.rel (%p1922) target = $region60
      $region59: #{unet_conv2_forward.4} parent=55 // pred_region
        %s1925 = smul.u32 16, %s26
        %p1926 = scmp.lt.s32.totalorder %s25, 1
        %s1927 = scalar_select %p1926, %s25, 1
        %p1928 = scmp.lt.s32.totalorder %s1925, 31
        %s1929 = scalar_select %p1928, %s1925, 31
        %s1930 = smul.addr %s1927, 32
        %s1931 = sadd.s32 %s1929, %s1930
        %s1932 = smul.addr %s1931, 8
        %s1933 = scalar_lea.vmem %s6, %s1932
      $region60: #{unet_conv2_forward.4} parent=55 // pred_fallthru
        _
      // Predicated region
      $region61: #{unet_conv2_forward.4} parent=55 // pred_check
        %p1934 = pneg %p232
      $region62: #{unet_conv2_forward.4} parent=55 // pred_check_branch
        %1936 = sbr.rel (%p1934) target = $region64
      $region63: #{unet_conv2_forward.4} parent=55 // pred_region
        %p1937 = scmp.lt.s32.totalorder %s25, 1
        %s1938 = scalar_select %p1937, %s25, 1
        %p1939 = scmp.lt.s32.totalorder %s26, 1
        %s1940 = scalar_select %p1939, %s26, 1
        %s1941 = smul.addr %s1938, 2
        %s1942 = sadd.s32 %s1940, %s1941
        %s1943 = smul.addr %s1942, 2
        %s1944 = scalar_lea.vmem %s7, %s1943
      $region64: #{unet_conv2_forward.4} parent=55 // pred_fallthru
        _
    $region56: #{unet_conv2_forward.4} parent=5 // pred_fallthru
      _
  $region6: #{unet_conv2_forward.4} parent=0 // loop_footer
    %s18 = sadd.s32 1, %s14
  $region7: #{unet_conv2_forward.4} parent=0 // loop_footer_branch
    %13 = sbr.rel target = $region3
  $region8: #{unet_conv2_forward.4} parent=0 // loop_exit
    _

</llo_original>
